<compile_context>
chip_gen: v7x
topology: tpu7x:2x2x1
jax: 0.10.0
libtpu: 0.0.40
codegen_flags: <defaults>
</compile_context>

<pallas_src>
import functools

import jax
import jax.numpy as jnp
from jax import lax
from jax.experimental import pallas as pl
from jax.experimental.pallas import tpu as pltpu


def residual2_kernel(x_ref, w1_ref, b1_ref, w2_ref, b2_ref, w3_ref, b3_ref,
                     o_ref, pad_ref, *, B, H, W):
    """B images per grid step.

    x_ref  : (B, H*W, Cio)      flattened NHWC images, bf16 (channel-padded)
    w1_ref : (Cio, Chp)         1x1 conv (BN1-folded), bf16
    b1_ref : (1, Chp)           f32
    w2_ref : (9, Chp, Chp)      3x3 conv taps, tap = ky*3+kx (BN2-folded), bf16
    b2_ref : (1, Chp)           f32
    w3_ref : (Chp, Cio)         1x1 conv (BN3-folded), bf16
    b3_ref : (1, Cio)           f32
    o_ref  : (B, H*W, Cio)      bf16
    pad_ref: (B, H+2, W+2, Chp) bf16 VMEM scratch with a 1-wide zero halo
    """
    Ch = w1_ref.shape[1]
    Cio = o_ref.shape[-1]
    HW = H * W

    # ---- keep the zero halo valid (scratch persists across grid steps; the
    # interior is fully overwritten below, only the border must be zero) ----
    pad_ref[:, 0:1, :, :] = jnp.zeros((B, 1, W + 2, Ch), pad_ref.dtype)
    pad_ref[:, H + 1:H + 2, :, :] = jnp.zeros((B, 1, W + 2, Ch), pad_ref.dtype)
    pad_ref[:, :, 0:1, :] = jnp.zeros((B, H + 2, 1, Ch), pad_ref.dtype)
    pad_ref[:, :, W + 1:W + 2, :] = jnp.zeros((B, H + 2, 1, Ch), pad_ref.dtype)

    # ---- conv1 (1x1) + folded BN1 + ReLU : one big matmul -------------------
    x_bf = x_ref[...].reshape(B * HW, x_ref.shape[-1])     # bf16, no f32 copy kept
    h1 = jnp.dot(x_bf, w1_ref[...], preferred_element_type=jnp.float32)
    h1 = jnp.maximum(h1 + b1_ref[...], 0.0)                # (B*HW, Chp) f32

    # one slab store of the scratch interior (halo untouched)
    pad_ref[:, 1:H + 1, 1:W + 1, :] = (
        h1.reshape(B, H, W, Ch).astype(pad_ref.dtype))

    # ---- conv2 (3x3, pad=1, stride=1): 9 whole-block tap matmuls ------------
    def tap_mm(ky, kx):
        tap = pad_ref[:, ky:ky + H, kx:kx + W, :]           # (B,H,W,Chp) bf16
        return jnp.dot(tap.reshape(B * HW, Ch), w2_ref[ky * 3 + kx],
                       preferred_element_type=jnp.float32)

    acc = tap_mm(0, 0)                                      # init from first tap
    for ky in range(3):
        for kx in range(3):
            if ky == 0 and kx == 0:
                continue
            acc = acc + tap_mm(ky, kx)
    h2 = jnp.maximum(acc + b2_ref[...], 0.0)                # bias added once

    # ---- conv3 (1x1) + folded BN3, fused with identity shortcut + ReLU ------
    h3 = jnp.dot(h2.astype(jnp.bfloat16), w3_ref[...],
                 preferred_element_type=jnp.float32) + b3_ref[...]
    # re-read the input only here for the shortcut (f32 add, bf16 store)
    x_res = x_ref[...].reshape(B * HW, Cio).astype(jnp.float32)
    out = jnp.maximum(h3 + x_res, 0.0)
    o_ref[...] = out.reshape(B, HW, Cio).astype(o_ref.dtype)


def _round_up(x, m):
    return ((x + m - 1) // m) * m


def _pad_axis(a, axis, new_size):
    pad = new_size - a.shape[axis]
    if pad == 0:
        return a
    widths = [(0, 0)] * a.ndim
    widths[axis] = (0, pad)
    return jnp.pad(a, widths)


def _vmem_capacity_bytes():
    """Best-effort physical VMEM size; conservative fallback (v7x = 64 MiB)."""
    try:
        info = pltpu.get_tpu_info()
        cap = getattr(info, "vmem_capacity_bytes", None)
        if cap:
            return int(cap)
    except Exception:
        pass
    return 64 * 1024 * 1024


def _vmem_bytes(bt, H, W, cio, ch):
    """Rough per-step VMEM footprint (bf16 I/O double-buffered, weights
    single-buffered, scratch + live f32 intermediates)."""
    hw = H * W
    io_blocks = 2 * (bt * hw * cio * 2 + bt * hw * cio * 2)   # in + out, bf16
    weights = (cio * ch + 9 * ch * ch + ch * cio) * 2 + (2 * ch + cio) * 4
    pad_scr = bt * (H + 2) * (W + 2) * ch * 2
    live = 3 * bt * hw * ch * 4
    return io_blocks + weights + pad_scr + live


def residual2_pallas(x_nhwc, params, *, b_tile=None):
    """x_nhwc: (N, H, W, C_in) float32; params are BN-folded conv weights.

    Returns a float32 (N, H, W, C_out) array (activations travel bf16 in HBM).
    """
    w1, b1, w2, b2, w3, b3 = params
    N, H, W, C_in = x_nhwc.shape
    C_hid = w1.shape[1]
    C_out = w3.shape[1]
    assert C_in == C_out, "identity shortcut requires C_in == C_out"

    LANE = 128
    Cio = _round_up(max(C_in, C_out), LANE)   # shared padded in/out width
    Chp = _round_up(C_hid, LANE)
    HW = H * W

    # ---- exact channel padding + bf16 casts ---------------------------------
    x_p = _pad_axis(x_nhwc, 3, Cio).reshape(N, HW, Cio).astype(jnp.bfloat16)
    w1_p = _pad_axis(_pad_axis(w1, 0, Cio), 1, Chp).astype(jnp.bfloat16)
    w2_p = _pad_axis(_pad_axis(w2.reshape(9, C_hid, C_hid), 1, Chp),
                     2, Chp).astype(jnp.bfloat16)
    w3_p = _pad_axis(_pad_axis(w3, 0, Chp), 1, Cio).astype(jnp.bfloat16)
    b1_p = _pad_axis(b1, 0, Chp).reshape(1, Chp).astype(jnp.float32)
    b2_p = _pad_axis(b2, 0, Chp).reshape(1, Chp).astype(jnp.float32)
    b3_p = _pad_axis(b3, 0, Cio).reshape(1, Cio).astype(jnp.float32)

    # ---- generation-aware VMEM budget & batch tile ---------------------------
    vmem_cap = _vmem_capacity_bytes()
    budget = int(0.6 * vmem_cap)          # ~38 MiB on v7x, ~76 MiB on v5e/v6e

    if b_tile is None:
        # target M ~ 512 rows per step to keep the 256-wide MXU saturated
        b_tile = max(1, min(N, pl.cdiv(512, HW)))
    while b_tile > 1 and _vmem_bytes(b_tile, H, W, Cio, Chp) > budget:
        b_tile -= 1
    # keep at least 2 grid steps so both v7x TensorCores get work
    if N >= 2:
        b_tile = min(b_tile, pl.cdiv(N, 2))
    b_tile = max(1, b_tile)

    N_pad = _round_up(N, b_tile)
    if N_pad != N:
        x_p = jnp.pad(x_p, ((0, N_pad - N), (0, 0), (0, 0)))

    grid = (N_pad // b_tile,)

    est = _vmem_bytes(b_tile, H, W, Cio, Chp)
    vmem_limit = int(min(0.85 * vmem_cap,
                         max(32 * 1024 * 1024, 1.5 * est)))
    vmem_limit = max(vmem_limit, 2 * est)

    weight_bytes = ((Cio * Chp + 9 * Chp * Chp + Chp * Cio) * 2
                    + (2 * Chp + Cio) * 4)
    flops = 2 * N_pad * HW * (Cio * Chp + 9 * Chp * Chp + Chp * Cio)
    bytes_accessed = 2 * N_pad * HW * Cio * 2 + weight_bytes  # bf16 act I/O

    kernel = functools.partial(residual2_kernel, B=b_tile, H=H, W=W)

    def _weight_spec(shape, index_map, mode):
        if mode is None:
            return pl.BlockSpec(shape, index_map)
        return pl.BlockSpec(shape, index_map, pipeline_mode=mode)

    def _call(fancy):
        # constant-index weights: single-buffer them (double-buffering only
        # burns VMEM) when the API supports it.
        wmode = pl.Buffered(1) if fancy else None
        extra = {}
        if fancy:
            extra["cost_estimate"] = pl.CostEstimate(
                flops=flops, transcendentals=0, bytes_accessed=bytes_accessed)
        out = pl.pallas_call(
            kernel,
            out_shape=jax.ShapeDtypeStruct((N_pad, HW, Cio), jnp.bfloat16),
            grid_spec=pltpu.PrefetchScalarGridSpec(
                num_scalar_prefetch=0,
                grid=grid,
                in_specs=[
                    pl.BlockSpec((b_tile, HW, Cio), lambda n: (n, 0, 0)),
                    _weight_spec((Cio, Chp), lambda n: (0, 0), wmode),
                    _weight_spec((1, Chp), lambda n: (0, 0), wmode),
                    _weight_spec((9, Chp, Chp), lambda n: (0, 0, 0), wmode),
                    _weight_spec((1, Chp), lambda n: (0, 0), wmode),
                    _weight_spec((Chp, Cio), lambda n: (0, 0), wmode),
                    _weight_spec((1, Cio), lambda n: (0, 0), wmode),
                ],
                out_specs=pl.BlockSpec((b_tile, HW, Cio), lambda n: (n, 0, 0)),
                scratch_shapes=[
                    pltpu.VMEM((b_tile, H + 2, W + 2, Chp), jnp.bfloat16),
                ],
            ),
            compiler_params=pltpu.CompilerParams(
                dimension_semantics=("parallel",),
                vmem_limit_bytes=vmem_limit),
            **extra,
        )(x_p, w1_p, b1_p, w2_p, b2_p, w3_p, b3_p)
        return jax.block_until_ready(out)

    try:
        out_flat = _call(True)
    except Exception:
        # conservative fallback (previously validated configuration)
        out_flat = _call(False)

    return (out_flat[:N, :, :C_out].astype(jnp.float32)
            .reshape(N, H, W, C_out))


def fold_bn(w, b, gamma, beta, mean, var, eps=1e-5):
    """Fold eval-mode BatchNorm into a conv whose output-channel axis is last."""
    scale = gamma / jnp.sqrt(var + eps)
    return w * scale, (b - mean) * scale + beta


def ref_forward(x_nhwc, params):
    """Pure-JAX reference (same folded params), NHWC, f32."""
    w1, b1, w2, b2, w3, b3 = params
    dn = ('NHWC', 'HWIO', 'NHWC')
    h = lax.conv_general_dilated(x_nhwc, w1[None, None], (1, 1), 'VALID',
                                 dimension_numbers=dn) + b1
    h = jnp.maximum(h, 0.0)
    h = lax.conv_general_dilated(h, w2, (1, 1), 'SAME',
                                 dimension_numbers=dn) + b2
    h = jnp.maximum(h, 0.0)
    h = lax.conv_general_dilated(h, w3[None, None], (1, 1), 'VALID',
                                 dimension_numbers=dn) + b3
    return jnp.maximum(h + x_nhwc, 0.0)


if __name__ == "__main__":
    # Small shapes consistent with the module: downsampling=False requires
    # the input channel count to equal out_channels.
    N, H, W = 2, 8, 8
    C_in = C_out = 16          # out_channels (= shortcut identity channels)
    C_hid = 4                  # hidden_channels

    key = jax.random.PRNGKey(0)
    ks = jax.random.split(key, 20)

    # Raw conv params (channels-last layouts).
    w1 = 0.1 * jax.random.normal(ks[0], (C_in, C_hid), jnp.float32)
    b1 = 0.1 * jax.random.normal(ks[1], (C_hid,), jnp.float32)
    w2 = 0.1 * jax.random.normal(ks[2], (3, 3, C_hid, C_hid), jnp.float32)
    b2 = 0.1 * jax.random.normal(ks[3], (C_hid,), jnp.float32)
    w3 = 0.1 * jax.random.normal(ks[4], (C_hid, C_out), jnp.float32)
    b3 = 0.1 * jax.random.normal(ks[5], (C_out,), jnp.float32)

    # Eval-mode BatchNorm parameters (deterministic, non-trivial).
    g1 = 1.0 + 0.1 * jax.random.normal(ks[6], (C_hid,), jnp.float32)
    be1 = 0.1 * jax.random.normal(ks[7], (C_hid,), jnp.float32)
    m1 = 0.1 * jax.random.normal(ks[8], (C_hid,), jnp.float32)
    v1 = jnp.abs(1.0 + 0.1 * jax.random.normal(ks[9], (C_hid,), jnp.float32))

    g2 = 1.0 + 0.1 * jax.random.normal(ks[10], (C_hid,), jnp.float32)
    be2 = 0.1 * jax.random.normal(ks[11], (C_hid,), jnp.float32)
    m2 = 0.1 * jax.random.normal(ks[12], (C_hid,), jnp.float32)
    v2 = jnp.abs(1.0 + 0.1 * jax.random.normal(ks[13], (C_hid,), jnp.float32))

    g3 = 1.0 + 0.1 * jax.random.normal(ks[14], (C_out,), jnp.float32)
    be3 = 0.1 * jax.random.normal(ks[15], (C_out,), jnp.float32)
    m3 = 0.1 * jax.random.normal(ks[16], (C_out,), jnp.float32)
    v3 = jnp.abs(1.0 + 0.1 * jax.random.normal(ks[17], (C_out,), jnp.float32))

    wf1, bf1 = fold_bn(w1, b1, g1, be1, m1, v1)
    wf2, bf2 = fold_bn(w2, b2, g2, be2, m2, v2)
    wf3, bf3 = fold_bn(w3, b3, g3, be3, m3, v3)
    params = (wf1, bf1, wf2, bf2, wf3, bf3)

    # PyTorch-style NCHW input, transposed to NHWC for the kernel.
    x_nchw = jax.random.normal(ks[18], (N, C_in, H, W), jnp.float32)
    x_nhwc = jnp.transpose(x_nchw, (0, 2, 3, 1))

    out = residual2_pallas(x_nhwc, params)
    out = jax.block_until_ready(out)

    ref = ref_forward(x_nhwc, params)
    assert out.shape == (N, H, W, C_out)
    # bf16 activation I/O + bf16 MXU inputs -> relaxed tolerance vs f32 ref.
    assert jnp.allclose(out, ref, atol=5e-2, rtol=5e-2), "kernel/reference mismatch"

    print("KERNEL_OK")
</pallas_src>

<mosaic_0001>
module attributes {stable_mosaic.version = 11 : i64} {
  func.func @residual2_kernel(%arg0: i32, %arg1: memref<1x64x128xbf16, #tpu.memory_space<vmem>>, %arg2: memref<128x128xbf16, #tpu.memory_space<vmem>>, %arg3: memref<1x128xf32, #tpu.memory_space<vmem>>, %arg4: memref<9x128x128xbf16, #tpu.memory_space<vmem>>, %arg5: memref<1x128xf32, #tpu.memory_space<vmem>>, %arg6: memref<128x128xbf16, #tpu.memory_space<vmem>>, %arg7: memref<1x128xf32, #tpu.memory_space<vmem>>, %arg8: memref<1x64x128xbf16, #tpu.memory_space<vmem>>, %arg9: memref<1x10x10x128xbf16, #tpu.memory_space<vmem>>) attributes {dimension_semantics = [#tpu.dimension_semantics<parallel>], iteration_bounds = array<i64: 2>, scalar_prefetch = 0 : i64, scratch_operands = 1 : i64, tpu.core_type = #tpu.core_type<tc>, window_params = [{transform_indices = @transform_0, window_bounds = array<i64: 1, 64, 128>}, {pipeline_mode = #tpu.pipeline_mode<synchronous>, transform_indices = @transform_1, window_bounds = array<i64: 128, 128>}, {pipeline_mode = #tpu.pipeline_mode<synchronous>, transform_indices = @transform_2, window_bounds = array<i64: 1, 128>}, {pipeline_mode = #tpu.pipeline_mode<synchronous>, transform_indices = @transform_3, window_bounds = array<i64: 9, 128, 128>}, {pipeline_mode = #tpu.pipeline_mode<synchronous>, transform_indices = @transform_4, window_bounds = array<i64: 1, 128>}, {pipeline_mode = #tpu.pipeline_mode<synchronous>, transform_indices = @transform_5, window_bounds = array<i64: 128, 128>}, {pipeline_mode = #tpu.pipeline_mode<synchronous>, transform_indices = @transform_6, window_bounds = array<i64: 1, 128>}, {transform_indices = @transform_7, window_bounds = array<i64: 1, 64, 128>}]} {
    %cst = arith.constant 0.000000e+00 : bf16
    %0 = vector.broadcast %cst : bf16 to vector<1x1x10x128xbf16>
    %c0 = arith.constant 0 : index
    %c0_0 = arith.constant 0 : index
    %c0_1 = arith.constant 0 : index
    %c0_2 = arith.constant 0 : index
    %1 = vector.load %arg9[%c0, %c0_0, %c0_1, %c0_2] : memref<1x10x10x128xbf16, #tpu.memory_space<vmem>>, vector<1x1x10x128xbf16>
    tpu.vector_store %arg9[%c0, %c0_0, %c0_1, %c0_2], %0 {strides = array<i32>} : memref<1x10x10x128xbf16, #tpu.memory_space<vmem>>, vector<1x1x10x128xbf16>,
    %cst_3 = arith.constant 0.000000e+00 : bf16
    %2 = vector.broadcast %cst_3 : bf16 to vector<1x1x10x128xbf16>
    %c0_4 = arith.constant 0 : index
    %c9 = arith.constant 9 : index
    %c0_5 = arith.constant 0 : index
    %c0_6 = arith.constant 0 : index
    %3 = vector.load %arg9[%c0_4, %c9, %c0_5, %c0_6] : memref<1x10x10x128xbf16, #tpu.memory_space<vmem>>, vector<1x1x10x128xbf16>
    tpu.vector_store %arg9[%c0_4, %c9, %c0_5, %c0_6], %2 {strides = array<i32>} : memref<1x10x10x128xbf16, #tpu.memory_space<vmem>>, vector<1x1x10x128xbf16>,
    %cst_7 = arith.constant 0.000000e+00 : bf16
    %4 = vector.broadcast %cst_7 : bf16 to vector<1x10x1x128xbf16>
    %c0_8 = arith.constant 0 : index
    %c0_9 = arith.constant 0 : index
    %c0_10 = arith.constant 0 : index
    %c0_11 = arith.constant 0 : index
    %5 = vector.load %arg9[%c0_8, %c0_9, %c0_10, %c0_11] : memref<1x10x10x128xbf16, #tpu.memory_space<vmem>>, vector<1x10x1x128xbf16>
    tpu.vector_store %arg9[%c0_8, %c0_9, %c0_10, %c0_11], %4 {strides = array<i32>} : memref<1x10x10x128xbf16, #tpu.memory_space<vmem>>, vector<1x10x1x128xbf16>,
    %cst_12 = arith.constant 0.000000e+00 : bf16
    %6 = vector.broadcast %cst_12 : bf16 to vector<1x10x1x128xbf16>
    %c0_13 = arith.constant 0 : index
    %c0_14 = arith.constant 0 : index
    %c9_15 = arith.constant 9 : index
    %c0_16 = arith.constant 0 : index
    %7 = vector.load %arg9[%c0_13, %c0_14, %c9_15, %c0_16] : memref<1x10x10x128xbf16, #tpu.memory_space<vmem>>, vector<1x10x1x128xbf16>
    tpu.vector_store %arg9[%c0_13, %c0_14, %c9_15, %c0_16], %6 {strides = array<i32>} : memref<1x10x10x128xbf16, #tpu.memory_space<vmem>>, vector<1x10x1x128xbf16>,
    %c0_17 = arith.constant 0 : index
    %c0_18 = arith.constant 0 : index
    %c0_19 = arith.constant 0 : index
    %8 = vector.load %arg1[%c0_17, %c0_18, %c0_19] : memref<1x64x128xbf16, #tpu.memory_space<vmem>>, vector<1x64x128xbf16>
    %9 = vector.shape_cast %8 : vector<1x64x128xbf16> to vector<64x128xbf16>
    %c0_20 = arith.constant 0 : index
    %c0_21 = arith.constant 0 : index
    %10 = vector.load %arg2[%c0_20, %c0_21] : memref<128x128xbf16, #tpu.memory_space<vmem>>, vector<128x128xbf16>
    %cst_22 = arith.constant dense<0.000000e+00> : vector<64x128xf32>
    %11 = tpu.matmul %9, %10, %cst_22 {dimension_numbers = #tpu.dot_dimension_numbers<[1], [0], [0], [1], [0, 0, 1, 1], [], []>} : vector<64x128xbf16>, vector<128x128xbf16>, vector<64x128xf32> -> vector<64x128xf32>
    %c0_23 = arith.constant 0 : index
    %c0_24 = arith.constant 0 : index
    %12 = vector.load %arg3[%c0_23, %c0_24] : memref<1x128xf32, #tpu.memory_space<vmem>>, vector<1x128xf32>
    %13 = vector.broadcast %12 : vector<1x128xf32> to vector<64x128xf32>
    %14 = arith.addf %11, %13 : vector<64x128xf32>
    %cst_25 = arith.constant 0.000000e+00 : f32
    %15 = vector.broadcast %cst_25 : f32 to vector<64x128xf32>
    %16 = arith.maximumf %14, %15 : vector<64x128xf32>
    %17 = vector.shape_cast %16 : vector<64x128xf32> to vector<1x8x8x128xf32>
    %18 = arith.truncf %17 : vector<1x8x8x128xf32> to vector<1x8x8x128xbf16>
    %c0_26 = arith.constant 0 : index
    %c1 = arith.constant 1 : index
    %c1_27 = arith.constant 1 : index
    %c0_28 = arith.constant 0 : index
    %19 = vector.load %arg9[%c0_26, %c1, %c1_27, %c0_28] : memref<1x10x10x128xbf16, #tpu.memory_space<vmem>>, vector<1x8x8x128xbf16>
    tpu.vector_store %arg9[%c0_26, %c1, %c1_27, %c0_28], %18 {strides = array<i32>} : memref<1x10x10x128xbf16, #tpu.memory_space<vmem>>, vector<1x8x8x128xbf16>,
    %c0_29 = arith.constant 0 : index
    %c0_30 = arith.constant 0 : index
    %c0_31 = arith.constant 0 : index
    %c0_32 = arith.constant 0 : index
    %20 = vector.load %arg9[%c0_29, %c0_30, %c0_31, %c0_32] : memref<1x10x10x128xbf16, #tpu.memory_space<vmem>>, vector<1x8x8x128xbf16>
    %21 = vector.shape_cast %20 : vector<1x8x8x128xbf16> to vector<64x128xbf16>
    %c0_33 = arith.constant 0 : index
    %c0_34 = arith.constant 0 : index
    %c0_35 = arith.constant 0 : index
    %22 = vector.load %arg4[%c0_33, %c0_34, %c0_35] : memref<9x128x128xbf16, #tpu.memory_space<vmem>>, vector<1x128x128xbf16>
    %23 = vector.shape_cast %22 : vector<1x128x128xbf16> to vector<128x128xbf16>
    %cst_36 = arith.constant dense<0.000000e+00> : vector<64x128xf32>
    %24 = tpu.matmul %21, %23, %cst_36 {dimension_numbers = #tpu.dot_dimension_numbers<[1], [0], [0], [1], [0, 0, 1, 1], [], []>} : vector<64x128xbf16>, vector<128x128xbf16>, vector<64x128xf32> -> vector<64x128xf32>
    %c0_37 = arith.constant 0 : index
    %c0_38 = arith.constant 0 : index
    %c1_39 = arith.constant 1 : index
    %c0_40 = arith.constant 0 : index
    %25 = vector.load %arg9[%c0_37, %c0_38, %c1_39, %c0_40] : memref<1x10x10x128xbf16, #tpu.memory_space<vmem>>, vector<1x8x8x128xbf16>
    %26 = vector.shape_cast %25 : vector<1x8x8x128xbf16> to vector<64x128xbf16>
    %c1_41 = arith.constant 1 : index
    %c0_42 = arith.constant 0 : index
    %c0_43 = arith.constant 0 : index
    %27 = vector.load %arg4[%c1_41, %c0_42, %c0_43] : memref<9x128x128xbf16, #tpu.memory_space<vmem>>, vector<1x128x128xbf16>
    %28 = vector.shape_cast %27 : vector<1x128x128xbf16> to vector<128x128xbf16>
    %cst_44 = arith.constant dense<0.000000e+00> : vector<64x128xf32>
    %29 = tpu.matmul %26, %28, %cst_44 {dimension_numbers = #tpu.dot_dimension_numbers<[1], [0], [0], [1], [0, 0, 1, 1], [], []>} : vector<64x128xbf16>, vector<128x128xbf16>, vector<64x128xf32> -> vector<64x128xf32>
    %30 = arith.addf %24, %29 : vector<64x128xf32>
    %c0_45 = arith.constant 0 : index
    %c0_46 = arith.constant 0 : index
    %c2 = arith.constant 2 : index
    %c0_47 = arith.constant 0 : index
    %31 = vector.load %arg9[%c0_45, %c0_46, %c2, %c0_47] : memref<1x10x10x128xbf16, #tpu.memory_space<vmem>>, vector<1x8x8x128xbf16>
    %32 = vector.shape_cast %31 : vector<1x8x8x128xbf16> to vector<64x128xbf16>
    %c2_48 = arith.constant 2 : index
    %c0_49 = arith.constant 0 : index
    %c0_50 = arith.constant 0 : index
    %33 = vector.load %arg4[%c2_48, %c0_49, %c0_50] : memref<9x128x128xbf16, #tpu.memory_space<vmem>>, vector<1x128x128xbf16>
    %34 = vector.shape_cast %33 : vector<1x128x128xbf16> to vector<128x128xbf16>
    %cst_51 = arith.constant dense<0.000000e+00> : vector<64x128xf32>
    %35 = tpu.matmul %32, %34, %cst_51 {dimension_numbers = #tpu.dot_dimension_numbers<[1], [0], [0], [1], [0, 0, 1, 1], [], []>} : vector<64x128xbf16>, vector<128x128xbf16>, vector<64x128xf32> -> vector<64x128xf32>
    %36 = arith.addf %30, %35 : vector<64x128xf32>
    %c0_52 = arith.constant 0 : index
    %c1_53 = arith.constant 1 : index
    %c0_54 = arith.constant 0 : index
    %c0_55 = arith.constant 0 : index
    %37 = vector.load %arg9[%c0_52, %c1_53, %c0_54, %c0_55] : memref<1x10x10x128xbf16, #tpu.memory_space<vmem>>, vector<1x8x8x128xbf16>
    %38 = vector.shape_cast %37 : vector<1x8x8x128xbf16> to vector<64x128xbf16>
    %c3 = arith.constant 3 : index
    %c0_56 = arith.constant 0 : index
    %c0_57 = arith.constant 0 : index
    %39 = vector.load %arg4[%c3, %c0_56, %c0_57] : memref<9x128x128xbf16, #tpu.memory_space<vmem>>, vector<1x128x128xbf16>
    %40 = vector.shape_cast %39 : vector<1x128x128xbf16> to vector<128x128xbf16>
    %cst_58 = arith.constant dense<0.000000e+00> : vector<64x128xf32>
    %41 = tpu.matmul %38, %40, %cst_58 {dimension_numbers = #tpu.dot_dimension_numbers<[1], [0], [0], [1], [0, 0, 1, 1], [], []>} : vector<64x128xbf16>, vector<128x128xbf16>, vector<64x128xf32> -> vector<64x128xf32>
    %42 = arith.addf %36, %41 : vector<64x128xf32>
    %c0_59 = arith.constant 0 : index
    %c1_60 = arith.constant 1 : index
    %c1_61 = arith.constant 1 : index
    %c0_62 = arith.constant 0 : index
    %43 = vector.load %arg9[%c0_59, %c1_60, %c1_61, %c0_62] : memref<1x10x10x128xbf16, #tpu.memory_space<vmem>>, vector<1x8x8x128xbf16>
    %44 = vector.shape_cast %43 : vector<1x8x8x128xbf16> to vector<64x128xbf16>
    %c4 = arith.constant 4 : index
    %c0_63 = arith.constant 0 : index
    %c0_64 = arith.constant 0 : index
    %45 = vector.load %arg4[%c4, %c0_63, %c0_64] : memref<9x128x128xbf16, #tpu.memory_space<vmem>>, vector<1x128x128xbf16>
    %46 = vector.shape_cast %45 : vector<1x128x128xbf16> to vector<128x128xbf16>
    %cst_65 = arith.constant dense<0.000000e+00> : vector<64x128xf32>
    %47 = tpu.matmul %44, %46, %cst_65 {dimension_numbers = #tpu.dot_dimension_numbers<[1], [0], [0], [1], [0, 0, 1, 1], [], []>} : vector<64x128xbf16>, vector<128x128xbf16>, vector<64x128xf32> -> vector<64x128xf32>
    %48 = arith.addf %42, %47 : vector<64x128xf32>
    %c0_66 = arith.constant 0 : index
    %c1_67 = arith.constant 1 : index
    %c2_68 = arith.constant 2 : index
    %c0_69 = arith.constant 0 : index
    %49 = vector.load %arg9[%c0_66, %c1_67, %c2_68, %c0_69] : memref<1x10x10x128xbf16, #tpu.memory_space<vmem>>, vector<1x8x8x128xbf16>
    %50 = vector.shape_cast %49 : vector<1x8x8x128xbf16> to vector<64x128xbf16>
    %c5 = arith.constant 5 : index
    %c0_70 = arith.constant 0 : index
    %c0_71 = arith.constant 0 : index
    %51 = vector.load %arg4[%c5, %c0_70, %c0_71] : memref<9x128x128xbf16, #tpu.memory_space<vmem>>, vector<1x128x128xbf16>
    %52 = vector.shape_cast %51 : vector<1x128x128xbf16> to vector<128x128xbf16>
    %cst_72 = arith.constant dense<0.000000e+00> : vector<64x128xf32>
    %53 = tpu.matmul %50, %52, %cst_72 {dimension_numbers = #tpu.dot_dimension_numbers<[1], [0], [0], [1], [0, 0, 1, 1], [], []>} : vector<64x128xbf16>, vector<128x128xbf16>, vector<64x128xf32> -> vector<64x128xf32>
    %54 = arith.addf %48, %53 : vector<64x128xf32>
    %c0_73 = arith.constant 0 : index
    %c2_74 = arith.constant 2 : index
    %c0_75 = arith.constant 0 : index
    %c0_76 = arith.constant 0 : index
    %55 = vector.load %arg9[%c0_73, %c2_74, %c0_75, %c0_76] : memref<1x10x10x128xbf16, #tpu.memory_space<vmem>>, vector<1x8x8x128xbf16>
    %56 = vector.shape_cast %55 : vector<1x8x8x128xbf16> to vector<64x128xbf16>
    %c6 = arith.constant 6 : index
    %c0_77 = arith.constant 0 : index
    %c0_78 = arith.constant 0 : index
    %57 = vector.load %arg4[%c6, %c0_77, %c0_78] : memref<9x128x128xbf16, #tpu.memory_space<vmem>>, vector<1x128x128xbf16>
    %58 = vector.shape_cast %57 : vector<1x128x128xbf16> to vector<128x128xbf16>
    %cst_79 = arith.constant dense<0.000000e+00> : vector<64x128xf32>
    %59 = tpu.matmul %56, %58, %cst_79 {dimension_numbers = #tpu.dot_dimension_numbers<[1], [0], [0], [1], [0, 0, 1, 1], [], []>} : vector<64x128xbf16>, vector<128x128xbf16>, vector<64x128xf32> -> vector<64x128xf32>
    %60 = arith.addf %54, %59 : vector<64x128xf32>
    %c0_80 = arith.constant 0 : index
    %c2_81 = arith.constant 2 : index
    %c1_82 = arith.constant 1 : index
    %c0_83 = arith.constant 0 : index
    %61 = vector.load %arg9[%c0_80, %c2_81, %c1_82, %c0_83] : memref<1x10x10x128xbf16, #tpu.memory_space<vmem>>, vector<1x8x8x128xbf16>
    %62 = vector.shape_cast %61 : vector<1x8x8x128xbf16> to vector<64x128xbf16>
    %c7 = arith.constant 7 : index
    %c0_84 = arith.constant 0 : index
    %c0_85 = arith.constant 0 : index
    %63 = vector.load %arg4[%c7, %c0_84, %c0_85] : memref<9x128x128xbf16, #tpu.memory_space<vmem>>, vector<1x128x128xbf16>
    %64 = vector.shape_cast %63 : vector<1x128x128xbf16> to vector<128x128xbf16>
    %cst_86 = arith.constant dense<0.000000e+00> : vector<64x128xf32>
    %65 = tpu.matmul %62, %64, %cst_86 {dimension_numbers = #tpu.dot_dimension_numbers<[1], [0], [0], [1], [0, 0, 1, 1], [], []>} : vector<64x128xbf16>, vector<128x128xbf16>, vector<64x128xf32> -> vector<64x128xf32>
    %66 = arith.addf %60, %65 : vector<64x128xf32>
    %c0_87 = arith.constant 0 : index
    %c2_88 = arith.constant 2 : index
    %c2_89 = arith.constant 2 : index
    %c0_90 = arith.constant 0 : index
    %67 = vector.load %arg9[%c0_87, %c2_88, %c2_89, %c0_90] : memref<1x10x10x128xbf16, #tpu.memory_space<vmem>>, vector<1x8x8x128xbf16>
    %68 = vector.shape_cast %67 : vector<1x8x8x128xbf16> to vector<64x128xbf16>
    %c8 = arith.constant 8 : index
    %c0_91 = arith.constant 0 : index
    %c0_92 = arith.constant 0 : index
    %69 = vector.load %arg4[%c8, %c0_91, %c0_92] : memref<9x128x128xbf16, #tpu.memory_space<vmem>>, vector<1x128x128xbf16>
    %70 = vector.shape_cast %69 : vector<1x128x128xbf16> to vector<128x128xbf16>
    %cst_93 = arith.constant dense<0.000000e+00> : vector<64x128xf32>
    %71 = tpu.matmul %68, %70, %cst_93 {dimension_numbers = #tpu.dot_dimension_numbers<[1], [0], [0], [1], [0, 0, 1, 1], [], []>} : vector<64x128xbf16>, vector<128x128xbf16>, vector<64x128xf32> -> vector<64x128xf32>
    %72 = arith.addf %66, %71 : vector<64x128xf32>
    %c0_94 = arith.constant 0 : index
    %c0_95 = arith.constant 0 : index
    %73 = vector.load %arg5[%c0_94, %c0_95] : memref<1x128xf32, #tpu.memory_space<vmem>>, vector<1x128xf32>
    %74 = vector.broadcast %73 : vector<1x128xf32> to vector<64x128xf32>
    %75 = arith.addf %72, %74 : vector<64x128xf32>
    %cst_96 = arith.constant 0.000000e+00 : f32
    %76 = vector.broadcast %cst_96 : f32 to vector<64x128xf32>
    %77 = arith.maximumf %75, %76 : vector<64x128xf32>
    %78 = arith.truncf %77 : vector<64x128xf32> to vector<64x128xbf16>
    %c0_97 = arith.constant 0 : index
    %c0_98 = arith.constant 0 : index
    %79 = vector.load %arg6[%c0_97, %c0_98] : memref<128x128xbf16, #tpu.memory_space<vmem>>, vector<128x128xbf16>
    %cst_99 = arith.constant dense<0.000000e+00> : vector<64x128xf32>
    %80 = tpu.matmul %78, %79, %cst_99 {dimension_numbers = #tpu.dot_dimension_numbers<[1], [0], [0], [1], [0, 0, 1, 1], [], []>} : vector<64x128xbf16>, vector<128x128xbf16>, vector<64x128xf32> -> vector<64x128xf32>
    %c0_100 = arith.constant 0 : index
    %c0_101 = arith.constant 0 : index
    %81 = vector.load %arg7[%c0_100, %c0_101] : memref<1x128xf32, #tpu.memory_space<vmem>>, vector<1x128xf32>
    %82 = vector.broadcast %81 : vector<1x128xf32> to vector<64x128xf32>
    %83 = arith.addf %80, %82 : vector<64x128xf32>
    %c0_102 = arith.constant 0 : index
    %c0_103 = arith.constant 0 : index
    %c0_104 = arith.constant 0 : index
    %84 = vector.load %arg1[%c0_102, %c0_103, %c0_104] : memref<1x64x128xbf16, #tpu.memory_space<vmem>>, vector<1x64x128xbf16>
    %85 = vector.shape_cast %84 : vector<1x64x128xbf16> to vector<64x128xbf16>
    %86 = arith.extf %85 : vector<64x128xbf16> to vector<64x128xf32>
    %87 = arith.addf %83, %86 : vector<64x128xf32>
    %cst_105 = arith.constant 0.000000e+00 : f32
    %88 = vector.broadcast %cst_105 : f32 to vector<64x128xf32>
    %89 = arith.maximumf %87, %88 : vector<64x128xf32>
    %90 = vector.shape_cast %89 : vector<64x128xf32> to vector<1x64x128xf32>
    %91 = arith.truncf %90 : vector<1x64x128xf32> to vector<1x64x128xbf16>
    %c0_106 = arith.constant 0 : index
    %c0_107 = arith.constant 0 : index
    %c0_108 = arith.constant 0 : index
    %92 = vector.load %arg8[%c0_106, %c0_107, %c0_108] : memref<1x64x128xbf16, #tpu.memory_space<vmem>>, vector<1x64x128xbf16>
    tpu.vector_store %arg8[%c0_106, %c0_107, %c0_108], %91 {strides = array<i32>} : memref<1x64x128xbf16, #tpu.memory_space<vmem>>, vector<1x64x128xbf16>,
    return
  }
  func.func @transform_0(%arg0: i32) -> (i32, i32, i32) {
    %c0_i32 = arith.constant 0 : i32
    %c0_i32_0 = arith.constant 0 : i32
    %c0_i32_1 = arith.constant 0 : i32
    return %arg0, %c0_i32, %c0_i32_0 : i32, i32, i32
  }
  func.func @transform_1(%arg0: i32) -> (i32, i32) {
    %c0_i32 = arith.constant 0 : i32
    %c0_i32_0 = arith.constant 0 : i32
    %c0_i32_1 = arith.constant 0 : i32
    return %c0_i32, %c0_i32_0 : i32, i32
  }
  func.func @transform_2(%arg0: i32) -> (i32, i32) {
    %c0_i32 = arith.constant 0 : i32
    %c0_i32_0 = arith.constant 0 : i32
    %c0_i32_1 = arith.constant 0 : i32
    return %c0_i32, %c0_i32_0 : i32, i32
  }
  func.func @transform_3(%arg0: i32) -> (i32, i32, i32) {
    %c0_i32 = arith.constant 0 : i32
    %c0_i32_0 = arith.constant 0 : i32
    %c0_i32_1 = arith.constant 0 : i32
    %c0_i32_2 = arith.constant 0 : i32
    return %c0_i32, %c0_i32_0, %c0_i32_1 : i32, i32, i32
  }
  func.func @transform_4(%arg0: i32) -> (i32, i32) {
    %c0_i32 = arith.constant 0 : i32
    %c0_i32_0 = arith.constant 0 : i32
    %c0_i32_1 = arith.constant 0 : i32
    return %c0_i32, %c0_i32_0 : i32, i32
  }
  func.func @transform_5(%arg0: i32) -> (i32, i32) {
    %c0_i32 = arith.constant 0 : i32
    %c0_i32_0 = arith.constant 0 : i32
    %c0_i32_1 = arith.constant 0 : i32
    return %c0_i32, %c0_i32_0 : i32, i32
  }
  func.func @transform_6(%arg0: i32) -> (i32, i32) {
    %c0_i32 = arith.constant 0 : i32
    %c0_i32_0 = arith.constant 0 : i32
    %c0_i32_1 = arith.constant 0 : i32
    return %c0_i32, %c0_i32_0 : i32, i32
  }
  func.func @transform_7(%arg0: i32) -> (i32, i32, i32) {
    %c0_i32 = arith.constant 0 : i32
    %c0_i32_0 = arith.constant 0 : i32
    %c0_i32_1 = arith.constant 0 : i32
    return %arg0, %c0_i32, %c0_i32_0 : i32, i32, i32
  }
}

module attributes {stable_mosaic.version = 11 : i64} {
  func.func @residual2_kernel(%arg0: i32, %arg1: memref<1x64x128xbf16, #tpu.memory_space<vmem>>, %arg2: memref<128x128xbf16, #tpu.memory_space<vmem>>, %arg3: memref<1x128xf32, #tpu.memory_space<vmem>>, %arg4: memref<9x128x128xbf16, #tpu.memory_space<vmem>>, %arg5: memref<1x128xf32, #tpu.memory_space<vmem>>, %arg6: memref<128x128xbf16, #tpu.memory_space<vmem>>, %arg7: memref<1x128xf32, #tpu.memory_space<vmem>>, %arg8: memref<1x64x128xbf16, #tpu.memory_space<vmem>>, %arg9: memref<1x10x10x128xbf16, #tpu.memory_space<vmem>>) attributes {dimension_semantics = [#tpu.dimension_semantics<parallel>], iteration_bounds = array<i64: 2>, scalar_prefetch = 0 : i64, scratch_operands = 1 : i64, tpu.core_type = #tpu.core_type<tc>, window_params = [{transform_indices = @transform_0, window_bounds = array<i64: 1, 64, 128>}, {pipeline_mode = #tpu.pipeline_mode<synchronous>, transform_indices = @transform_1, window_bounds = array<i64: 128, 128>}, {pipeline_mode = #tpu.pipeline_mode<synchronous>, transform_indices = @transform_2, window_bounds = array<i64: 1, 128>}, {pipeline_mode = #tpu.pipeline_mode<synchronous>, transform_indices = @transform_3, window_bounds = array<i64: 9, 128, 128>}, {pipeline_mode = #tpu.pipeline_mode<synchronous>, transform_indices = @transform_4, window_bounds = array<i64: 1, 128>}, {pipeline_mode = #tpu.pipeline_mode<synchronous>, transform_indices = @transform_5, window_bounds = array<i64: 128, 128>}, {pipeline_mode = #tpu.pipeline_mode<synchronous>, transform_indices = @transform_6, window_bounds = array<i64: 1, 128>}, {transform_indices = @transform_7, window_bounds = array<i64: 1, 64, 128>}]} {
    %cst = arith.constant 0.000000e+00 : bf16
    %0 = vector.broadcast %cst : bf16 to vector<1x1x10x128xbf16>
    %c0 = arith.constant 0 : index
    %c0_0 = arith.constant 0 : index
    %c0_1 = arith.constant 0 : index
    %c0_2 = arith.constant 0 : index
    %1 = vector.load %arg9[%c0, %c0_0, %c0_1, %c0_2] : memref<1x10x10x128xbf16, #tpu.memory_space<vmem>>, vector<1x1x10x128xbf16>
    tpu.vector_store %arg9[%c0, %c0_0, %c0_1, %c0_2], %0 {strides = array<i32>} : memref<1x10x10x128xbf16, #tpu.memory_space<vmem>>, vector<1x1x10x128xbf16>,
    %cst_3 = arith.constant 0.000000e+00 : bf16
    %2 = vector.broadcast %cst_3 : bf16 to vector<1x1x10x128xbf16>
    %c0_4 = arith.constant 0 : index
    %c9 = arith.constant 9 : index
    %c0_5 = arith.constant 0 : index
    %c0_6 = arith.constant 0 : index
    %3 = vector.load %arg9[%c0_4, %c9, %c0_5, %c0_6] : memref<1x10x10x128xbf16, #tpu.memory_space<vmem>>, vector<1x1x10x128xbf16>
    tpu.vector_store %arg9[%c0_4, %c9, %c0_5, %c0_6], %2 {strides = array<i32>} : memref<1x10x10x128xbf16, #tpu.memory_space<vmem>>, vector<1x1x10x128xbf16>,
    %cst_7 = arith.constant 0.000000e+00 : bf16
    %4 = vector.broadcast %cst_7 : bf16 to vector<1x10x1x128xbf16>
    %c0_8 = arith.constant 0 : index
    %c0_9 = arith.constant 0 : index
    %c0_10 = arith.constant 0 : index
    %c0_11 = arith.constant 0 : index
    %5 = vector.load %arg9[%c0_8, %c0_9, %c0_10, %c0_11] : memref<1x10x10x128xbf16, #tpu.memory_space<vmem>>, vector<1x10x1x128xbf16>
    tpu.vector_store %arg9[%c0_8, %c0_9, %c0_10, %c0_11], %4 {strides = array<i32>} : memref<1x10x10x128xbf16, #tpu.memory_space<vmem>>, vector<1x10x1x128xbf16>,
    %cst_12 = arith.constant 0.000000e+00 : bf16
    %6 = vector.broadcast %cst_12 : bf16 to vector<1x10x1x128xbf16>
    %c0_13 = arith.constant 0 : index
    %c0_14 = arith.constant 0 : index
    %c9_15 = arith.constant 9 : index
    %c0_16 = arith.constant 0 : index
    %7 = vector.load %arg9[%c0_13, %c0_14, %c9_15, %c0_16] : memref<1x10x10x128xbf16, #tpu.memory_space<vmem>>, vector<1x10x1x128xbf16>
    tpu.vector_store %arg9[%c0_13, %c0_14, %c9_15, %c0_16], %6 {strides = array<i32>} : memref<1x10x10x128xbf16, #tpu.memory_space<vmem>>, vector<1x10x1x128xbf16>,
    %c0_17 = arith.constant 0 : index
    %c0_18 = arith.constant 0 : index
    %c0_19 = arith.constant 0 : index
    %8 = vector.load %arg1[%c0_17, %c0_18, %c0_19] : memref<1x64x128xbf16, #tpu.memory_space<vmem>>, vector<1x64x128xbf16>
    %9 = vector.shape_cast %8 : vector<1x64x128xbf16> to vector<64x128xbf16>
    %c0_20 = arith.constant 0 : index
    %c0_21 = arith.constant 0 : index
    %10 = vector.load %arg2[%c0_20, %c0_21] : memref<128x128xbf16, #tpu.memory_space<vmem>>, vector<128x128xbf16>
    %cst_22 = arith.constant dense<0.000000e+00> : vector<64x128xf32>
    %11 = tpu.matmul %9, %10, %cst_22 {dimension_numbers = #tpu.dot_dimension_numbers<[1], [0], [0], [1], [0, 0, 1, 1], [], []>} : vector<64x128xbf16>, vector<128x128xbf16>, vector<64x128xf32> -> vector<64x128xf32>
    %c0_23 = arith.constant 0 : index
    %c0_24 = arith.constant 0 : index
    %12 = vector.load %arg3[%c0_23, %c0_24] : memref<1x128xf32, #tpu.memory_space<vmem>>, vector<1x128xf32>
    %13 = vector.broadcast %12 : vector<1x128xf32> to vector<64x128xf32>
    %14 = arith.addf %11, %13 : vector<64x128xf32>
    %cst_25 = arith.constant 0.000000e+00 : f32
    %15 = vector.broadcast %cst_25 : f32 to vector<64x128xf32>
    %16 = arith.maximumf %14, %15 : vector<64x128xf32>
    %17 = vector.shape_cast %16 : vector<64x128xf32> to vector<1x8x8x128xf32>
    %18 = arith.truncf %17 : vector<1x8x8x128xf32> to vector<1x8x8x128xbf16>
    %c0_26 = arith.constant 0 : index
    %c1 = arith.constant 1 : index
    %c1_27 = arith.constant 1 : index
    %c0_28 = arith.constant 0 : index
    %19 = vector.load %arg9[%c0_26, %c1, %c1_27, %c0_28] : memref<1x10x10x128xbf16, #tpu.memory_space<vmem>>, vector<1x8x8x128xbf16>
    tpu.vector_store %arg9[%c0_26, %c1, %c1_27, %c0_28], %18 {strides = array<i32>} : memref<1x10x10x128xbf16, #tpu.memory_space<vmem>>, vector<1x8x8x128xbf16>,
    %c0_29 = arith.constant 0 : index
    %c0_30 = arith.constant 0 : index
    %c0_31 = arith.constant 0 : index
    %c0_32 = arith.constant 0 : index
    %20 = vector.load %arg9[%c0_29, %c0_30, %c0_31, %c0_32] : memref<1x10x10x128xbf16, #tpu.memory_space<vmem>>, vector<1x8x8x128xbf16>
    %21 = vector.shape_cast %20 : vector<1x8x8x128xbf16> to vector<64x128xbf16>
    %c0_33 = arith.constant 0 : index
    %c0_34 = arith.constant 0 : index
    %c0_35 = arith.constant 0 : index
    %22 = vector.load %arg4[%c0_33, %c0_34, %c0_35] : memref<9x128x128xbf16, #tpu.memory_space<vmem>>, vector<1x128x128xbf16>
    %23 = vector.shape_cast %22 : vector<1x128x128xbf16> to vector<128x128xbf16>
    %cst_36 = arith.constant dense<0.000000e+00> : vector<64x128xf32>
    %24 = tpu.matmul %21, %23, %cst_36 {dimension_numbers = #tpu.dot_dimension_numbers<[1], [0], [0], [1], [0, 0, 1, 1], [], []>} : vector<64x128xbf16>, vector<128x128xbf16>, vector<64x128xf32> -> vector<64x128xf32>
    %c0_37 = arith.constant 0 : index
    %c0_38 = arith.constant 0 : index
    %c1_39 = arith.constant 1 : index
    %c0_40 = arith.constant 0 : index
    %25 = vector.load %arg9[%c0_37, %c0_38, %c1_39, %c0_40] : memref<1x10x10x128xbf16, #tpu.memory_space<vmem>>, vector<1x8x8x128xbf16>
    %26 = vector.shape_cast %25 : vector<1x8x8x128xbf16> to vector<64x128xbf16>
    %c1_41 = arith.constant 1 : index
    %c0_42 = arith.constant 0 : index
    %c0_43 = arith.constant 0 : index
    %27 = vector.load %arg4[%c1_41, %c0_42, %c0_43] : memref<9x128x128xbf16, #tpu.memory_space<vmem>>, vector<1x128x128xbf16>
    %28 = vector.shape_cast %27 : vector<1x128x128xbf16> to vector<128x128xbf16>
    %cst_44 = arith.constant dense<0.000000e+00> : vector<64x128xf32>
    %29 = tpu.matmul %26, %28, %cst_44 {dimension_numbers = #tpu.dot_dimension_numbers<[1], [0], [0], [1], [0, 0, 1, 1], [], []>} : vector<64x128xbf16>, vector<128x128xbf16>, vector<64x128xf32> -> vector<64x128xf32>
    %30 = arith.addf %24, %29 : vector<64x128xf32>
    %c0_45 = arith.constant 0 : index
    %c0_46 = arith.constant 0 : index
    %c2 = arith.constant 2 : index
    %c0_47 = arith.constant 0 : index
    %31 = vector.load %arg9[%c0_45, %c0_46, %c2, %c0_47] : memref<1x10x10x128xbf16, #tpu.memory_space<vmem>>, vector<1x8x8x128xbf16>
    %32 = vector.shape_cast %31 : vector<1x8x8x128xbf16> to vector<64x128xbf16>
    %c2_48 = arith.constant 2 : index
    %c0_49 = arith.constant 0 : index
    %c0_50 = arith.constant 0 : index
    %33 = vector.load %arg4[%c2_48, %c0_49, %c0_50] : memref<9x128x128xbf16, #tpu.memory_space<vmem>>, vector<1x128x128xbf16>
    %34 = vector.shape_cast %33 : vector<1x128x128xbf16> to vector<128x128xbf16>
    %cst_51 = arith.constant dense<0.000000e+00> : vector<64x128xf32>
    %35 = tpu.matmul %32, %34, %cst_51 {dimension_numbers = #tpu.dot_dimension_numbers<[1], [0], [0], [1], [0, 0, 1, 1], [], []>} : vector<64x128xbf16>, vector<128x128xbf16>, vector<64x128xf32> -> vector<64x128xf32>
    %36 = arith.addf %30, %35 : vector<64x128xf32>
    %c0_52 = arith.constant 0 : index
    %c1_53 = arith.constant 1 : index
    %c0_54 = arith.constant 0 : index
    %c0_55 = arith.constant 0 : index
    %37 = vector.load %arg9[%c0_52, %c1_53, %c0_54, %c0_55] : memref<1x10x10x128xbf16, #tpu.memory_space<vmem>>, vector<1x8x8x128xbf16>
    %38 = vector.shape_cast %37 : vector<1x8x8x128xbf16> to vector<64x128xbf16>
    %c3 = arith.constant 3 : index
    %c0_56 = arith.constant 0 : index
    %c0_57 = arith.constant 0 : index
    %39 = vector.load %arg4[%c3, %c0_56, %c0_57] : memref<9x128x128xbf16, #tpu.memory_space<vmem>>, vector<1x128x128xbf16>
    %40 = vector.shape_cast %39 : vector<1x128x128xbf16> to vector<128x128xbf16>
    %cst_58 = arith.constant dense<0.000000e+00> : vector<64x128xf32>
    %41 = tpu.matmul %38, %40, %cst_58 {dimension_numbers = #tpu.dot_dimension_numbers<[1], [0], [0], [1], [0, 0, 1, 1], [], []>} : vector<64x128xbf16>, vector<128x128xbf16>, vector<64x128xf32> -> vector<64x128xf32>
    %42 = arith.addf %36, %41 : vector<64x128xf32>
    %c0_59 = arith.constant 0 : index
    %c1_60 = arith.constant 1 : index
    %c1_61 = arith.constant 1 : index
    %c0_62 = arith.constant 0 : index
    %43 = vector.load %arg9[%c0_59, %c1_60, %c1_61, %c0_62] : memref<1x10x10x128xbf16, #tpu.memory_space<vmem>>, vector<1x8x8x128xbf16>
    %44 = vector.shape_cast %43 : vector<1x8x8x128xbf16> to vector<64x128xbf16>
    %c4 = arith.constant 4 : index
    %c0_63 = arith.constant 0 : index
    %c0_64 = arith.constant 0 : index
    %45 = vector.load %arg4[%c4, %c0_63, %c0_64] : memref<9x128x128xbf16, #tpu.memory_space<vmem>>, vector<1x128x128xbf16>
    %46 = vector.shape_cast %45 : vector<1x128x128xbf16> to vector<128x128xbf16>
    %cst_65 = arith.constant dense<0.000000e+00> : vector<64x128xf32>
    %47 = tpu.matmul %44, %46, %cst_65 {dimension_numbers = #tpu.dot_dimension_numbers<[1], [0], [0], [1], [0, 0, 1, 1], [], []>} : vector<64x128xbf16>, vector<128x128xbf16>, vector<64x128xf32> -> vector<64x128xf32>
    %48 = arith.addf %42, %47 : vector<64x128xf32>
    %c0_66 = arith.constant 0 : index
    %c1_67 = arith.constant 1 : index
    %c2_68 = arith.constant 2 : index
    %c0_69 = arith.constant 0 : index
    %49 = vector.load %arg9[%c0_66, %c1_67, %c2_68, %c0_69] : memref<1x10x10x128xbf16, #tpu.memory_space<vmem>>, vector<1x8x8x128xbf16>
    %50 = vector.shape_cast %49 : vector<1x8x8x128xbf16> to vector<64x128xbf16>
    %c5 = arith.constant 5 : index
    %c0_70 = arith.constant 0 : index
    %c0_71 = arith.constant 0 : index
    %51 = vector.load %arg4[%c5, %c0_70, %c0_71] : memref<9x128x128xbf16, #tpu.memory_space<vmem>>, vector<1x128x128xbf16>
    %52 = vector.shape_cast %51 : vector<1x128x128xbf16> to vector<128x128xbf16>
    %cst_72 = arith.constant dense<0.000000e+00> : vector<64x128xf32>
    %53 = tpu.matmul %50, %52, %cst_72 {dimension_numbers = #tpu.dot_dimension_numbers<[1], [0], [0], [1], [0, 0, 1, 1], [], []>} : vector<64x128xbf16>, vector<128x128xbf16>, vector<64x128xf32> -> vector<64x128xf32>
    %54 = arith.addf %48, %53 : vector<64x128xf32>
    %c0_73 = arith.constant 0 : index
    %c2_74 = arith.constant 2 : index
    %c0_75 = arith.constant 0 : index
    %c0_76 = arith.constant 0 : index
    %55 = vector.load %arg9[%c0_73, %c2_74, %c0_75, %c0_76] : memref<1x10x10x128xbf16, #tpu.memory_space<vmem>>, vector<1x8x8x128xbf16>
    %56 = vector.shape_cast %55 : vector<1x8x8x128xbf16> to vector<64x128xbf16>
    %c6 = arith.constant 6 : index
    %c0_77 = arith.constant 0 : index
    %c0_78 = arith.constant 0 : index
    %57 = vector.load %arg4[%c6, %c0_77, %c0_78] : memref<9x128x128xbf16, #tpu.memory_space<vmem>>, vector<1x128x128xbf16>
    %58 = vector.shape_cast %57 : vector<1x128x128xbf16> to vector<128x128xbf16>
    %cst_79 = arith.constant dense<0.000000e+00> : vector<64x128xf32>
    %59 = tpu.matmul %56, %58, %cst_79 {dimension_numbers = #tpu.dot_dimension_numbers<[1], [0], [0], [1], [0, 0, 1, 1], [], []>} : vector<64x128xbf16>, vector<128x128xbf16>, vector<64x128xf32> -> vector<64x128xf32>
    %60 = arith.addf %54, %59 : vector<64x128xf32>
    %c0_80 = arith.constant 0 : index
    %c2_81 = arith.constant 2 : index
    %c1_82 = arith.constant 1 : index
    %c0_83 = arith.constant 0 : index
    %61 = vector.load %arg9[%c0_80, %c2_81, %c1_82, %c0_83] : memref<1x10x10x128xbf16, #tpu.memory_space<vmem>>, vector<1x8x8x128xbf16>
    %62 = vector.shape_cast %61 : vector<1x8x8x128xbf16> to vector<64x128xbf16>
    %c7 = arith.constant 7 : index
    %c0_84 = arith.constant 0 : index
    %c0_85 = arith.constant 0 : index
    %63 = vector.load %arg4[%c7, %c0_84, %c0_85] : memref<9x128x128xbf16, #tpu.memory_space<vmem>>, vector<1x128x128xbf16>
    %64 = vector.shape_cast %63 : vector<1x128x128xbf16> to vector<128x128xbf16>
    %cst_86 = arith.constant dense<0.000000e+00> : vector<64x128xf32>
    %65 = tpu.matmul %62, %64, %cst_86 {dimension_numbers = #tpu.dot_dimension_numbers<[1], [0], [0], [1], [0, 0, 1, 1], [], []>} : vector<64x128xbf16>, vector<128x128xbf16>, vector<64x128xf32> -> vector<64x128xf32>
    %66 = arith.addf %60, %65 : vector<64x128xf32>
    %c0_87 = arith.constant 0 : index
    %c2_88 = arith.constant 2 : index
    %c2_89 = arith.constant 2 : index
    %c0_90 = arith.constant 0 : index
    %67 = vector.load %arg9[%c0_87, %c2_88, %c2_89, %c0_90] : memref<1x10x10x128xbf16, #tpu.memory_space<vmem>>, vector<1x8x8x128xbf16>
    %68 = vector.shape_cast %67 : vector<1x8x8x128xbf16> to vector<64x128xbf16>
    %c8 = arith.constant 8 : index
    %c0_91 = arith.constant 0 : index
    %c0_92 = arith.constant 0 : index
    %69 = vector.load %arg4[%c8, %c0_91, %c0_92] : memref<9x128x128xbf16, #tpu.memory_space<vmem>>, vector<1x128x128xbf16>
    %70 = vector.shape_cast %69 : vector<1x128x128xbf16> to vector<128x128xbf16>
    %cst_93 = arith.constant dense<0.000000e+00> : vector<64x128xf32>
    %71 = tpu.matmul %68, %70, %cst_93 {dimension_numbers = #tpu.dot_dimension_numbers<[1], [0], [0], [1], [0, 0, 1, 1], [], []>} : vector<64x128xbf16>, vector<128x128xbf16>, vector<64x128xf32> -> vector<64x128xf32>
    %72 = arith.addf %66, %71 : vector<64x128xf32>
    %c0_94 = arith.constant 0 : index
    %c0_95 = arith.constant 0 : index
    %73 = vector.load %arg5[%c0_94, %c0_95] : memref<1x128xf32, #tpu.memory_space<vmem>>, vector<1x128xf32>
    %74 = vector.broadcast %73 : vector<1x128xf32> to vector<64x128xf32>
    %75 = arith.addf %72, %74 : vector<64x128xf32>
    %cst_96 = arith.constant 0.000000e+00 : f32
    %76 = vector.broadcast %cst_96 : f32 to vector<64x128xf32>
    %77 = arith.maximumf %75, %76 : vector<64x128xf32>
    %78 = arith.truncf %77 : vector<64x128xf32> to vector<64x128xbf16>
    %c0_97 = arith.constant 0 : index
    %c0_98 = arith.constant 0 : index
    %79 = vector.load %arg6[%c0_97, %c0_98] : memref<128x128xbf16, #tpu.memory_space<vmem>>, vector<128x128xbf16>
    %cst_99 = arith.constant dense<0.000000e+00> : vector<64x128xf32>
    %80 = tpu.matmul %78, %79, %cst_99 {dimension_numbers = #tpu.dot_dimension_numbers<[1], [0], [0], [1], [0, 0, 1, 1], [], []>} : vector<64x128xbf16>, vector<128x128xbf16>, vector<64x128xf32> -> vector<64x128xf32>
    %c0_100 = arith.constant 0 : index
    %c0_101 = arith.constant 0 : index
    %81 = vector.load %arg7[%c0_100, %c0_101] : memref<1x128xf32, #tpu.memory_space<vmem>>, vector<1x128xf32>
    %82 = vector.broadcast %81 : vector<1x128xf32> to vector<64x128xf32>
    %83 = arith.addf %80, %82 : vector<64x128xf32>
    %c0_102 = arith.constant 0 : index
    %c0_103 = arith.constant 0 : index
    %c0_104 = arith.constant 0 : index
    %84 = vector.load %arg1[%c0_102, %c0_103, %c0_104] : memref<1x64x128xbf16, #tpu.memory_space<vmem>>, vector<1x64x128xbf16>
    %85 = vector.shape_cast %84 : vector<1x64x128xbf16> to vector<64x128xbf16>
    %86 = arith.extf %85 : vector<64x128xbf16> to vector<64x128xf32>
    %87 = arith.addf %83, %86 : vector<64x128xf32>
    %cst_105 = arith.constant 0.000000e+00 : f32
    %88 = vector.broadcast %cst_105 : f32 to vector<64x128xf32>
    %89 = arith.maximumf %87, %88 : vector<64x128xf32>
    %90 = vector.shape_cast %89 : vector<64x128xf32> to vector<1x64x128xf32>
    %91 = arith.truncf %90 : vector<1x64x128xf32> to vector<1x64x128xbf16>
    %c0_106 = arith.constant 0 : index
    %c0_107 = arith.constant 0 : index
    %c0_108 = arith.constant 0 : index
    %92 = vector.load %arg8[%c0_106, %c0_107, %c0_108] : memref<1x64x128xbf16, #tpu.memory_space<vmem>>, vector<1x64x128xbf16>
    tpu.vector_store %arg8[%c0_106, %c0_107, %c0_108], %91 {strides = array<i32>} : memref<1x64x128xbf16, #tpu.memory_space<vmem>>, vector<1x64x128xbf16>,
    return
  }
  func.func @transform_0(%arg0: i32) -> (i32, i32, i32) {
    %c0_i32 = arith.constant 0 : i32
    %c0_i32_0 = arith.constant 0 : i32
    %c0_i32_1 = arith.constant 0 : i32
    return %arg0, %c0_i32, %c0_i32_0 : i32, i32, i32
  }
  func.func @transform_1(%arg0: i32) -> (i32, i32) {
    %c0_i32 = arith.constant 0 : i32
    %c0_i32_0 = arith.constant 0 : i32
    %c0_i32_1 = arith.constant 0 : i32
    return %c0_i32, %c0_i32_0 : i32, i32
  }
  func.func @transform_2(%arg0: i32) -> (i32, i32) {
    %c0_i32 = arith.constant 0 : i32
    %c0_i32_0 = arith.constant 0 : i32
    %c0_i32_1 = arith.constant 0 : i32
    return %c0_i32, %c0_i32_0 : i32, i32
  }
  func.func @transform_3(%arg0: i32) -> (i32, i32, i32) {
    %c0_i32 = arith.constant 0 : i32
    %c0_i32_0 = arith.constant 0 : i32
    %c0_i32_1 = arith.constant 0 : i32
    %c0_i32_2 = arith.constant 0 : i32
    return %c0_i32, %c0_i32_0, %c0_i32_1 : i32, i32, i32
  }
  func.func @transform_4(%arg0: i32) -> (i32, i32) {
    %c0_i32 = arith.constant 0 : i32
    %c0_i32_0 = arith.constant 0 : i32
    %c0_i32_1 = arith.constant 0 : i32
    return %c0_i32, %c0_i32_0 : i32, i32
  }
  func.func @transform_5(%arg0: i32) -> (i32, i32) {
    %c0_i32 = arith.constant 0 : i32
    %c0_i32_0 = arith.constant 0 : i32
    %c0_i32_1 = arith.constant 0 : i32
    return %c0_i32, %c0_i32_0 : i32, i32
  }
  func.func @transform_6(%arg0: i32) -> (i32, i32) {
    %c0_i32 = arith.constant 0 : i32
    %c0_i32_0 = arith.constant 0 : i32
    %c0_i32_1 = arith.constant 0 : i32
    return %c0_i32, %c0_i32_0 : i32, i32
  }
  func.func @transform_7(%arg0: i32) -> (i32, i32, i32) {
    %c0_i32 = arith.constant 0 : i32
    %c0_i32_0 = arith.constant 0 : i32
    %c0_i32_1 = arith.constant 0 : i32
    return %arg0, %c0_i32, %c0_i32_0 : i32, i32, i32
  }
}

</mosaic_0001>

<llo_original>
// kernel: tpu_custom_call.1
$region0: #{tpu_custom_call.1}
  #allocation0 [shape = 'u32[]', space=smem, size = 0x4, offset = 0x4, fixed_abs, tag = 'smem constant byte address 0x4 - core index']
  #allocation1 [shape = 'u32[144,128]{1,0:T(1,128)}', space=vmem, size = 0x12000, scoped, tag = 'internal scratch']
  #allocation2 [shape = 'bf16[1,10,10,128]{3,2,1,0:T(8,128)(2,1)}', space=vmem, size = 0xa000, scoped, tag = 'scratch operand']
  %s0 = inlined_call_operand.hbm [shape: bf16[2,64,128], index: 0, kind: input, shape index: {}]
  %s1 = inlined_call_operand.hbm [shape: bf16[128,128], index: 1, kind: input, shape index: {}]
  %s2 = inlined_call_operand.vmem [shape: f32[1,128], index: 2, kind: input, shape index: {}]
  %s3 = inlined_call_operand.hbm [shape: bf16[9,128,128], index: 3, kind: input, shape index: {}]
  %s4 = inlined_call_operand.vmem [shape: f32[1,128], index: 4, kind: input, shape index: {}]
  %s5 = inlined_call_operand.hbm [shape: bf16[128,128], index: 5, kind: input, shape index: {}]
  %s6 = inlined_call_operand.vmem [shape: f32[1,128], index: 6, kind: input, shape index: {}]
  %s7 = inlined_call_operand.hbm [shape: bf16[2,64,128], index: 7, kind: output, shape index: {}]
  %s8 = sld [smem:[#allocation0]]
  $region77: #{tpu_custom_call.1} parent=0
    _
  %s10 = ssub.s32 1, %s8
  %s11 = scalar_select 0, %s10, %s8
  $region1: #{tpu_custom_call.1} parent=0
    #allocation3 [shape = 'u8[32768]{0}', space=vmem, size = 0x8000, scoped, tag = 'input window, operand 0']
    #allocation4 [shape = 's32[2]{0}', space=sflag, size = 0x8, scoped, tag = 'scoped memory for tpu_custom_call.1']
    #allocation5 [shape = 's32[2]{0}', space=sflag, size = 0x8, scoped, tag = 'scoped memory for tpu_custom_call.1']
    #allocation6 [shape = 'u8[32768]{0}', space=vmem, size = 0x8000, scoped, tag = 'input window, operand 1, single buffered']
    #allocation7 [shape = 's32[1]{0}', space=sflag, size = 0x4, scoped, tag = 'scoped memory for tpu_custom_call.1']
    #allocation8 [shape = 'u8[294912]{0}', space=vmem, size = 0x48000, scoped, tag = 'input window, operand 3, single buffered']
    #allocation9 [shape = 'u8[32768]{0}', space=vmem, size = 0x8000, scoped, tag = 'input window, operand 5, single buffered']
    #allocation10 [shape = 's32[1]{0}', space=sflag, size = 0x4, scoped, tag = 'scoped memory for tpu_custom_call.1']
    #allocation11 [shape = 'u8[32768]{0}', space=vmem, size = 0x8000, scoped, tag = 'output window, operand 0']
    %12 = vsyncpa [#allocation4], 0
    %s13 = scalar_lea.sflag [#allocation4], 1
    %14 = vsyncpa %s13, 0
    %15 = vsyncpa [#allocation7], 0
    %16 = vsyncpa [#allocation10], 0
    %17 = vsyncpa [#allocation5], 0
    %s18 = scalar_lea.sflag [#allocation5], 1
    %19 = vsyncpa %s18, 0
    loop: start=0, step=1, limit=4
    $region2: #{tpu_custom_call.1} parent=1 // loop_pre_header
      _
    $region3: #{tpu_custom_call.1} parent=1 // loop_header
      %s21 = sphi 0, %s25
      %p22 = scmp.ge.s32.totalorder %s21, 4
      %s31 = sphi 0, %s33
      %s34 = sphi 0, %s31
      %s35 = sphi 0, %s34
      %s51 = sphi 0, %s35
      %s55 = sphi 0, %s55
      %s57 = sphi 0, %s55
      %s58 = sphi 0, %s57
      %s72 = sphi 0, %s58
      %s76 = sphi 0, %s76
      %s78 = sphi 0, %s76
      %s79 = sphi 0, %s78
      %s93 = sphi 0, %s79
      %s97 = sphi 0, %s97
      %s99 = sphi 0, %s97
      %s100 = sphi 0, %s99
      %s114 = sphi 0, %s100
      %s118 = sphi 0, %s118
      %s120 = sphi 0, %s118
      %s121 = sphi 0, %s120
      %s135 = sphi 0, %s121
      %s139 = sphi 0, %s139
      %s141 = sphi 0, %s139
      %s142 = sphi 0, %s141
      %s156 = sphi 0, %s142
      %s160 = sphi 0, %s160
      %s162 = sphi 0, %s160
      %s163 = sphi 0, %s162
      %s177 = sphi 0, %s163
      %s183 = sphi 0, %s185
      %s186 = sphi 0, %s183
      %s187 = sphi 0, %s186
      %s203 = sphi 0, %s187
    $region4: #{tpu_custom_call.1} parent=1 // loop_header_branch
      %24 = sbr.rel (%p22) target = $region8
    $region5: #{tpu_custom_call.1} parent=1 // loop_body
      %s26 = ssub.s32 %s21, 1
      %s27 = ssub.s32 %s21, 2
      %s28 = sadd.s32 %s21, 1
      %s29 = ssub.s32 %s21, %s28
      %p30 = scmp.eq.s32.totalorder %s29, 0
      %s32 = sadd.s32 %s31, 1
      %s33 = scalar_select %p30, %s31, %s32
      %p36 = pneg %p30
      %p37 = scmp.eq.s32.totalorder %s21, 1
      %p38 = por %p36, %p37
      %p39 = scmp.ne.s32.totalorder %s31, %s34
      %p40 = scmp.eq.s32.totalorder %s21, 0
      %p41 = por %p39, %p40
      %p42 = scmp.ne.s32.totalorder %s31, %s34
      %p43 = scmp.eq.s32.totalorder %s26, 1
      %p44 = por %p42, %p43
      %p45 = scmp.ne.s32.totalorder %s34, %s35
      %p46 = scmp.eq.s32.totalorder %s26, 0
      %p47 = por %p45, %p46
      %p48 = scmp.ne.s32.totalorder %s34, %s35
      %p49 = scmp.eq.s32.totalorder %s27, 1
      %p50 = por %p48, %p49
      %p52 = scmp.ne.s32.totalorder %s35, %s51
      %p53 = scmp.eq.s32.totalorder %s27, 0
      %p54 = por %p52, %p53
      %s56 = sadd.s32 %s55, 1
      %p59 = scmp.eq.s32.totalorder %s21, 1
      %p60 = scmp.ne.s32.totalorder %s55, %s57
      %p61 = scmp.eq.s32.totalorder %s21, 0
      %p62 = por %p60, %p61
      %p63 = scmp.ne.s32.totalorder %s55, %s57
      %p64 = scmp.eq.s32.totalorder %s26, 1
      %p65 = por %p63, %p64
      %p66 = scmp.ne.s32.totalorder %s57, %s58
      %p67 = scmp.eq.s32.totalorder %s26, 0
      %p68 = por %p66, %p67
      %p69 = scmp.ne.s32.totalorder %s57, %s58
      %p70 = scmp.eq.s32.totalorder %s27, 1
      %p71 = por %p69, %p70
      %p73 = scmp.ne.s32.totalorder %s58, %s72
      %p74 = scmp.eq.s32.totalorder %s27, 0
      %p75 = por %p73, %p74
      %s77 = sadd.s32 %s76, 1
      %p80 = scmp.eq.s32.totalorder %s21, 1
      %p81 = scmp.ne.s32.totalorder %s76, %s78
      %p82 = scmp.eq.s32.totalorder %s21, 0
      %p83 = por %p81, %p82
      %p84 = scmp.ne.s32.totalorder %s76, %s78
      %p85 = scmp.eq.s32.totalorder %s26, 1
      %p86 = por %p84, %p85
      %p87 = scmp.ne.s32.totalorder %s78, %s79
      %p88 = scmp.eq.s32.totalorder %s26, 0
      %p89 = por %p87, %p88
      %p90 = scmp.ne.s32.totalorder %s78, %s79
      %p91 = scmp.eq.s32.totalorder %s27, 1
      %p92 = por %p90, %p91
      %p94 = scmp.ne.s32.totalorder %s79, %s93
      %p95 = scmp.eq.s32.totalorder %s27, 0
      %p96 = por %p94, %p95
      %s98 = sadd.s32 %s97, 1
      %p101 = scmp.eq.s32.totalorder %s21, 1
      %p102 = scmp.ne.s32.totalorder %s97, %s99
      %p103 = scmp.eq.s32.totalorder %s21, 0
      %p104 = por %p102, %p103
      %p105 = scmp.ne.s32.totalorder %s97, %s99
      %p106 = scmp.eq.s32.totalorder %s26, 1
      %p107 = por %p105, %p106
      %p108 = scmp.ne.s32.totalorder %s99, %s100
      %p109 = scmp.eq.s32.totalorder %s26, 0
      %p110 = por %p108, %p109
      %p111 = scmp.ne.s32.totalorder %s99, %s100
      %p112 = scmp.eq.s32.totalorder %s27, 1
      %p113 = por %p111, %p112
      %p115 = scmp.ne.s32.totalorder %s100, %s114
      %p116 = scmp.eq.s32.totalorder %s27, 0
      %p117 = por %p115, %p116
      %s119 = sadd.s32 %s118, 1
      %p122 = scmp.eq.s32.totalorder %s21, 1
      %p123 = scmp.ne.s32.totalorder %s118, %s120
      %p124 = scmp.eq.s32.totalorder %s21, 0
      %p125 = por %p123, %p124
      %p126 = scmp.ne.s32.totalorder %s118, %s120
      %p127 = scmp.eq.s32.totalorder %s26, 1
      %p128 = por %p126, %p127
      %p129 = scmp.ne.s32.totalorder %s120, %s121
      %p130 = scmp.eq.s32.totalorder %s26, 0
      %p131 = por %p129, %p130
      %p132 = scmp.ne.s32.totalorder %s120, %s121
      %p133 = scmp.eq.s32.totalorder %s27, 1
      %p134 = por %p132, %p133
      %p136 = scmp.ne.s32.totalorder %s121, %s135
      %p137 = scmp.eq.s32.totalorder %s27, 0
      %p138 = por %p136, %p137
      %s140 = sadd.s32 %s139, 1
      %p143 = scmp.eq.s32.totalorder %s21, 1
      %p144 = scmp.ne.s32.totalorder %s139, %s141
      %p145 = scmp.eq.s32.totalorder %s21, 0
      %p146 = por %p144, %p145
      %p147 = scmp.ne.s32.totalorder %s139, %s141
      %p148 = scmp.eq.s32.totalorder %s26, 1
      %p149 = por %p147, %p148
      %p150 = scmp.ne.s32.totalorder %s141, %s142
      %p151 = scmp.eq.s32.totalorder %s26, 0
      %p152 = por %p150, %p151
      %p153 = scmp.ne.s32.totalorder %s141, %s142
      %p154 = scmp.eq.s32.totalorder %s27, 1
      %p155 = por %p153, %p154
      %p157 = scmp.ne.s32.totalorder %s142, %s156
      %p158 = scmp.eq.s32.totalorder %s27, 0
      %p159 = por %p157, %p158
      %s161 = sadd.s32 %s160, 1
      %p164 = scmp.eq.s32.totalorder %s21, 1
      %p165 = scmp.ne.s32.totalorder %s160, %s162
      %p166 = scmp.eq.s32.totalorder %s21, 0
      %p167 = por %p165, %p166
      %p168 = scmp.ne.s32.totalorder %s160, %s162
      %p169 = scmp.eq.s32.totalorder %s26, 1
      %p170 = por %p168, %p169
      %p171 = scmp.ne.s32.totalorder %s162, %s163
      %p172 = scmp.eq.s32.totalorder %s26, 0
      %p173 = por %p171, %p172
      %p174 = scmp.ne.s32.totalorder %s162, %s163
      %p175 = scmp.eq.s32.totalorder %s27, 1
      %p176 = por %p174, %p175
      %p178 = scmp.ne.s32.totalorder %s163, %s177
      %p179 = scmp.eq.s32.totalorder %s27, 0
      %p180 = por %p178, %p179
      %s181 = ssub.s32 %s21, %s28
      %p182 = scmp.eq.s32.totalorder %s181, 0
      %s184 = sadd.s32 %s183, 1
      %s185 = scalar_select %p182, %s183, %s184
      %p188 = pneg %p182
      %p189 = scmp.eq.s32.totalorder %s21, 1
      %p190 = por %p188, %p189
      %p191 = scmp.ne.s32.totalorder %s183, %s186
      %p192 = scmp.eq.s32.totalorder %s21, 0
      %p193 = por %p191, %p192
      %p194 = scmp.ne.s32.totalorder %s183, %s186
      %p195 = scmp.eq.s32.totalorder %s26, 1
      %p196 = por %p194, %p195
      %p197 = scmp.ne.s32.totalorder %s186, %s187
      %p198 = scmp.eq.s32.totalorder %s26, 0
      %p199 = por %p197, %p198
      %p200 = scmp.ne.s32.totalorder %s186, %s187
      %p201 = scmp.eq.s32.totalorder %s27, 1
      %p202 = por %p200, %p201
      %p204 = scmp.ne.s32.totalorder %s187, %s203
      %p205 = scmp.eq.s32.totalorder %s27, 0
      %p206 = por %p204, %p205
      %p207 = scmp.le.s32.totalorder 1, %s21
      %p208 = scmp.lt.s32.totalorder %s21, 3
      %p209 = pnand %p207, %p208
      %p210 = pneg %p209
      // Predicated region
      $region9: #{tpu_custom_call.1} parent=5 // pred_check
        _
      $region10: #{tpu_custom_call.1} parent=5 // pred_check_branch
        %212 = sbr.rel (%p209) target = $region12
      $region11: #{tpu_custom_call.1} parent=5 // pred_region
        %s213 = ssub.s32 %s21, 1
        // Predicated region
        $region13: #{tpu_custom_call.1} parent=11 // pred_check
          %p214 = pneg %p68
        $region14: #{tpu_custom_call.1} parent=11 // pred_check_branch
          %216 = sbr.rel (%p214) target = $region16
        $region15: #{tpu_custom_call.1} parent=11 // pred_region
          %s218 = ssub.s32 1024, 1024
          %219 = vsyncadd [#allocation7], %s218
          %s220 = sshll.u32 [#allocation6], 4
          %s221 = int_to_ptr.vmem [resolvable:$true] %s220
          %226 = dma.hbm_to_vmem [thread:$0]  %s1, 1024, %s221, [#allocation7], 64, 64, 4
        $region16: #{tpu_custom_call.1} parent=11 // pred_fallthru
          _
        // Predicated region
        $region17: #{tpu_custom_call.1} parent=11 // pred_check
          %p227 = pneg %p89
        $region18: #{tpu_custom_call.1} parent=11 // pred_check_branch
          %229 = sbr.rel (%p227) target = $region20
        $region19: #{tpu_custom_call.1} parent=11 // pred_region
          _
        $region20: #{tpu_custom_call.1} parent=11 // pred_fallthru
          _
        // Predicated region
        $region21: #{tpu_custom_call.1} parent=11 // pred_check
          %p230 = pneg %p110
        $region22: #{tpu_custom_call.1} parent=11 // pred_check_branch
          %232 = sbr.rel (%p230) target = $region24
        $region23: #{tpu_custom_call.1} parent=11 // pred_region
          %s234 = ssub.s32 9216, 9216
          %235 = vsyncadd [#allocation7], %s234
          %s236 = sshll.u32 [#allocation8], 4
          %s237 = int_to_ptr.vmem [resolvable:$true] %s236
          %242 = dma.hbm_to_vmem [thread:$0]  %s3, 9216, %s237, [#allocation7], 64, 64, 4
        $region24: #{tpu_custom_call.1} parent=11 // pred_fallthru
          _
        // Predicated region
        $region25: #{tpu_custom_call.1} parent=11 // pred_check
          %p243 = pneg %p131
        $region26: #{tpu_custom_call.1} parent=11 // pred_check_branch
          %245 = sbr.rel (%p243) target = $region28
        $region27: #{tpu_custom_call.1} parent=11 // pred_region
          _
        $region28: #{tpu_custom_call.1} parent=11 // pred_fallthru
          _
        // Predicated region
        $region29: #{tpu_custom_call.1} parent=11 // pred_check
          %p246 = pneg %p152
        $region30: #{tpu_custom_call.1} parent=11 // pred_check_branch
          %248 = sbr.rel (%p246) target = $region32
        $region31: #{tpu_custom_call.1} parent=11 // pred_region
          %s250 = ssub.s32 1024, 1024
          %251 = vsyncadd [#allocation10], %s250
          %s252 = sshll.u32 [#allocation9], 4
          %s253 = int_to_ptr.vmem [resolvable:$true] %s252
          %258 = dma.hbm_to_vmem [thread:$0]  %s5, 1024, %s253, [#allocation10], 64, 64, 4
        $region32: #{tpu_custom_call.1} parent=11 // pred_fallthru
          _
        // Predicated region
        $region33: #{tpu_custom_call.1} parent=11 // pred_check
          %p259 = pneg %p173
        $region34: #{tpu_custom_call.1} parent=11 // pred_check_branch
          %261 = sbr.rel (%p259) target = $region36
        $region35: #{tpu_custom_call.1} parent=11 // pred_region
          _
        $region36: #{tpu_custom_call.1} parent=11 // pred_fallthru
          _
      $region12: #{tpu_custom_call.1} parent=5 // pred_fallthru
        _
      %p262 = scmp.lt.s32.totalorder %s21, 2
      // Predicated region
      $region37: #{tpu_custom_call.1} parent=5 // pred_check
        %p263 = pneg %p262
      $region38: #{tpu_custom_call.1} parent=5 // pred_check_branch
        %265 = sbr.rel (%p263) target = $region40
      $region39: #{tpu_custom_call.1} parent=5 // pred_region
        // Predicated region
        $region41: #{tpu_custom_call.1} parent=39 // pred_check
          %p266 = pneg %p41
        $region42: #{tpu_custom_call.1} parent=39 // pred_check_branch
          %268 = sbr.rel (%p266) target = $region44
        $region43: #{tpu_custom_call.1} parent=39 // pred_region
          %s269 = sand.u32 %s31, 1
          %s270 = scalar_lea.sflag [#allocation4], %s269
          %s271 = sand.u32 %s31, 1
          %s272 = smul.addr %s271, 32
          %s273 = scalar_lea.vmem [#allocation3], %s272
          %s275 = ssub.s32 512, 512
          %276 = vsyncadd %s270, %s275
          %s277 = smul.addr %s21, 8
          %s278 = smul.addr %s277, 64
          %s279 = scalar_lea.hbm %s0, %s278
          %s280 = sshll.u32 %s273, 4
          %s281 = int_to_ptr.vmem [resolvable:$true] %s280
          %286 = dma.hbm_to_vmem [thread:$0]  %s279, 512, %s281, %s270, 64, 64, 4
        $region44: #{tpu_custom_call.1} parent=39 // pred_fallthru
          _
      $region40: #{tpu_custom_call.1} parent=5 // pred_fallthru
        _
      %p287 = scmp.le.s32.totalorder 1, %s21
      %p288 = scmp.lt.s32.totalorder %s21, 3
      %p289 = pnand %p287, %p288
      %p290 = pneg %p289
      // Predicated region
      $region45: #{tpu_custom_call.1} parent=5 // pred_check
        _
      $region46: #{tpu_custom_call.1} parent=5 // pred_check_branch
        %292 = sbr.rel (%p289) target = $region48
      $region47: #{tpu_custom_call.1} parent=5 // pred_region
        %s293 = ssub.s32 %s21, 1
        %s294 = sand.u32 %s34, 1
        %s295 = scalar_lea.sflag [#allocation4], %s294
        %s296 = sand.u32 %s34, 1
        %s297 = smul.addr %s296, 32
        %s298 = scalar_lea.vmem [#allocation3], %s297
        // Predicated region
        $region49: #{tpu_custom_call.1} parent=47 // pred_check
          %p299 = pneg %p47
        $region50: #{tpu_custom_call.1} parent=47 // pred_check_branch
          %301 = sbr.rel (%p299) target = $region52
        $region51: #{tpu_custom_call.1} parent=47 // pred_region
          %302 = dma.done %s295, 512
        $region52: #{tpu_custom_call.1} parent=47 // pred_fallthru
          _
        // Predicated region
        $region53: #{tpu_custom_call.1} parent=47 // pred_check
          %p303 = pneg %p68
        $region54: #{tpu_custom_call.1} parent=47 // pred_check_branch
          %305 = sbr.rel (%p303) target = $region56
        $region55: #{tpu_custom_call.1} parent=47 // pred_region
          %306 = dma.done [#allocation7], 1024
        $region56: #{tpu_custom_call.1} parent=47 // pred_fallthru
          _
        // Predicated region
        $region57: #{tpu_custom_call.1} parent=47 // pred_check
          %p307 = pneg %p110
        $region58: #{tpu_custom_call.1} parent=47 // pred_check_branch
          %309 = sbr.rel (%p307) target = $region60
        $region59: #{tpu_custom_call.1} parent=47 // pred_region
          %310 = dma.done [#allocation7], 9216
        $region60: #{tpu_custom_call.1} parent=47 // pred_fallthru
          _
        // Predicated region
        $region61: #{tpu_custom_call.1} parent=47 // pred_check
          %p311 = pneg %p152
        $region62: #{tpu_custom_call.1} parent=47 // pred_check_branch
          %313 = sbr.rel (%p311) target = $region64
        $region63: #{tpu_custom_call.1} parent=47 // pred_region
          %314 = dma.done [#allocation10], 1024
        $region64: #{tpu_custom_call.1} parent=47 // pred_fallthru
          _
        %s315 = sand.u32 %s34, 1
        %s316 = scalar_lea.sflag [#allocation4], %s315
        %s317 = sand.u32 %s34, 1
        %s318 = smul.addr %s317, 32
        %s319 = scalar_lea.vmem [#allocation3], %s318
        %p320 = pneg %p47
        %p321 = pneg %p44
        %p322 = pneg %p68
        %p323 = pneg %p65
        %p324 = pneg %p89
        %p325 = pneg %p86
        %p326 = pneg %p110
        %p327 = pneg %p107
        %p328 = pneg %p131
        %p329 = pneg %p128
        %p330 = pneg %p152
        %p331 = pneg %p149
        %p332 = pneg %p173
        %p333 = pneg %p170
        %p334 = pneg %p199
        %p335 = pneg %p196
        %s336 = sand.u32 %s186, 1
        %s337 = scalar_lea.sflag [#allocation5], %s336
        %s338 = sand.u32 %s186, 1
        %s339 = smul.addr %s338, 32
        %s340 = scalar_lea.vmem [#allocation11], %s339
        %342 = vst [vmem:[#allocation2] sm:$0xf] 0
        %343 = vst [vmem:[#allocation2 + $0x4] sm:$0x1] 0
        %s344 = scalar_lea.vmem [#allocation2], 72
        %345 = vst [vmem:[%s344] sm:$0xf] 0
        %346 = vst [vmem:[%s344 + $0x4] sm:$0x1] 0
        %vm347 = vcmask 1040384
        %vm348 = vsmask.f32 256
        %vm349 = vmand %vm347, %vm348
        %v350 = vld [vmem:[#allocation2] sm:$0x1]
        %v351 = vsel %vm349, 0, %v350
        %352 = vst [vmem:[#allocation2] sm:$0x1] %v351
        %v353 = vld [vmem:[#allocation2 + $0x8] sm:$0x1]
        %v354 = vsel %vm349, 0, %v353
        %355 = vst [vmem:[#allocation2 + $0x8] sm:$0x1] %v354
        %v356 = vld [vmem:[#allocation2 + $0x10] sm:$0x1]
        %v357 = vsel %vm349, 0, %v356
        %358 = vst [vmem:[#allocation2 + $0x10] sm:$0x1] %v357
        %v359 = vld [vmem:[#allocation2 + $0x18] sm:$0x1]
        %v360 = vsel %vm349, 0, %v359
        %361 = vst [vmem:[#allocation2 + $0x18] sm:$0x1] %v360
        %v362 = vld [vmem:[#allocation2 + $0x20] sm:$0x1]
        %v363 = vsel %vm349, 0, %v362
        %364 = vst [vmem:[#allocation2 + $0x20] sm:$0x1] %v363
        %v365 = vld [vmem:[#allocation2 + $0x28] sm:$0x1]
        %v366 = vsel %vm349, 0, %v365
        %367 = vst [vmem:[#allocation2 + $0x28] sm:$0x1] %v366
        %v368 = vld [vmem:[#allocation2 + $0x30] sm:$0x1]
        %v369 = vsel %vm349, 0, %v368
        %370 = vst [vmem:[#allocation2 + $0x30] sm:$0x1] %v369
        %v371 = vld [vmem:[#allocation2 + $0x38] sm:$0x1]
        %v372 = vsel %vm349, 0, %v371
        %373 = vst [vmem:[#allocation2 + $0x38] sm:$0x1] %v372
        %v374 = vld [vmem:[#allocation2 + $0x40] sm:$0x1]
        %v375 = vsel %vm349, 0, %v374
        %376 = vst [vmem:[#allocation2 + $0x40] sm:$0x1] %v375
        %v377 = vld [vmem:[#allocation2 + $0x48] sm:$0x1]
        %v378 = vsel %vm349, 0, %v377
        %379 = vst [vmem:[#allocation2 + $0x48] sm:$0x1] %v378
        %vm380 = vsmask.f32 7938
        %vm381 = vmand %vm347, %vm380
        %v382 = vld [vmem:[#allocation2 + $0x4] sm:$0x1]
        %v383 = vsel %vm381, 0, %v382
        %384 = vst [vmem:[#allocation2 + $0x4] sm:$0x1] %v383
        %v385 = vld [vmem:[#allocation2 + $0xc] sm:$0x1]
        %v386 = vsel %vm381, 0, %v385
        %387 = vst [vmem:[#allocation2 + $0xc] sm:$0x1] %v386
        %v388 = vld [vmem:[#allocation2 + $0x14] sm:$0x1]
        %v389 = vsel %vm381, 0, %v388
        %390 = vst [vmem:[#allocation2 + $0x14] sm:$0x1] %v389
        %v391 = vld [vmem:[#allocation2 + $0x1c] sm:$0x1]
        %v392 = vsel %vm381, 0, %v391
        %393 = vst [vmem:[#allocation2 + $0x1c] sm:$0x1] %v392
        %v394 = vld [vmem:[#allocation2 + $0x24] sm:$0x1]
        %v395 = vsel %vm381, 0, %v394
        %396 = vst [vmem:[#allocation2 + $0x24] sm:$0x1] %v395
        %v397 = vld [vmem:[#allocation2 + $0x2c] sm:$0x1]
        %v398 = vsel %vm381, 0, %v397
        %399 = vst [vmem:[#allocation2 + $0x2c] sm:$0x1] %v398
        %v400 = vld [vmem:[#allocation2 + $0x34] sm:$0x1]
        %v401 = vsel %vm381, 0, %v400
        %402 = vst [vmem:[#allocation2 + $0x34] sm:$0x1] %v401
        %v403 = vld [vmem:[#allocation2 + $0x3c] sm:$0x1]
        %v404 = vsel %vm381, 0, %v403
        %405 = vst [vmem:[#allocation2 + $0x3c] sm:$0x1] %v404
        %v406 = vld [vmem:[#allocation2 + $0x44] sm:$0x1]
        %v407 = vsel %vm381, 0, %v406
        %408 = vst [vmem:[#allocation2 + $0x44] sm:$0x1] %v407
        %v409 = vld [vmem:[#allocation2 + $0x4c] sm:$0x1]
        %v410 = vsel %vm381, 0, %v409
        %411 = vst [vmem:[#allocation2 + $0x4c] sm:$0x1] %v410
        %v412 = vld [vmem:[%s298] sm:$0xf]
        %v413 = vld [vmem:[%s298 + $0x4] sm:$0xf]
        %v414 = vld [vmem:[%s298 + $0x8] sm:$0xf]
        %v415 = vld [vmem:[%s298 + $0xc] sm:$0xf]
        %v416 = vld [vmem:[%s298 + $0x10] sm:$0xf]
        %v417 = vld [vmem:[%s298 + $0x14] sm:$0xf]
        %v418 = vld [vmem:[%s298 + $0x18] sm:$0xf]
        %v419 = vld [vmem:[%s298 + $0x1c] sm:$0xf]
        %v420 = vld [vmem:[#allocation6] sm:$0xf]
        %v421 = vld [vmem:[#allocation6 + $0x4] sm:$0xf]
        %v422 = vld [vmem:[#allocation6 + $0x8] sm:$0xf]
        %v423 = vld [vmem:[#allocation6 + $0xc] sm:$0xf]
        %v424 = vld [vmem:[#allocation6 + $0x10] sm:$0xf]
        %v425 = vld [vmem:[#allocation6 + $0x14] sm:$0xf]
        %v426 = vld [vmem:[#allocation6 + $0x18] sm:$0xf]
        %v427 = vld [vmem:[#allocation6 + $0x1c] sm:$0xf]
        %v428 = vld [vmem:[#allocation6 + $0x20] sm:$0xf]
        %v429 = vld [vmem:[#allocation6 + $0x24] sm:$0xf]
        %v430 = vld [vmem:[#allocation6 + $0x28] sm:$0xf]
        %v431 = vld [vmem:[#allocation6 + $0x2c] sm:$0xf]
        %v432 = vld [vmem:[#allocation6 + $0x30] sm:$0xf]
        %v433 = vld [vmem:[#allocation6 + $0x34] sm:$0xf]
        %v434 = vld [vmem:[#allocation6 + $0x38] sm:$0xf]
        %v435 = vld [vmem:[#allocation6 + $0x3c] sm:$0xf]
        %v436 = vld [vmem:[%s2] sm:$0x1]
        %v438 = vlaneseq
        %v439 = vshrl.u32 %v438, 7
        %v440 = vsub.s32 0, %v439
        %v441 = vrot.slane %v436, %v440
        %v451 = vunpack.c.l.b16 %v412
        %v452 = vunpack.c.l.b16 %v413
        %v453 = vunpack.c.l.b16 %v414
        %v454 = vunpack.c.l.b16 %v415
        %v455 = vunpack.c.l.b16 %v416
        %v456 = vunpack.c.l.b16 %v417
        %v457 = vunpack.c.l.b16 %v418
        %v458 = vunpack.c.l.b16 %v419
        %v459 = vpack.c.b16 %v452, %v451
        %v460 = vpack.c.b16 %v454, %v453
        %v461 = vpack.c.b16 %v456, %v455
        %v462 = vpack.c.b16 %v458, %v457
        %v483 = vunpack.c.l.b16 %v420
        %v484 = vunpack.c.l.b16 %v421
        %v485 = vunpack.c.l.b16 %v422
        %v486 = vunpack.c.l.b16 %v423
        %v487 = vunpack.c.l.b16 %v424
        %v488 = vunpack.c.l.b16 %v425
        %v489 = vunpack.c.l.b16 %v426
        %v490 = vunpack.c.l.b16 %v427
        %v491 = vunpack.c.l.b16 %v428
        %v492 = vunpack.c.l.b16 %v429
        %v493 = vunpack.c.l.b16 %v430
        %v494 = vunpack.c.l.b16 %v431
        %v495 = vunpack.c.l.b16 %v432
        %v496 = vunpack.c.l.b16 %v433
        %v497 = vunpack.c.l.b16 %v434
        %v498 = vunpack.c.l.b16 %v435
        %v499 = vpack.c.b16 %v484, %v483
        %v500 = vpack.c.b16 %v486, %v485
        %v501 = vpack.c.b16 %v488, %v487
        %v502 = vpack.c.b16 %v490, %v489
        %v503 = vpack.c.b16 %v492, %v491
        %v504 = vpack.c.b16 %v494, %v493
        %v505 = vpack.c.b16 %v496, %v495
        %v506 = vpack.c.b16 %v498, %v497
        %515 = vmatprep.subr.bf16.mxu0 0
        %516 = vmatpush1.bf16.msra.mxu0 %v499
        %517 = vmatprep.subr.bf16.mxu0 0
        %518 = vmatpush1.bf16.msra.mxu0 %v500
        %519 = vmatprep.subr.bf16.mxu0 0
        %520 = vmatpush1.bf16.msra.mxu0 %v501
        %521 = vmatprep.subr.bf16.mxu0 0
        %522 = vmatpush1.bf16.msra.mxu0 %v502
        %523 = vmatprep.subr.bf16.mxu0 0
        %524 = vmatpush1.bf16.msra.mxu0 %v503
        %525 = vmatprep.subr.bf16.mxu0 0
        %526 = vmatpush1.bf16.msra.mxu0 %v504
        %527 = vmatprep.subr.bf16.mxu0 0
        %528 = vmatpush1.bf16.msra.mxu0 %v505
        %529 = vmatprep.subr.bf16.mxu0 0
        %530 = vmatpush1.bf16.msra.mxu0 %v506
        %531 = vmatprep.subr.bf16.mxu0 0
        %532 = vmatpush1.bf16.msra.mxu0 0
        %533 = vmatprep.subr.bf16.mxu0 0
        %534 = vmatpush1.bf16.msra.mxu0 0
        %535 = vmatprep.subr.bf16.mxu0 0
        %536 = vmatpush1.bf16.msra.mxu0 0
        %537 = vmatprep.subr.bf16.mxu0 0
        %538 = vmatpush1.bf16.msra.mxu0 0
        %539 = vmatprep.subr.bf16.mxu0 0
        %540 = vmatpush1.bf16.msra.mxu0 0
        %541 = vmatprep.subr.bf16.mxu0 0
        %542 = vmatpush1.bf16.msra.mxu0 0
        %543 = vmatprep.subr.bf16.mxu0 0
        %544 = vmatpush1.bf16.msra.mxu0 0
        %545 = vmatprep.subr.bf16.mxu0 0
        %546 = vmatpush1.bf16.msra.mxu0 0
        %547 = vmatprep.mubr.bf16.mxu0 0
        %548 = vmatmul.mubr.bf16.gmra.mrb[0].mxu0 %v459
        %v549 = vpop.f32.mrb[0].mxu0
        %v550 = vadd.f32 %v441, %v549
        %v551 = vpop.f32.mrb[0].mxu0
        %v552 = vpop.f32.mrb[0].mxu0
        %v553 = vadd.f32 %v441, %v552
        %v554 = vpop.f32.mrb[0].mxu0
        %555 = vmatprep.mubr.bf16.mxu0 0
        %556 = vmatmul.mubr.bf16.gmra.mrb[0].mxu0 %v460
        %v557 = vpop.f32.mrb[0].mxu0
        %v558 = vadd.f32 %v441, %v557
        %v559 = vpop.f32.mrb[0].mxu0
        %v560 = vpop.f32.mrb[0].mxu0
        %v561 = vadd.f32 %v441, %v560
        %v562 = vpop.f32.mrb[0].mxu0
        %563 = vmatprep.mubr.bf16.mxu0 0
        %564 = vmatmul.mubr.bf16.gmra.mrb[0].mxu0 %v461
        %v565 = vpop.f32.mrb[0].mxu0
        %v566 = vadd.f32 %v441, %v565
        %v567 = vpop.f32.mrb[0].mxu0
        %v568 = vpop.f32.mrb[0].mxu0
        %v569 = vadd.f32 %v441, %v568
        %v570 = vpop.f32.mrb[0].mxu0
        %571 = vmatprep.mubr.bf16.mxu0 0
        %572 = vmatmul.mubr.bf16.gmra.mrb[0].mxu0 %v462
        %v573 = vpop.f32.mrb[0].mxu0
        %v574 = vadd.f32 %v441, %v573
        %v575 = vpop.f32.mrb[0].mxu0
        %v576 = vpop.f32.mrb[0].mxu0
        %v577 = vadd.f32 %v441, %v576
        %v578 = vpop.f32.mrb[0].mxu0
        %579 = vdwg.mxu0
        %v580 = vmax.f32 %v550, 0.0
        %v581 = vmax.f32 %v553, 0.0
        %v582 = vmax.f32 %v558, 0.0
        %v583 = vmax.f32 %v561, 0.0
        %v584 = vmax.f32 %v566, 0.0
        %v585 = vmax.f32 %v569, 0.0
        %v586 = vmax.f32 %v574, 0.0
        %v587 = vmax.f32 %v577, 0.0
        %v588 = vpack.c.bf16 %v580, %v580
        %v589 = vpack.c.bf16 %v581, %v581
        %v590 = vpack.c.bf16 %v582, %v582
        %v591 = vpack.c.bf16 %v583, %v583
        %v592 = vpack.c.bf16 %v584, %v584
        %v593 = vpack.c.bf16 %v585, %v585
        %v594 = vpack.c.bf16 %v586, %v586
        %v595 = vpack.c.bf16 %v587, %v587
        %v604 = vunpack.c.l.b16 %v588
        %v605 = vunpack.c.l.b16 %v589
        %v606 = vunpack.c.l.b16 %v590
        %v607 = vunpack.c.l.b16 %v591
        %v608 = vunpack.c.l.b16 %v592
        %v609 = vunpack.c.l.b16 %v593
        %v610 = vunpack.c.l.b16 %v594
        %v611 = vunpack.c.l.b16 %v595
        %v612 = vpack.c.b16 %v604, %v604
        %v613 = vpack.c.b16 %v605, %v605
        %v614 = vpack.c.b16 %v606, %v606
        %v615 = vpack.c.b16 %v607, %v607
        %v616 = vpack.c.b16 %v608, %v608
        %v617 = vpack.c.b16 %v609, %v609
        %v618 = vpack.c.b16 %v610, %v610
        %v619 = vpack.c.b16 %v611, %v611
        %v621 = vshrl.u32 %v612, 16
        %v623 = vrot.slane %v621, 7
        %v624 = vshll.u32 %v612, 16
        %v626 = vor.u32 %v623, %v624
        %v627 = vrot.slane %v623, 4
        %v629 = vshrl.u32 %v613, 16
        %v631 = vrot.slane %v629, 7
        %v632 = vshll.u32 %v613, 16
        %v634 = vor.u32 %v631, %v632
        %v635 = vrot.slane %v631, 4
        %v637 = vshrl.u32 %v614, 16
        %v639 = vrot.slane %v637, 7
        %v640 = vshll.u32 %v614, 16
        %v642 = vor.u32 %v639, %v640
        %v643 = vrot.slane %v639, 4
        %v645 = vshrl.u32 %v615, 16
        %v647 = vrot.slane %v645, 7
        %v648 = vshll.u32 %v615, 16
        %v650 = vor.u32 %v647, %v648
        %v651 = vrot.slane %v647, 4
        %v653 = vshrl.u32 %v616, 16
        %v655 = vrot.slane %v653, 7
        %v656 = vshll.u32 %v616, 16
        %v658 = vor.u32 %v655, %v656
        %v659 = vrot.slane %v655, 4
        %v661 = vshrl.u32 %v617, 16
        %v663 = vrot.slane %v661, 7
        %v664 = vshll.u32 %v617, 16
        %v666 = vor.u32 %v663, %v664
        %v667 = vrot.slane %v663, 4
        %v669 = vshrl.u32 %v618, 16
        %v671 = vrot.slane %v669, 7
        %v672 = vshll.u32 %v618, 16
        %v674 = vor.u32 %v671, %v672
        %v675 = vrot.slane %v671, 4
        %v677 = vshrl.u32 %v619, 16
        %v679 = vrot.slane %v677, 7
        %v680 = vshll.u32 %v619, 16
        %v682 = vor.u32 %v679, %v680
        %v683 = vrot.slane %v679, 4
        %s700 = scalar_lea.vmem [#allocation2], 8
        %vm701 = vcmask 1043456
        %vm702 = vmand %vm701, %vm380
        %v703 = vld [vmem:[%s700] sm:$0xf]
        %v704 = vsel %vm702, %v626, %v703
        %705 = vst [vmem:[%s700] sm:$0xf] %v704
        %v706 = vld [vmem:[%s700 + $0x4] sm:$0x1]
        %v707 = vsel %vm349, %v627, %v706
        %708 = vst [vmem:[%s700 + $0x4] sm:$0x1] %v707
        %v709 = vld [vmem:[%s700 + $0x8] sm:$0xf]
        %v710 = vsel %vm702, %v634, %v709
        %711 = vst [vmem:[%s700 + $0x8] sm:$0xf] %v710
        %v712 = vld [vmem:[%s700 + $0xc] sm:$0x1]
        %v713 = vsel %vm349, %v635, %v712
        %714 = vst [vmem:[%s700 + $0xc] sm:$0x1] %v713
        %v715 = vld [vmem:[%s700 + $0x10] sm:$0xf]
        %v716 = vsel %vm702, %v642, %v715
        %717 = vst [vmem:[%s700 + $0x10] sm:$0xf] %v716
        %v718 = vld [vmem:[%s700 + $0x14] sm:$0x1]
        %v719 = vsel %vm349, %v643, %v718
        %720 = vst [vmem:[%s700 + $0x14] sm:$0x1] %v719
        %v721 = vld [vmem:[%s700 + $0x18] sm:$0xf]
        %v722 = vsel %vm702, %v650, %v721
        %723 = vst [vmem:[%s700 + $0x18] sm:$0xf] %v722
        %v724 = vld [vmem:[%s700 + $0x1c] sm:$0x1]
        %v725 = vsel %vm349, %v651, %v724
        %726 = vst [vmem:[%s700 + $0x1c] sm:$0x1] %v725
        %v727 = vld [vmem:[%s700 + $0x20] sm:$0xf]
        %v728 = vsel %vm702, %v658, %v727
        %729 = vst [vmem:[%s700 + $0x20] sm:$0xf] %v728
        %v730 = vld [vmem:[%s700 + $0x24] sm:$0x1]
        %v731 = vsel %vm349, %v659, %v730
        %732 = vst [vmem:[%s700 + $0x24] sm:$0x1] %v731
        %v733 = vld [vmem:[%s700 + $0x28] sm:$0xf]
        %v734 = vsel %vm702, %v666, %v733
        %735 = vst [vmem:[%s700 + $0x28] sm:$0xf] %v734
        %v736 = vld [vmem:[%s700 + $0x2c] sm:$0x1]
        %v737 = vsel %vm349, %v667, %v736
        %738 = vst [vmem:[%s700 + $0x2c] sm:$0x1] %v737
        %v739 = vld [vmem:[%s700 + $0x30] sm:$0xf]
        %v740 = vsel %vm702, %v674, %v739
        %741 = vst [vmem:[%s700 + $0x30] sm:$0xf] %v740
        %v742 = vld [vmem:[%s700 + $0x34] sm:$0x1]
        %v743 = vsel %vm349, %v675, %v742
        %744 = vst [vmem:[%s700 + $0x34] sm:$0x1] %v743
        %v745 = vld [vmem:[%s700 + $0x38] sm:$0xf]
        %v746 = vsel %vm702, %v682, %v745
        %747 = vst [vmem:[%s700 + $0x38] sm:$0xf] %v746
        %v748 = vld [vmem:[%s700 + $0x3c] sm:$0x1]
        %v749 = vsel %vm349, %v683, %v748
        %750 = vst [vmem:[%s700 + $0x3c] sm:$0x1] %v749
        %v751 = vld [vmem:[#allocation2] sm:$0xf]
        %v752 = vld [vmem:[#allocation2 + $0x8] sm:$0xf]
        %v753 = vld [vmem:[#allocation2 + $0x10] sm:$0xf]
        %v754 = vld [vmem:[#allocation2 + $0x18] sm:$0xf]
        %v755 = vld [vmem:[#allocation2 + $0x20] sm:$0xf]
        %v756 = vld [vmem:[#allocation2 + $0x28] sm:$0xf]
        %v757 = vld [vmem:[#allocation2 + $0x30] sm:$0xf]
        %v758 = vld [vmem:[#allocation2 + $0x38] sm:$0xf]
        %v759 = vld [vmem:[#allocation8] sm:$0xf]
        %v760 = vld [vmem:[#allocation8 + $0x4] sm:$0xf]
        %v761 = vld [vmem:[#allocation8 + $0x8] sm:$0xf]
        %v762 = vld [vmem:[#allocation8 + $0xc] sm:$0xf]
        %v763 = vld [vmem:[#allocation8 + $0x10] sm:$0xf]
        %v764 = vld [vmem:[#allocation8 + $0x14] sm:$0xf]
        %v765 = vld [vmem:[#allocation8 + $0x18] sm:$0xf]
        %v766 = vld [vmem:[#allocation8 + $0x1c] sm:$0xf]
        %v767 = vld [vmem:[#allocation8 + $0x20] sm:$0xf]
        %v768 = vld [vmem:[#allocation8 + $0x24] sm:$0xf]
        %v769 = vld [vmem:[#allocation8 + $0x28] sm:$0xf]
        %v770 = vld [vmem:[#allocation8 + $0x2c] sm:$0xf]
        %v771 = vld [vmem:[#allocation8 + $0x30] sm:$0xf]
        %v772 = vld [vmem:[#allocation8 + $0x34] sm:$0xf]
        %v773 = vld [vmem:[#allocation8 + $0x38] sm:$0xf]
        %v774 = vld [vmem:[#allocation8 + $0x3c] sm:$0xf]
        %v775 = vld [vmem:[#allocation2 + $0x4] sm:$0x1]
        %v776 = vld [vmem:[#allocation2 + $0xc] sm:$0x1]
        %v777 = vld [vmem:[#allocation2 + $0x14] sm:$0x1]
        %v778 = vld [vmem:[#allocation2 + $0x1c] sm:$0x1]
        %v779 = vld [vmem:[#allocation2 + $0x24] sm:$0x1]
        %v780 = vld [vmem:[#allocation2 + $0x2c] sm:$0x1]
        %v781 = vld [vmem:[#allocation2 + $0x34] sm:$0x1]
        %v782 = vld [vmem:[#allocation2 + $0x3c] sm:$0x1]
        %vm783 = vsmask.f32 3328
        %vm784 = vsmask.f32 7440
        %vm785 = vmor %vm783, %vm784
        %v787 = vshrl.u32 %v751, 16
        %v789 = vrot.slane %v787, 4
        %v790 = vshll.u32 %v751, 16
        %v792 = vrot.slane %v790, 5
        %v793 = vor.u32 %v789, %v792
        %v794 = vrot.slane %v793, 4
        %v796 = vshll.u32 %v775, 16
        %v798 = vrot.slane %v796, 5
        %v799 = vsel %vm785, %v794, %v798
        %v801 = vshrl.u32 %v752, 16
        %v803 = vrot.slane %v801, 4
        %v804 = vshll.u32 %v752, 16
        %v806 = vrot.slane %v804, 5
        %v807 = vor.u32 %v803, %v806
        %v808 = vrot.slane %v807, 4
        %v810 = vshll.u32 %v776, 16
        %v812 = vrot.slane %v810, 5
        %v813 = vsel %vm785, %v808, %v812
        %v815 = vshrl.u32 %v753, 16
        %v817 = vrot.slane %v815, 4
        %v818 = vshll.u32 %v753, 16
        %v820 = vrot.slane %v818, 5
        %v821 = vor.u32 %v817, %v820
        %v822 = vrot.slane %v821, 4
        %v824 = vshll.u32 %v777, 16
        %v826 = vrot.slane %v824, 5
        %v827 = vsel %vm785, %v822, %v826
        %v829 = vshrl.u32 %v754, 16
        %v831 = vrot.slane %v829, 4
        %v832 = vshll.u32 %v754, 16
        %v834 = vrot.slane %v832, 5
        %v835 = vor.u32 %v831, %v834
        %v836 = vrot.slane %v835, 4
        %v838 = vshll.u32 %v778, 16
        %v840 = vrot.slane %v838, 5
        %v841 = vsel %vm785, %v836, %v840
        %v843 = vshrl.u32 %v755, 16
        %v845 = vrot.slane %v843, 4
        %v846 = vshll.u32 %v755, 16
        %v848 = vrot.slane %v846, 5
        %v849 = vor.u32 %v845, %v848
        %v850 = vrot.slane %v849, 4
        %v852 = vshll.u32 %v779, 16
        %v854 = vrot.slane %v852, 5
        %v855 = vsel %vm785, %v850, %v854
        %v857 = vshrl.u32 %v756, 16
        %v859 = vrot.slane %v857, 4
        %v860 = vshll.u32 %v756, 16
        %v862 = vrot.slane %v860, 5
        %v863 = vor.u32 %v859, %v862
        %v864 = vrot.slane %v863, 4
        %v866 = vshll.u32 %v780, 16
        %v868 = vrot.slane %v866, 5
        %v869 = vsel %vm785, %v864, %v868
        %v871 = vshrl.u32 %v757, 16
        %v873 = vrot.slane %v871, 4
        %v874 = vshll.u32 %v757, 16
        %v876 = vrot.slane %v874, 5
        %v877 = vor.u32 %v873, %v876
        %v878 = vrot.slane %v877, 4
        %v880 = vshll.u32 %v781, 16
        %v882 = vrot.slane %v880, 5
        %v883 = vsel %vm785, %v878, %v882
        %v885 = vshrl.u32 %v758, 16
        %v887 = vrot.slane %v885, 4
        %v888 = vshll.u32 %v758, 16
        %v890 = vrot.slane %v888, 5
        %v891 = vor.u32 %v887, %v890
        %v892 = vrot.slane %v891, 4
        %v894 = vshll.u32 %v782, 16
        %v896 = vrot.slane %v894, 5
        %v897 = vsel %vm785, %v892, %v896
        %s898 = scalar_lea.vmem [#allocation8], 64
        %v899 = vld [vmem:[%s898] sm:$0xf]
        %v900 = vld [vmem:[%s898 + $0x4] sm:$0xf]
        %v901 = vld [vmem:[%s898 + $0x8] sm:$0xf]
        %v902 = vld [vmem:[%s898 + $0xc] sm:$0xf]
        %v903 = vld [vmem:[%s898 + $0x10] sm:$0xf]
        %v904 = vld [vmem:[%s898 + $0x14] sm:$0xf]
        %v905 = vld [vmem:[%s898 + $0x18] sm:$0xf]
        %v906 = vld [vmem:[%s898 + $0x1c] sm:$0xf]
        %v907 = vld [vmem:[%s898 + $0x20] sm:$0xf]
        %v908 = vld [vmem:[%s898 + $0x24] sm:$0xf]
        %v909 = vld [vmem:[%s898 + $0x28] sm:$0xf]
        %v910 = vld [vmem:[%s898 + $0x2c] sm:$0xf]
        %v911 = vld [vmem:[%s898 + $0x30] sm:$0xf]
        %v912 = vld [vmem:[%s898 + $0x34] sm:$0xf]
        %v913 = vld [vmem:[%s898 + $0x38] sm:$0xf]
        %v914 = vld [vmem:[%s898 + $0x3c] sm:$0xf]
        %v915 = vunpack.c.l.b16 %v799
        %v916 = vunpack.c.l.b16 %v813
        %v917 = vunpack.c.l.b16 %v827
        %v918 = vunpack.c.l.b16 %v841
        %v919 = vunpack.c.l.b16 %v855
        %v920 = vunpack.c.l.b16 %v869
        %v921 = vunpack.c.l.b16 %v883
        %v922 = vunpack.c.l.b16 %v897
        %v923 = vpack.c.b16 %v916, %v915
        %v924 = vpack.c.b16 %v918, %v917
        %v925 = vpack.c.b16 %v920, %v919
        %v926 = vpack.c.b16 %v922, %v921
        %v947 = vunpack.c.l.b16 %v899
        %v948 = vunpack.c.l.b16 %v900
        %v949 = vunpack.c.l.b16 %v901
        %v950 = vunpack.c.l.b16 %v902
        %v951 = vunpack.c.l.b16 %v903
        %v952 = vunpack.c.l.b16 %v904
        %v953 = vunpack.c.l.b16 %v905
        %v954 = vunpack.c.l.b16 %v906
        %v955 = vunpack.c.l.b16 %v907
        %v956 = vunpack.c.l.b16 %v908
        %v957 = vunpack.c.l.b16 %v909
        %v958 = vunpack.c.l.b16 %v910
        %v959 = vunpack.c.l.b16 %v911
        %v960 = vunpack.c.l.b16 %v912
        %v961 = vunpack.c.l.b16 %v913
        %v962 = vunpack.c.l.b16 %v914
        %v963 = vpack.c.b16 %v948, %v947
        %v964 = vpack.c.b16 %v950, %v949
        %v965 = vpack.c.b16 %v952, %v951
        %v966 = vpack.c.b16 %v954, %v953
        %v967 = vpack.c.b16 %v956, %v955
        %v968 = vpack.c.b16 %v958, %v957
        %v969 = vpack.c.b16 %v960, %v959
        %v970 = vpack.c.b16 %v962, %v961
        %979 = vmatprep.subr.bf16.mxu0 0
        %980 = vmatpush1.bf16.msra.mxu0 %v963
        %981 = vmatprep.subr.bf16.mxu0 0
        %982 = vmatpush1.bf16.msra.mxu0 %v964
        %983 = vmatprep.subr.bf16.mxu0 0
        %984 = vmatpush1.bf16.msra.mxu0 %v965
        %985 = vmatprep.subr.bf16.mxu0 0
        %986 = vmatpush1.bf16.msra.mxu0 %v966
        %987 = vmatprep.subr.bf16.mxu0 0
        %988 = vmatpush1.bf16.msra.mxu0 %v967
        %989 = vmatprep.subr.bf16.mxu0 0
        %990 = vmatpush1.bf16.msra.mxu0 %v968
        %991 = vmatprep.subr.bf16.mxu0 0
        %992 = vmatpush1.bf16.msra.mxu0 %v969
        %993 = vmatprep.subr.bf16.mxu0 0
        %994 = vmatpush1.bf16.msra.mxu0 %v970
        %995 = vmatprep.subr.bf16.mxu0 0
        %996 = vmatpush1.bf16.msra.mxu0 0
        %997 = vmatprep.subr.bf16.mxu0 0
        %998 = vmatpush1.bf16.msra.mxu0 0
        %999 = vmatprep.subr.bf16.mxu0 0
        %1000 = vmatpush1.bf16.msra.mxu0 0
        %1001 = vmatprep.subr.bf16.mxu0 0
        %1002 = vmatpush1.bf16.msra.mxu0 0
        %1003 = vmatprep.subr.bf16.mxu0 0
        %1004 = vmatpush1.bf16.msra.mxu0 0
        %1005 = vmatprep.subr.bf16.mxu0 0
        %1006 = vmatpush1.bf16.msra.mxu0 0
        %1007 = vmatprep.subr.bf16.mxu0 0
        %1008 = vmatpush1.bf16.msra.mxu0 0
        %1009 = vmatprep.subr.bf16.mxu0 0
        %1010 = vmatpush1.bf16.msra.mxu0 0
        %1011 = vmatprep.mubr.bf16.mxu0 0
        %1012 = vmatmul.mubr.bf16.gmra.mrb[0].mxu0 %v923
        %v1013 = vpop.f32.mrb[0].mxu0
        %v1014 = vadd.f32 0.0, %v1013
        %v1015 = vpop.f32.mrb[0].mxu0
        %v1016 = vpop.f32.mrb[0].mxu0
        %v1017 = vadd.f32 0.0, %v1016
        %v1018 = vpop.f32.mrb[0].mxu0
        %1019 = vmatprep.mubr.bf16.mxu0 0
        %1020 = vmatmul.mubr.bf16.gmra.mrb[0].mxu0 %v924
        %v1021 = vpop.f32.mrb[0].mxu0
        %v1022 = vadd.f32 0.0, %v1021
        %v1023 = vpop.f32.mrb[0].mxu0
        %v1024 = vpop.f32.mrb[0].mxu0
        %v1025 = vadd.f32 0.0, %v1024
        %v1026 = vpop.f32.mrb[0].mxu0
        %1027 = vmatprep.mubr.bf16.mxu0 0
        %1028 = vmatmul.mubr.bf16.gmra.mrb[0].mxu0 %v925
        %v1029 = vpop.f32.mrb[0].mxu0
        %v1030 = vadd.f32 0.0, %v1029
        %v1031 = vpop.f32.mrb[0].mxu0
        %v1032 = vpop.f32.mrb[0].mxu0
        %v1033 = vadd.f32 0.0, %v1032
        %v1034 = vpop.f32.mrb[0].mxu0
        %1035 = vmatprep.mubr.bf16.mxu0 0
        %1036 = vmatmul.mubr.bf16.gmra.mrb[0].mxu0 %v926
        %v1037 = vpop.f32.mrb[0].mxu0
        %v1038 = vadd.f32 0.0, %v1037
        %v1039 = vpop.f32.mrb[0].mxu0
        %v1040 = vpop.f32.mrb[0].mxu0
        %v1041 = vadd.f32 0.0, %v1040
        %v1042 = vpop.f32.mrb[0].mxu0
        %1043 = vdwg.mxu0
        %v1052 = vunpack.c.l.b16 %v751
        %v1053 = vunpack.c.l.b16 %v752
        %v1054 = vunpack.c.l.b16 %v753
        %v1055 = vunpack.c.l.b16 %v754
        %v1056 = vunpack.c.l.b16 %v755
        %v1057 = vunpack.c.l.b16 %v756
        %v1058 = vunpack.c.l.b16 %v757
        %v1059 = vunpack.c.l.b16 %v758
        %v1060 = vpack.c.b16 %v1053, %v1052
        %v1061 = vpack.c.b16 %v1055, %v1054
        %v1062 = vpack.c.b16 %v1057, %v1056
        %v1063 = vpack.c.b16 %v1059, %v1058
        %v1084 = vunpack.c.l.b16 %v759
        %v1085 = vunpack.c.l.b16 %v760
        %v1086 = vunpack.c.l.b16 %v761
        %v1087 = vunpack.c.l.b16 %v762
        %v1088 = vunpack.c.l.b16 %v763
        %v1089 = vunpack.c.l.b16 %v764
        %v1090 = vunpack.c.l.b16 %v765
        %v1091 = vunpack.c.l.b16 %v766
        %v1092 = vunpack.c.l.b16 %v767
        %v1093 = vunpack.c.l.b16 %v768
        %v1094 = vunpack.c.l.b16 %v769
        %v1095 = vunpack.c.l.b16 %v770
        %v1096 = vunpack.c.l.b16 %v771
        %v1097 = vunpack.c.l.b16 %v772
        %v1098 = vunpack.c.l.b16 %v773
        %v1099 = vunpack.c.l.b16 %v774
        %v1100 = vpack.c.b16 %v1085, %v1084
        %v1101 = vpack.c.b16 %v1087, %v1086
        %v1102 = vpack.c.b16 %v1089, %v1088
        %v1103 = vpack.c.b16 %v1091, %v1090
        %v1104 = vpack.c.b16 %v1093, %v1092
        %v1105 = vpack.c.b16 %v1095, %v1094
        %v1106 = vpack.c.b16 %v1097, %v1096
        %v1107 = vpack.c.b16 %v1099, %v1098
        %1116 = vmatprep.subr.bf16.mxu0 0
        %1117 = vmatpush1.bf16.msra.mxu0 %v1100
        %1118 = vmatprep.subr.bf16.mxu0 0
        %1119 = vmatpush1.bf16.msra.mxu0 %v1101
        %1120 = vmatprep.subr.bf16.mxu0 0
        %1121 = vmatpush1.bf16.msra.mxu0 %v1102
        %1122 = vmatprep.subr.bf16.mxu0 0
        %1123 = vmatpush1.bf16.msra.mxu0 %v1103
        %1124 = vmatprep.subr.bf16.mxu0 0
        %1125 = vmatpush1.bf16.msra.mxu0 %v1104
        %1126 = vmatprep.subr.bf16.mxu0 0
        %1127 = vmatpush1.bf16.msra.mxu0 %v1105
        %1128 = vmatprep.subr.bf16.mxu0 0
        %1129 = vmatpush1.bf16.msra.mxu0 %v1106
        %1130 = vmatprep.subr.bf16.mxu0 0
        %1131 = vmatpush1.bf16.msra.mxu0 %v1107
        %1132 = vmatprep.subr.bf16.mxu0 0
        %1133 = vmatpush1.bf16.msra.mxu0 0
        %1134 = vmatprep.subr.bf16.mxu0 0
        %1135 = vmatpush1.bf16.msra.mxu0 0
        %1136 = vmatprep.subr.bf16.mxu0 0
        %1137 = vmatpush1.bf16.msra.mxu0 0
        %1138 = vmatprep.subr.bf16.mxu0 0
        %1139 = vmatpush1.bf16.msra.mxu0 0
        %1140 = vmatprep.subr.bf16.mxu0 0
        %1141 = vmatpush1.bf16.msra.mxu0 0
        %1142 = vmatprep.subr.bf16.mxu0 0
        %1143 = vmatpush1.bf16.msra.mxu0 0
        %1144 = vmatprep.subr.bf16.mxu0 0
        %1145 = vmatpush1.bf16.msra.mxu0 0
        %1146 = vmatprep.subr.bf16.mxu0 0
        %1147 = vmatpush1.bf16.msra.mxu0 0
        %1148 = vmatprep.mubr.bf16.mxu0 0
        %1149 = vmatmul.mubr.bf16.gmra.mrb[0].mxu0 %v1060
        %v1150 = vpop.f32.mrb[0].mxu0
        %v1151 = vadd.f32 %v1014, %v1150
        %v1152 = vpop.f32.mrb[0].mxu0
        %v1153 = vpop.f32.mrb[0].mxu0
        %v1154 = vadd.f32 %v1017, %v1153
        %v1155 = vpop.f32.mrb[0].mxu0
        %1156 = vmatprep.mubr.bf16.mxu0 0
        %1157 = vmatmul.mubr.bf16.gmra.mrb[0].mxu0 %v1061
        %v1158 = vpop.f32.mrb[0].mxu0
        %v1159 = vadd.f32 %v1022, %v1158
        %v1160 = vpop.f32.mrb[0].mxu0
        %v1161 = vpop.f32.mrb[0].mxu0
        %v1162 = vadd.f32 %v1025, %v1161
        %v1163 = vpop.f32.mrb[0].mxu0
        %1164 = vmatprep.mubr.bf16.mxu0 0
        %1165 = vmatmul.mubr.bf16.gmra.mrb[0].mxu0 %v1062
        %v1166 = vpop.f32.mrb[0].mxu0
        %v1167 = vadd.f32 %v1030, %v1166
        %v1168 = vpop.f32.mrb[0].mxu0
        %v1169 = vpop.f32.mrb[0].mxu0
        %v1170 = vadd.f32 %v1033, %v1169
        %v1171 = vpop.f32.mrb[0].mxu0
        %1172 = vmatprep.mubr.bf16.mxu0 0
        %1173 = vmatmul.mubr.bf16.gmra.mrb[0].mxu0 %v1063
        %v1174 = vpop.f32.mrb[0].mxu0
        %v1175 = vadd.f32 %v1038, %v1174
        %v1176 = vpop.f32.mrb[0].mxu0
        %v1177 = vpop.f32.mrb[0].mxu0
        %v1178 = vadd.f32 %v1041, %v1177
        %v1179 = vpop.f32.mrb[0].mxu0
        %1180 = vdwg.mxu0
        %v1181 = vld [vmem:[#allocation2] sm:$0xe]
        %v1182 = vld [vmem:[#allocation2 + $0x8] sm:$0xe]
        %v1183 = vld [vmem:[#allocation2 + $0x10] sm:$0xe]
        %v1184 = vld [vmem:[#allocation2 + $0x18] sm:$0xe]
        %v1185 = vld [vmem:[#allocation2 + $0x20] sm:$0xe]
        %v1186 = vld [vmem:[#allocation2 + $0x28] sm:$0xe]
        %v1187 = vld [vmem:[#allocation2 + $0x30] sm:$0xe]
        %v1188 = vld [vmem:[#allocation2 + $0x38] sm:$0xe]
        %vm1205 = vcmask 1042432
        %vm1206 = vcmask 1046532
        %vm1207 = vmor %vm1205, %vm1206
        %v1208 = vrot.slane %v1181, 5
        %v1209 = vrot.slane %v1208, 4
        %v1210 = vrot.slane %v775, 5
        %v1211 = vsel %vm1207, %v1209, %v1210
        %v1212 = vrot.slane %v1182, 5
        %v1213 = vrot.slane %v1212, 4
        %v1214 = vrot.slane %v776, 5
        %v1215 = vsel %vm1207, %v1213, %v1214
        %v1216 = vrot.slane %v1183, 5
        %v1217 = vrot.slane %v1216, 4
        %v1218 = vrot.slane %v777, 5
        %v1219 = vsel %vm1207, %v1217, %v1218
        %v1220 = vrot.slane %v1184, 5
        %v1221 = vrot.slane %v1220, 4
        %v1222 = vrot.slane %v778, 5
        %v1223 = vsel %vm1207, %v1221, %v1222
        %v1224 = vrot.slane %v1185, 5
        %v1225 = vrot.slane %v1224, 4
        %v1226 = vrot.slane %v779, 5
        %v1227 = vsel %vm1207, %v1225, %v1226
        %v1228 = vrot.slane %v1186, 5
        %v1229 = vrot.slane %v1228, 4
        %v1230 = vrot.slane %v780, 5
        %v1231 = vsel %vm1207, %v1229, %v1230
        %v1232 = vrot.slane %v1187, 5
        %v1233 = vrot.slane %v1232, 4
        %v1234 = vrot.slane %v781, 5
        %v1235 = vsel %vm1207, %v1233, %v1234
        %v1236 = vrot.slane %v1188, 5
        %v1237 = vrot.slane %v1236, 4
        %v1238 = vrot.slane %v782, 5
        %v1239 = vsel %vm1207, %v1237, %v1238
        %s1240 = scalar_lea.vmem [#allocation8], 128
        %v1241 = vld [vmem:[%s1240] sm:$0xf]
        %v1242 = vld [vmem:[%s1240 + $0x4] sm:$0xf]
        %v1243 = vld [vmem:[%s1240 + $0x8] sm:$0xf]
        %v1244 = vld [vmem:[%s1240 + $0xc] sm:$0xf]
        %v1245 = vld [vmem:[%s1240 + $0x10] sm:$0xf]
        %v1246 = vld [vmem:[%s1240 + $0x14] sm:$0xf]
        %v1247 = vld [vmem:[%s1240 + $0x18] sm:$0xf]
        %v1248 = vld [vmem:[%s1240 + $0x1c] sm:$0xf]
        %v1249 = vld [vmem:[%s1240 + $0x20] sm:$0xf]
        %v1250 = vld [vmem:[%s1240 + $0x24] sm:$0xf]
        %v1251 = vld [vmem:[%s1240 + $0x28] sm:$0xf]
        %v1252 = vld [vmem:[%s1240 + $0x2c] sm:$0xf]
        %v1253 = vld [vmem:[%s1240 + $0x30] sm:$0xf]
        %v1254 = vld [vmem:[%s1240 + $0x34] sm:$0xf]
        %v1255 = vld [vmem:[%s1240 + $0x38] sm:$0xf]
        %v1256 = vld [vmem:[%s1240 + $0x3c] sm:$0xf]
        %v1257 = vunpack.c.l.b16 %v1211
        %v1258 = vunpack.c.l.b16 %v1215
        %v1259 = vunpack.c.l.b16 %v1219
        %v1260 = vunpack.c.l.b16 %v1223
        %v1261 = vunpack.c.l.b16 %v1227
        %v1262 = vunpack.c.l.b16 %v1231
        %v1263 = vunpack.c.l.b16 %v1235
        %v1264 = vunpack.c.l.b16 %v1239
        %v1265 = vpack.c.b16 %v1258, %v1257
        %v1266 = vpack.c.b16 %v1260, %v1259
        %v1267 = vpack.c.b16 %v1262, %v1261
        %v1268 = vpack.c.b16 %v1264, %v1263
        %v1289 = vunpack.c.l.b16 %v1241
        %v1290 = vunpack.c.l.b16 %v1242
        %v1291 = vunpack.c.l.b16 %v1243
        %v1292 = vunpack.c.l.b16 %v1244
        %v1293 = vunpack.c.l.b16 %v1245
        %v1294 = vunpack.c.l.b16 %v1246
        %v1295 = vunpack.c.l.b16 %v1247
        %v1296 = vunpack.c.l.b16 %v1248
        %v1297 = vunpack.c.l.b16 %v1249
        %v1298 = vunpack.c.l.b16 %v1250
        %v1299 = vunpack.c.l.b16 %v1251
        %v1300 = vunpack.c.l.b16 %v1252
        %v1301 = vunpack.c.l.b16 %v1253
        %v1302 = vunpack.c.l.b16 %v1254
        %v1303 = vunpack.c.l.b16 %v1255
        %v1304 = vunpack.c.l.b16 %v1256
        %v1305 = vpack.c.b16 %v1290, %v1289
        %v1306 = vpack.c.b16 %v1292, %v1291
        %v1307 = vpack.c.b16 %v1294, %v1293
        %v1308 = vpack.c.b16 %v1296, %v1295
        %v1309 = vpack.c.b16 %v1298, %v1297
        %v1310 = vpack.c.b16 %v1300, %v1299
        %v1311 = vpack.c.b16 %v1302, %v1301
        %v1312 = vpack.c.b16 %v1304, %v1303
        %1321 = vmatprep.subr.bf16.mxu0 0
        %1322 = vmatpush1.bf16.msra.mxu0 %v1305
        %1323 = vmatprep.subr.bf16.mxu0 0
        %1324 = vmatpush1.bf16.msra.mxu0 %v1306
        %1325 = vmatprep.subr.bf16.mxu0 0
        %1326 = vmatpush1.bf16.msra.mxu0 %v1307
        %1327 = vmatprep.subr.bf16.mxu0 0
        %1328 = vmatpush1.bf16.msra.mxu0 %v1308
        %1329 = vmatprep.subr.bf16.mxu0 0
        %1330 = vmatpush1.bf16.msra.mxu0 %v1309
        %1331 = vmatprep.subr.bf16.mxu0 0
        %1332 = vmatpush1.bf16.msra.mxu0 %v1310
        %1333 = vmatprep.subr.bf16.mxu0 0
        %1334 = vmatpush1.bf16.msra.mxu0 %v1311
        %1335 = vmatprep.subr.bf16.mxu0 0
        %1336 = vmatpush1.bf16.msra.mxu0 %v1312
        %1337 = vmatprep.subr.bf16.mxu0 0
        %1338 = vmatpush1.bf16.msra.mxu0 0
        %1339 = vmatprep.subr.bf16.mxu0 0
        %1340 = vmatpush1.bf16.msra.mxu0 0
        %1341 = vmatprep.subr.bf16.mxu0 0
        %1342 = vmatpush1.bf16.msra.mxu0 0
        %1343 = vmatprep.subr.bf16.mxu0 0
        %1344 = vmatpush1.bf16.msra.mxu0 0
        %1345 = vmatprep.subr.bf16.mxu0 0
        %1346 = vmatpush1.bf16.msra.mxu0 0
        %1347 = vmatprep.subr.bf16.mxu0 0
        %1348 = vmatpush1.bf16.msra.mxu0 0
        %1349 = vmatprep.subr.bf16.mxu0 0
        %1350 = vmatpush1.bf16.msra.mxu0 0
        %1351 = vmatprep.subr.bf16.mxu0 0
        %1352 = vmatpush1.bf16.msra.mxu0 0
        %1353 = vmatprep.mubr.bf16.mxu0 0
        %1354 = vmatmul.mubr.bf16.gmra.mrb[0].mxu0 %v1265
        %v1355 = vpop.f32.mrb[0].mxu0
        %v1356 = vadd.f32 0.0, %v1355
        %v1357 = vpop.f32.mrb[0].mxu0
        %v1358 = vpop.f32.mrb[0].mxu0
        %v1359 = vadd.f32 0.0, %v1358
        %v1360 = vpop.f32.mrb[0].mxu0
        %1361 = vmatprep.mubr.bf16.mxu0 0
        %1362 = vmatmul.mubr.bf16.gmra.mrb[0].mxu0 %v1266
        %v1363 = vpop.f32.mrb[0].mxu0
        %v1364 = vadd.f32 0.0, %v1363
        %v1365 = vpop.f32.mrb[0].mxu0
        %v1366 = vpop.f32.mrb[0].mxu0
        %v1367 = vadd.f32 0.0, %v1366
        %v1368 = vpop.f32.mrb[0].mxu0
        %1369 = vmatprep.mubr.bf16.mxu0 0
        %1370 = vmatmul.mubr.bf16.gmra.mrb[0].mxu0 %v1267
        %v1371 = vpop.f32.mrb[0].mxu0
        %v1372 = vadd.f32 0.0, %v1371
        %v1373 = vpop.f32.mrb[0].mxu0
        %v1374 = vpop.f32.mrb[0].mxu0
        %v1375 = vadd.f32 0.0, %v1374
        %v1376 = vpop.f32.mrb[0].mxu0
        %1377 = vmatprep.mubr.bf16.mxu0 0
        %1378 = vmatmul.mubr.bf16.gmra.mrb[0].mxu0 %v1268
        %v1379 = vpop.f32.mrb[0].mxu0
        %v1380 = vadd.f32 0.0, %v1379
        %v1381 = vpop.f32.mrb[0].mxu0
        %v1382 = vpop.f32.mrb[0].mxu0
        %v1383 = vadd.f32 0.0, %v1382
        %v1384 = vpop.f32.mrb[0].mxu0
        %1385 = vdwg.mxu0
        %v1386 = vadd.f32 %v1151, %v1356
        %v1387 = vadd.f32 %v1154, %v1359
        %v1388 = vadd.f32 %v1159, %v1364
        %v1389 = vadd.f32 %v1162, %v1367
        %v1390 = vadd.f32 %v1167, %v1372
        %v1391 = vadd.f32 %v1170, %v1375
        %v1392 = vadd.f32 %v1175, %v1380
        %v1393 = vadd.f32 %v1178, %v1383
        %v1394 = vld [vmem:[%s700] sm:$0xf]
        %v1395 = vld [vmem:[%s700 + $0x8] sm:$0xf]
        %v1396 = vld [vmem:[%s700 + $0x10] sm:$0xf]
        %v1397 = vld [vmem:[%s700 + $0x18] sm:$0xf]
        %v1398 = vld [vmem:[%s700 + $0x20] sm:$0xf]
        %v1399 = vld [vmem:[%s700 + $0x28] sm:$0xf]
        %v1400 = vld [vmem:[%s700 + $0x30] sm:$0xf]
        %v1401 = vld [vmem:[%s700 + $0x38] sm:$0xf]
        %s1402 = scalar_lea.vmem [#allocation8], 192
        %v1403 = vld [vmem:[%s1402] sm:$0xf]
        %v1404 = vld [vmem:[%s1402 + $0x4] sm:$0xf]
        %v1405 = vld [vmem:[%s1402 + $0x8] sm:$0xf]
        %v1406 = vld [vmem:[%s1402 + $0xc] sm:$0xf]
        %v1407 = vld [vmem:[%s1402 + $0x10] sm:$0xf]
        %v1408 = vld [vmem:[%s1402 + $0x14] sm:$0xf]
        %v1409 = vld [vmem:[%s1402 + $0x18] sm:$0xf]
        %v1410 = vld [vmem:[%s1402 + $0x1c] sm:$0xf]
        %v1411 = vld [vmem:[%s1402 + $0x20] sm:$0xf]
        %v1412 = vld [vmem:[%s1402 + $0x24] sm:$0xf]
        %v1413 = vld [vmem:[%s1402 + $0x28] sm:$0xf]
        %v1414 = vld [vmem:[%s1402 + $0x2c] sm:$0xf]
        %v1415 = vld [vmem:[%s1402 + $0x30] sm:$0xf]
        %v1416 = vld [vmem:[%s1402 + $0x34] sm:$0xf]
        %v1417 = vld [vmem:[%s1402 + $0x38] sm:$0xf]
        %v1418 = vld [vmem:[%s1402 + $0x3c] sm:$0xf]
        %v1427 = vunpack.c.l.b16 %v1394
        %v1428 = vunpack.c.l.b16 %v1395
        %v1429 = vunpack.c.l.b16 %v1396
        %v1430 = vunpack.c.l.b16 %v1397
        %v1431 = vunpack.c.l.b16 %v1398
        %v1432 = vunpack.c.l.b16 %v1399
        %v1433 = vunpack.c.l.b16 %v1400
        %v1434 = vunpack.c.l.b16 %v1401
        %v1435 = vpack.c.b16 %v1428, %v1427
        %v1436 = vpack.c.b16 %v1430, %v1429
        %v1437 = vpack.c.b16 %v1432, %v1431
        %v1438 = vpack.c.b16 %v1434, %v1433
        %v1459 = vunpack.c.l.b16 %v1403
        %v1460 = vunpack.c.l.b16 %v1404
        %v1461 = vunpack.c.l.b16 %v1405
        %v1462 = vunpack.c.l.b16 %v1406
        %v1463 = vunpack.c.l.b16 %v1407
        %v1464 = vunpack.c.l.b16 %v1408
        %v1465 = vunpack.c.l.b16 %v1409
        %v1466 = vunpack.c.l.b16 %v1410
        %v1467 = vunpack.c.l.b16 %v1411
        %v1468 = vunpack.c.l.b16 %v1412
        %v1469 = vunpack.c.l.b16 %v1413
        %v1470 = vunpack.c.l.b16 %v1414
        %v1471 = vunpack.c.l.b16 %v1415
        %v1472 = vunpack.c.l.b16 %v1416
        %v1473 = vunpack.c.l.b16 %v1417
        %v1474 = vunpack.c.l.b16 %v1418
        %v1475 = vpack.c.b16 %v1460, %v1459
        %v1476 = vpack.c.b16 %v1462, %v1461
        %v1477 = vpack.c.b16 %v1464, %v1463
        %v1478 = vpack.c.b16 %v1466, %v1465
        %v1479 = vpack.c.b16 %v1468, %v1467
        %v1480 = vpack.c.b16 %v1470, %v1469
        %v1481 = vpack.c.b16 %v1472, %v1471
        %v1482 = vpack.c.b16 %v1474, %v1473
        %1491 = vmatprep.subr.bf16.mxu0 0
        %1492 = vmatpush1.bf16.msra.mxu0 %v1475
        %1493 = vmatprep.subr.bf16.mxu0 0
        %1494 = vmatpush1.bf16.msra.mxu0 %v1476
        %1495 = vmatprep.subr.bf16.mxu0 0
        %1496 = vmatpush1.bf16.msra.mxu0 %v1477
        %1497 = vmatprep.subr.bf16.mxu0 0
        %1498 = vmatpush1.bf16.msra.mxu0 %v1478
        %1499 = vmatprep.subr.bf16.mxu0 0
        %1500 = vmatpush1.bf16.msra.mxu0 %v1479
        %1501 = vmatprep.subr.bf16.mxu0 0
        %1502 = vmatpush1.bf16.msra.mxu0 %v1480
        %1503 = vmatprep.subr.bf16.mxu0 0
        %1504 = vmatpush1.bf16.msra.mxu0 %v1481
        %1505 = vmatprep.subr.bf16.mxu0 0
        %1506 = vmatpush1.bf16.msra.mxu0 %v1482
        %1507 = vmatprep.subr.bf16.mxu0 0
        %1508 = vmatpush1.bf16.msra.mxu0 0
        %1509 = vmatprep.subr.bf16.mxu0 0
        %1510 = vmatpush1.bf16.msra.mxu0 0
        %1511 = vmatprep.subr.bf16.mxu0 0
        %1512 = vmatpush1.bf16.msra.mxu0 0
        %1513 = vmatprep.subr.bf16.mxu0 0
        %1514 = vmatpush1.bf16.msra.mxu0 0
        %1515 = vmatprep.subr.bf16.mxu0 0
        %1516 = vmatpush1.bf16.msra.mxu0 0
        %1517 = vmatprep.subr.bf16.mxu0 0
        %1518 = vmatpush1.bf16.msra.mxu0 0
        %1519 = vmatprep.subr.bf16.mxu0 0
        %1520 = vmatpush1.bf16.msra.mxu0 0
        %1521 = vmatprep.subr.bf16.mxu0 0
        %1522 = vmatpush1.bf16.msra.mxu0 0
        %1523 = vmatprep.mubr.bf16.mxu0 0
        %1524 = vmatmul.mubr.bf16.gmra.mrb[0].mxu0 %v1435
        %v1525 = vpop.f32.mrb[0].mxu0
        %v1526 = vadd.f32 0.0, %v1525
        %v1527 = vpop.f32.mrb[0].mxu0
        %v1528 = vpop.f32.mrb[0].mxu0
        %v1529 = vadd.f32 0.0, %v1528
        %v1530 = vpop.f32.mrb[0].mxu0
        %1531 = vmatprep.mubr.bf16.mxu0 0
        %1532 = vmatmul.mubr.bf16.gmra.mrb[0].mxu0 %v1436
        %v1533 = vpop.f32.mrb[0].mxu0
        %v1534 = vadd.f32 0.0, %v1533
        %v1535 = vpop.f32.mrb[0].mxu0
        %v1536 = vpop.f32.mrb[0].mxu0
        %v1537 = vadd.f32 0.0, %v1536
        %v1538 = vpop.f32.mrb[0].mxu0
        %1539 = vmatprep.mubr.bf16.mxu0 0
        %1540 = vmatmul.mubr.bf16.gmra.mrb[0].mxu0 %v1437
        %v1541 = vpop.f32.mrb[0].mxu0
        %v1542 = vadd.f32 0.0, %v1541
        %v1543 = vpop.f32.mrb[0].mxu0
        %v1544 = vpop.f32.mrb[0].mxu0
        %v1545 = vadd.f32 0.0, %v1544
        %v1546 = vpop.f32.mrb[0].mxu0
        %1547 = vmatprep.mubr.bf16.mxu0 0
        %1548 = vmatmul.mubr.bf16.gmra.mrb[0].mxu0 %v1438
        %v1549 = vpop.f32.mrb[0].mxu0
        %v1550 = vadd.f32 0.0, %v1549
        %v1551 = vpop.f32.mrb[0].mxu0
        %v1552 = vpop.f32.mrb[0].mxu0
        %v1553 = vadd.f32 0.0, %v1552
        %v1554 = vpop.f32.mrb[0].mxu0
        %1555 = vdwg.mxu0
        %v1556 = vadd.f32 %v1386, %v1526
        %v1557 = vadd.f32 %v1387, %v1529
        %v1558 = vadd.f32 %v1388, %v1534
        %v1559 = vadd.f32 %v1389, %v1537
        %v1560 = vadd.f32 %v1390, %v1542
        %v1561 = vadd.f32 %v1391, %v1545
        %v1562 = vadd.f32 %v1392, %v1550
        %v1563 = vadd.f32 %v1393, %v1553
        %v1564 = vld [vmem:[%s700] sm:$0xf]
        %v1565 = vld [vmem:[%s700 + $0x4] sm:$0x1]
        %v1566 = vld [vmem:[%s700 + $0x8] sm:$0xf]
        %v1567 = vld [vmem:[%s700 + $0xc] sm:$0x1]
        %v1568 = vld [vmem:[%s700 + $0x10] sm:$0xf]
        %v1569 = vld [vmem:[%s700 + $0x14] sm:$0x1]
        %v1570 = vld [vmem:[%s700 + $0x18] sm:$0xf]
        %v1571 = vld [vmem:[%s700 + $0x1c] sm:$0x1]
        %v1572 = vld [vmem:[%s700 + $0x20] sm:$0xf]
        %v1573 = vld [vmem:[%s700 + $0x24] sm:$0x1]
        %v1574 = vld [vmem:[%s700 + $0x28] sm:$0xf]
        %v1575 = vld [vmem:[%s700 + $0x2c] sm:$0x1]
        %v1576 = vld [vmem:[%s700 + $0x30] sm:$0xf]
        %v1577 = vld [vmem:[%s700 + $0x34] sm:$0x1]
        %v1578 = vld [vmem:[%s700 + $0x38] sm:$0xf]
        %v1579 = vld [vmem:[%s700 + $0x3c] sm:$0x1]
        %v1581 = vshrl.u32 %v1564, 16
        %v1583 = vrot.slane %v1581, 4
        %v1584 = vshll.u32 %v1564, 16
        %v1586 = vrot.slane %v1584, 5
        %v1587 = vor.u32 %v1583, %v1586
        %v1588 = vrot.slane %v1587, 4
        %v1590 = vshll.u32 %v1565, 16
        %v1592 = vrot.slane %v1590, 5
        %v1593 = vsel %vm785, %v1588, %v1592
        %v1595 = vshrl.u32 %v1566, 16
        %v1597 = vrot.slane %v1595, 4
        %v1598 = vshll.u32 %v1566, 16
        %v1600 = vrot.slane %v1598, 5
        %v1601 = vor.u32 %v1597, %v1600
        %v1602 = vrot.slane %v1601, 4
        %v1604 = vshll.u32 %v1567, 16
        %v1606 = vrot.slane %v1604, 5
        %v1607 = vsel %vm785, %v1602, %v1606
        %v1609 = vshrl.u32 %v1568, 16
        %v1611 = vrot.slane %v1609, 4
        %v1612 = vshll.u32 %v1568, 16
        %v1614 = vrot.slane %v1612, 5
        %v1615 = vor.u32 %v1611, %v1614
        %v1616 = vrot.slane %v1615, 4
        %v1618 = vshll.u32 %v1569, 16
        %v1620 = vrot.slane %v1618, 5
        %v1621 = vsel %vm785, %v1616, %v1620
        %v1623 = vshrl.u32 %v1570, 16
        %v1625 = vrot.slane %v1623, 4
        %v1626 = vshll.u32 %v1570, 16
        %v1628 = vrot.slane %v1626, 5
        %v1629 = vor.u32 %v1625, %v1628
        %v1630 = vrot.slane %v1629, 4
        %v1632 = vshll.u32 %v1571, 16
        %v1634 = vrot.slane %v1632, 5
        %v1635 = vsel %vm785, %v1630, %v1634
        %v1637 = vshrl.u32 %v1572, 16
        %v1639 = vrot.slane %v1637, 4
        %v1640 = vshll.u32 %v1572, 16
        %v1642 = vrot.slane %v1640, 5
        %v1643 = vor.u32 %v1639, %v1642
        %v1644 = vrot.slane %v1643, 4
        %v1646 = vshll.u32 %v1573, 16
        %v1648 = vrot.slane %v1646, 5
        %v1649 = vsel %vm785, %v1644, %v1648
        %v1651 = vshrl.u32 %v1574, 16
        %v1653 = vrot.slane %v1651, 4
        %v1654 = vshll.u32 %v1574, 16
        %v1656 = vrot.slane %v1654, 5
        %v1657 = vor.u32 %v1653, %v1656
        %v1658 = vrot.slane %v1657, 4
        %v1660 = vshll.u32 %v1575, 16
        %v1662 = vrot.slane %v1660, 5
        %v1663 = vsel %vm785, %v1658, %v1662
        %v1665 = vshrl.u32 %v1576, 16
        %v1667 = vrot.slane %v1665, 4
        %v1668 = vshll.u32 %v1576, 16
        %v1670 = vrot.slane %v1668, 5
        %v1671 = vor.u32 %v1667, %v1670
        %v1672 = vrot.slane %v1671, 4
        %v1674 = vshll.u32 %v1577, 16
        %v1676 = vrot.slane %v1674, 5
        %v1677 = vsel %vm785, %v1672, %v1676
        %v1679 = vshrl.u32 %v1578, 16
        %v1681 = vrot.slane %v1679, 4
        %v1682 = vshll.u32 %v1578, 16
        %v1684 = vrot.slane %v1682, 5
        %v1685 = vor.u32 %v1681, %v1684
        %v1686 = vrot.slane %v1685, 4
        %v1688 = vshll.u32 %v1579, 16
        %v1690 = vrot.slane %v1688, 5
        %v1691 = vsel %vm785, %v1686, %v1690
        %s1692 = scalar_lea.vmem [#allocation8], 256
        %v1693 = vld [vmem:[%s1692] sm:$0xf]
        %v1694 = vld [vmem:[%s1692 + $0x4] sm:$0xf]
        %v1695 = vld [vmem:[%s1692 + $0x8] sm:$0xf]
        %v1696 = vld [vmem:[%s1692 + $0xc] sm:$0xf]
        %v1697 = vld [vmem:[%s1692 + $0x10] sm:$0xf]
        %v1698 = vld [vmem:[%s1692 + $0x14] sm:$0xf]
        %v1699 = vld [vmem:[%s1692 + $0x18] sm:$0xf]
        %v1700 = vld [vmem:[%s1692 + $0x1c] sm:$0xf]
        %v1701 = vld [vmem:[%s1692 + $0x20] sm:$0xf]
        %v1702 = vld [vmem:[%s1692 + $0x24] sm:$0xf]
        %v1703 = vld [vmem:[%s1692 + $0x28] sm:$0xf]
        %v1704 = vld [vmem:[%s1692 + $0x2c] sm:$0xf]
        %v1705 = vld [vmem:[%s1692 + $0x30] sm:$0xf]
        %v1706 = vld [vmem:[%s1692 + $0x34] sm:$0xf]
        %v1707 = vld [vmem:[%s1692 + $0x38] sm:$0xf]
        %v1708 = vld [vmem:[%s1692 + $0x3c] sm:$0xf]
        %v1709 = vunpack.c.l.b16 %v1593
        %v1710 = vunpack.c.l.b16 %v1607
        %v1711 = vunpack.c.l.b16 %v1621
        %v1712 = vunpack.c.l.b16 %v1635
        %v1713 = vunpack.c.l.b16 %v1649
        %v1714 = vunpack.c.l.b16 %v1663
        %v1715 = vunpack.c.l.b16 %v1677
        %v1716 = vunpack.c.l.b16 %v1691
        %v1717 = vpack.c.b16 %v1710, %v1709
        %v1718 = vpack.c.b16 %v1712, %v1711
        %v1719 = vpack.c.b16 %v1714, %v1713
        %v1720 = vpack.c.b16 %v1716, %v1715
        %v1741 = vunpack.c.l.b16 %v1693
        %v1742 = vunpack.c.l.b16 %v1694
        %v1743 = vunpack.c.l.b16 %v1695
        %v1744 = vunpack.c.l.b16 %v1696
        %v1745 = vunpack.c.l.b16 %v1697
        %v1746 = vunpack.c.l.b16 %v1698
        %v1747 = vunpack.c.l.b16 %v1699
        %v1748 = vunpack.c.l.b16 %v1700
        %v1749 = vunpack.c.l.b16 %v1701
        %v1750 = vunpack.c.l.b16 %v1702
        %v1751 = vunpack.c.l.b16 %v1703
        %v1752 = vunpack.c.l.b16 %v1704
        %v1753 = vunpack.c.l.b16 %v1705
        %v1754 = vunpack.c.l.b16 %v1706
        %v1755 = vunpack.c.l.b16 %v1707
        %v1756 = vunpack.c.l.b16 %v1708
        %v1757 = vpack.c.b16 %v1742, %v1741
        %v1758 = vpack.c.b16 %v1744, %v1743
        %v1759 = vpack.c.b16 %v1746, %v1745
        %v1760 = vpack.c.b16 %v1748, %v1747
        %v1761 = vpack.c.b16 %v1750, %v1749
        %v1762 = vpack.c.b16 %v1752, %v1751
        %v1763 = vpack.c.b16 %v1754, %v1753
        %v1764 = vpack.c.b16 %v1756, %v1755
        %1773 = vmatprep.subr.bf16.mxu0 0
        %1774 = vmatpush1.bf16.msra.mxu0 %v1757
        %1775 = vmatprep.subr.bf16.mxu0 0
        %1776 = vmatpush1.bf16.msra.mxu0 %v1758
        %1777 = vmatprep.subr.bf16.mxu0 0
        %1778 = vmatpush1.bf16.msra.mxu0 %v1759
        %1779 = vmatprep.subr.bf16.mxu0 0
        %1780 = vmatpush1.bf16.msra.mxu0 %v1760
        %1781 = vmatprep.subr.bf16.mxu0 0
        %1782 = vmatpush1.bf16.msra.mxu0 %v1761
        %1783 = vmatprep.subr.bf16.mxu0 0
        %1784 = vmatpush1.bf16.msra.mxu0 %v1762
        %1785 = vmatprep.subr.bf16.mxu0 0
        %1786 = vmatpush1.bf16.msra.mxu0 %v1763
        %1787 = vmatprep.subr.bf16.mxu0 0
        %1788 = vmatpush1.bf16.msra.mxu0 %v1764
        %1789 = vmatprep.subr.bf16.mxu0 0
        %1790 = vmatpush1.bf16.msra.mxu0 0
        %1791 = vmatprep.subr.bf16.mxu0 0
        %1792 = vmatpush1.bf16.msra.mxu0 0
        %1793 = vmatprep.subr.bf16.mxu0 0
        %1794 = vmatpush1.bf16.msra.mxu0 0
        %1795 = vmatprep.subr.bf16.mxu0 0
        %1796 = vmatpush1.bf16.msra.mxu0 0
        %1797 = vmatprep.subr.bf16.mxu0 0
        %1798 = vmatpush1.bf16.msra.mxu0 0
        %1799 = vmatprep.subr.bf16.mxu0 0
        %1800 = vmatpush1.bf16.msra.mxu0 0
        %1801 = vmatprep.subr.bf16.mxu0 0
        %1802 = vmatpush1.bf16.msra.mxu0 0
        %1803 = vmatprep.subr.bf16.mxu0 0
        %1804 = vmatpush1.bf16.msra.mxu0 0
        %1805 = vmatprep.mubr.bf16.mxu0 0
        %1806 = vmatmul.mubr.bf16.gmra.mrb[0].mxu0 %v1717
        %v1807 = vpop.f32.mrb[0].mxu0
        %v1808 = vadd.f32 0.0, %v1807
        %v1809 = vpop.f32.mrb[0].mxu0
        %v1810 = vpop.f32.mrb[0].mxu0
        %v1811 = vadd.f32 0.0, %v1810
        %v1812 = vpop.f32.mrb[0].mxu0
        %1813 = vmatprep.mubr.bf16.mxu0 0
        %1814 = vmatmul.mubr.bf16.gmra.mrb[0].mxu0 %v1718
        %v1815 = vpop.f32.mrb[0].mxu0
        %v1816 = vadd.f32 0.0, %v1815
        %v1817 = vpop.f32.mrb[0].mxu0
        %v1818 = vpop.f32.mrb[0].mxu0
        %v1819 = vadd.f32 0.0, %v1818
        %v1820 = vpop.f32.mrb[0].mxu0
        %1821 = vmatprep.mubr.bf16.mxu0 0
        %1822 = vmatmul.mubr.bf16.gmra.mrb[0].mxu0 %v1719
        %v1823 = vpop.f32.mrb[0].mxu0
        %v1824 = vadd.f32 0.0, %v1823
        %v1825 = vpop.f32.mrb[0].mxu0
        %v1826 = vpop.f32.mrb[0].mxu0
        %v1827 = vadd.f32 0.0, %v1826
        %v1828 = vpop.f32.mrb[0].mxu0
        %1829 = vmatprep.mubr.bf16.mxu0 0
        %1830 = vmatmul.mubr.bf16.gmra.mrb[0].mxu0 %v1720
        %v1831 = vpop.f32.mrb[0].mxu0
        %v1832 = vadd.f32 0.0, %v1831
        %v1833 = vpop.f32.mrb[0].mxu0
        %v1834 = vpop.f32.mrb[0].mxu0
        %v1835 = vadd.f32 0.0, %v1834
        %v1836 = vpop.f32.mrb[0].mxu0
        %1837 = vdwg.mxu0
        %v1838 = vadd.f32 %v1556, %v1808
        %v1839 = vadd.f32 %v1557, %v1811
        %v1840 = vadd.f32 %v1558, %v1816
        %v1841 = vadd.f32 %v1559, %v1819
        %v1842 = vadd.f32 %v1560, %v1824
        %v1843 = vadd.f32 %v1561, %v1827
        %v1844 = vadd.f32 %v1562, %v1832
        %v1845 = vadd.f32 %v1563, %v1835
        %v1846 = vld [vmem:[%s700] sm:$0xe]
        %v1847 = vld [vmem:[%s700 + $0x8] sm:$0xe]
        %v1848 = vld [vmem:[%s700 + $0x10] sm:$0xe]
        %v1849 = vld [vmem:[%s700 + $0x18] sm:$0xe]
        %v1850 = vld [vmem:[%s700 + $0x20] sm:$0xe]
        %v1851 = vld [vmem:[%s700 + $0x28] sm:$0xe]
        %v1852 = vld [vmem:[%s700 + $0x30] sm:$0xe]
        %v1853 = vld [vmem:[%s700 + $0x38] sm:$0xe]
        %v1870 = vrot.slane %v1846, 5
        %v1871 = vrot.slane %v1870, 4
        %v1872 = vrot.slane %v1565, 5
        %v1873 = vsel %vm1207, %v1871, %v1872
        %v1874 = vrot.slane %v1847, 5
        %v1875 = vrot.slane %v1874, 4
        %v1876 = vrot.slane %v1567, 5
        %v1877 = vsel %vm1207, %v1875, %v1876
        %v1878 = vrot.slane %v1848, 5
        %v1879 = vrot.slane %v1878, 4
        %v1880 = vrot.slane %v1569, 5
        %v1881 = vsel %vm1207, %v1879, %v1880
        %v1882 = vrot.slane %v1849, 5
        %v1883 = vrot.slane %v1882, 4
        %v1884 = vrot.slane %v1571, 5
        %v1885 = vsel %vm1207, %v1883, %v1884
        %v1886 = vrot.slane %v1850, 5
        %v1887 = vrot.slane %v1886, 4
        %v1888 = vrot.slane %v1573, 5
        %v1889 = vsel %vm1207, %v1887, %v1888
        %v1890 = vrot.slane %v1851, 5
        %v1891 = vrot.slane %v1890, 4
        %v1892 = vrot.slane %v1575, 5
        %v1893 = vsel %vm1207, %v1891, %v1892
        %v1894 = vrot.slane %v1852, 5
        %v1895 = vrot.slane %v1894, 4
        %v1896 = vrot.slane %v1577, 5
        %v1897 = vsel %vm1207, %v1895, %v1896
        %v1898 = vrot.slane %v1853, 5
        %v1899 = vrot.slane %v1898, 4
        %v1900 = vrot.slane %v1579, 5
        %v1901 = vsel %vm1207, %v1899, %v1900
        %s1902 = scalar_lea.vmem [#allocation8], 320
        %v1903 = vld [vmem:[%s1902] sm:$0xf]
        %v1904 = vld [vmem:[%s1902 + $0x4] sm:$0xf]
        %v1905 = vld [vmem:[%s1902 + $0x8] sm:$0xf]
        %v1906 = vld [vmem:[%s1902 + $0xc] sm:$0xf]
        %v1907 = vld [vmem:[%s1902 + $0x10] sm:$0xf]
        %v1908 = vld [vmem:[%s1902 + $0x14] sm:$0xf]
        %v1909 = vld [vmem:[%s1902 + $0x18] sm:$0xf]
        %v1910 = vld [vmem:[%s1902 + $0x1c] sm:$0xf]
        %v1911 = vld [vmem:[%s1902 + $0x20] sm:$0xf]
        %v1912 = vld [vmem:[%s1902 + $0x24] sm:$0xf]
        %v1913 = vld [vmem:[%s1902 + $0x28] sm:$0xf]
        %v1914 = vld [vmem:[%s1902 + $0x2c] sm:$0xf]
        %v1915 = vld [vmem:[%s1902 + $0x30] sm:$0xf]
        %v1916 = vld [vmem:[%s1902 + $0x34] sm:$0xf]
        %v1917 = vld [vmem:[%s1902 + $0x38] sm:$0xf]
        %v1918 = vld [vmem:[%s1902 + $0x3c] sm:$0xf]
        %v1919 = vunpack.c.l.b16 %v1873
        %v1920 = vunpack.c.l.b16 %v1877
        %v1921 = vunpack.c.l.b16 %v1881
        %v1922 = vunpack.c.l.b16 %v1885
        %v1923 = vunpack.c.l.b16 %v1889
        %v1924 = vunpack.c.l.b16 %v1893
        %v1925 = vunpack.c.l.b16 %v1897
        %v1926 = vunpack.c.l.b16 %v1901
        %v1927 = vpack.c.b16 %v1920, %v1919
        %v1928 = vpack.c.b16 %v1922, %v1921
        %v1929 = vpack.c.b16 %v1924, %v1923
        %v1930 = vpack.c.b16 %v1926, %v1925
        %v1951 = vunpack.c.l.b16 %v1903
        %v1952 = vunpack.c.l.b16 %v1904
        %v1953 = vunpack.c.l.b16 %v1905
        %v1954 = vunpack.c.l.b16 %v1906
        %v1955 = vunpack.c.l.b16 %v1907
        %v1956 = vunpack.c.l.b16 %v1908
        %v1957 = vunpack.c.l.b16 %v1909
        %v1958 = vunpack.c.l.b16 %v1910
        %v1959 = vunpack.c.l.b16 %v1911
        %v1960 = vunpack.c.l.b16 %v1912
        %v1961 = vunpack.c.l.b16 %v1913
        %v1962 = vunpack.c.l.b16 %v1914
        %v1963 = vunpack.c.l.b16 %v1915
        %v1964 = vunpack.c.l.b16 %v1916
        %v1965 = vunpack.c.l.b16 %v1917
        %v1966 = vunpack.c.l.b16 %v1918
        %v1967 = vpack.c.b16 %v1952, %v1951
        %v1968 = vpack.c.b16 %v1954, %v1953
        %v1969 = vpack.c.b16 %v1956, %v1955
        %v1970 = vpack.c.b16 %v1958, %v1957
        %v1971 = vpack.c.b16 %v1960, %v1959
        %v1972 = vpack.c.b16 %v1962, %v1961
        %v1973 = vpack.c.b16 %v1964, %v1963
        %v1974 = vpack.c.b16 %v1966, %v1965
        %1983 = vmatprep.subr.bf16.mxu0 0
        %1984 = vmatpush1.bf16.msra.mxu0 %v1967
        %1985 = vmatprep.subr.bf16.mxu0 0
        %1986 = vmatpush1.bf16.msra.mxu0 %v1968
        %1987 = vmatprep.subr.bf16.mxu0 0
        %1988 = vmatpush1.bf16.msra.mxu0 %v1969
        %1989 = vmatprep.subr.bf16.mxu0 0
        %1990 = vmatpush1.bf16.msra.mxu0 %v1970
        %1991 = vmatprep.subr.bf16.mxu0 0
        %1992 = vmatpush1.bf16.msra.mxu0 %v1971
        %1993 = vmatprep.subr.bf16.mxu0 0
        %1994 = vmatpush1.bf16.msra.mxu0 %v1972
        %1995 = vmatprep.subr.bf16.mxu0 0
        %1996 = vmatpush1.bf16.msra.mxu0 %v1973
        %1997 = vmatprep.subr.bf16.mxu0 0
        %1998 = vmatpush1.bf16.msra.mxu0 %v1974
        %1999 = vmatprep.subr.bf16.mxu0 0
        %2000 = vmatpush1.bf16.msra.mxu0 0
        %2001 = vmatprep.subr.bf16.mxu0 0
        %2002 = vmatpush1.bf16.msra.mxu0 0
        %2003 = vmatprep.subr.bf16.mxu0 0
        %2004 = vmatpush1.bf16.msra.mxu0 0
        %2005 = vmatprep.subr.bf16.mxu0 0
        %2006 = vmatpush1.bf16.msra.mxu0 0
        %2007 = vmatprep.subr.bf16.mxu0 0
        %2008 = vmatpush1.bf16.msra.mxu0 0
        %2009 = vmatprep.subr.bf16.mxu0 0
        %2010 = vmatpush1.bf16.msra.mxu0 0
        %2011 = vmatprep.subr.bf16.mxu0 0
        %2012 = vmatpush1.bf16.msra.mxu0 0
        %2013 = vmatprep.subr.bf16.mxu0 0
        %2014 = vmatpush1.bf16.msra.mxu0 0
        %2015 = vmatprep.mubr.bf16.mxu0 0
        %2016 = vmatmul.mubr.bf16.gmra.mrb[0].mxu0 %v1927
        %v2017 = vpop.f32.mrb[0].mxu0
        %v2018 = vadd.f32 0.0, %v2017
        %v2019 = vpop.f32.mrb[0].mxu0
        %v2020 = vpop.f32.mrb[0].mxu0
        %v2021 = vadd.f32 0.0, %v2020
        %v2022 = vpop.f32.mrb[0].mxu0
        %2023 = vmatprep.mubr.bf16.mxu0 0
        %2024 = vmatmul.mubr.bf16.gmra.mrb[0].mxu0 %v1928
        %v2025 = vpop.f32.mrb[0].mxu0
        %v2026 = vadd.f32 0.0, %v2025
        %v2027 = vpop.f32.mrb[0].mxu0
        %v2028 = vpop.f32.mrb[0].mxu0
        %v2029 = vadd.f32 0.0, %v2028
        %v2030 = vpop.f32.mrb[0].mxu0
        %2031 = vmatprep.mubr.bf16.mxu0 0
        %2032 = vmatmul.mubr.bf16.gmra.mrb[0].mxu0 %v1929
        %v2033 = vpop.f32.mrb[0].mxu0
        %v2034 = vadd.f32 0.0, %v2033
        %v2035 = vpop.f32.mrb[0].mxu0
        %v2036 = vpop.f32.mrb[0].mxu0
        %v2037 = vadd.f32 0.0, %v2036
        %v2038 = vpop.f32.mrb[0].mxu0
        %2039 = vmatprep.mubr.bf16.mxu0 0
        %2040 = vmatmul.mubr.bf16.gmra.mrb[0].mxu0 %v1930
        %v2041 = vpop.f32.mrb[0].mxu0
        %v2042 = vadd.f32 0.0, %v2041
        %v2043 = vpop.f32.mrb[0].mxu0
        %v2044 = vpop.f32.mrb[0].mxu0
        %v2045 = vadd.f32 0.0, %v2044
        %v2046 = vpop.f32.mrb[0].mxu0
        %2047 = vdwg.mxu0
        %v2048 = vadd.f32 %v1838, %v2018
        %v2049 = vadd.f32 %v1839, %v2021
        %v2050 = vadd.f32 %v1840, %v2026
        %v2051 = vadd.f32 %v1841, %v2029
        %v2052 = vadd.f32 %v1842, %v2034
        %v2053 = vadd.f32 %v1843, %v2037
        %v2054 = vadd.f32 %v1844, %v2042
        %v2055 = vadd.f32 %v1845, %v2045
        %s2056 = scalar_lea.vmem [#allocation2], 16
        %v2057 = vld [vmem:[%s2056] sm:$0xf]
        %v2058 = vld [vmem:[%s2056 + $0x8] sm:$0xf]
        %v2059 = vld [vmem:[%s2056 + $0x10] sm:$0xf]
        %v2060 = vld [vmem:[%s2056 + $0x18] sm:$0xf]
        %v2061 = vld [vmem:[%s2056 + $0x20] sm:$0xf]
        %v2062 = vld [vmem:[%s2056 + $0x28] sm:$0xf]
        %v2063 = vld [vmem:[%s2056 + $0x30] sm:$0xf]
        %v2064 = vld [vmem:[%s2056 + $0x38] sm:$0xf]
        %s2065 = scalar_lea.vmem [#allocation8], 384
        %v2066 = vld [vmem:[%s2065] sm:$0xf]
        %v2067 = vld [vmem:[%s2065 + $0x4] sm:$0xf]
        %v2068 = vld [vmem:[%s2065 + $0x8] sm:$0xf]
        %v2069 = vld [vmem:[%s2065 + $0xc] sm:$0xf]
        %v2070 = vld [vmem:[%s2065 + $0x10] sm:$0xf]
        %v2071 = vld [vmem:[%s2065 + $0x14] sm:$0xf]
        %v2072 = vld [vmem:[%s2065 + $0x18] sm:$0xf]
        %v2073 = vld [vmem:[%s2065 + $0x1c] sm:$0xf]
        %v2074 = vld [vmem:[%s2065 + $0x20] sm:$0xf]
        %v2075 = vld [vmem:[%s2065 + $0x24] sm:$0xf]
        %v2076 = vld [vmem:[%s2065 + $0x28] sm:$0xf]
        %v2077 = vld [vmem:[%s2065 + $0x2c] sm:$0xf]
        %v2078 = vld [vmem:[%s2065 + $0x30] sm:$0xf]
        %v2079 = vld [vmem:[%s2065 + $0x34] sm:$0xf]
        %v2080 = vld [vmem:[%s2065 + $0x38] sm:$0xf]
        %v2081 = vld [vmem:[%s2065 + $0x3c] sm:$0xf]
        %v2090 = vunpack.c.l.b16 %v2057
        %v2091 = vunpack.c.l.b16 %v2058
        %v2092 = vunpack.c.l.b16 %v2059
        %v2093 = vunpack.c.l.b16 %v2060
        %v2094 = vunpack.c.l.b16 %v2061
        %v2095 = vunpack.c.l.b16 %v2062
        %v2096 = vunpack.c.l.b16 %v2063
        %v2097 = vunpack.c.l.b16 %v2064
        %v2098 = vpack.c.b16 %v2091, %v2090
        %v2099 = vpack.c.b16 %v2093, %v2092
        %v2100 = vpack.c.b16 %v2095, %v2094
        %v2101 = vpack.c.b16 %v2097, %v2096
        %v2122 = vunpack.c.l.b16 %v2066
        %v2123 = vunpack.c.l.b16 %v2067
        %v2124 = vunpack.c.l.b16 %v2068
        %v2125 = vunpack.c.l.b16 %v2069
        %v2126 = vunpack.c.l.b16 %v2070
        %v2127 = vunpack.c.l.b16 %v2071
        %v2128 = vunpack.c.l.b16 %v2072
        %v2129 = vunpack.c.l.b16 %v2073
        %v2130 = vunpack.c.l.b16 %v2074
        %v2131 = vunpack.c.l.b16 %v2075
        %v2132 = vunpack.c.l.b16 %v2076
        %v2133 = vunpack.c.l.b16 %v2077
        %v2134 = vunpack.c.l.b16 %v2078
        %v2135 = vunpack.c.l.b16 %v2079
        %v2136 = vunpack.c.l.b16 %v2080
        %v2137 = vunpack.c.l.b16 %v2081
        %v2138 = vpack.c.b16 %v2123, %v2122
        %v2139 = vpack.c.b16 %v2125, %v2124
        %v2140 = vpack.c.b16 %v2127, %v2126
        %v2141 = vpack.c.b16 %v2129, %v2128
        %v2142 = vpack.c.b16 %v2131, %v2130
        %v2143 = vpack.c.b16 %v2133, %v2132
        %v2144 = vpack.c.b16 %v2135, %v2134
        %v2145 = vpack.c.b16 %v2137, %v2136
        %2154 = vmatprep.subr.bf16.mxu0 0
        %2155 = vmatpush1.bf16.msra.mxu0 %v2138
        %2156 = vmatprep.subr.bf16.mxu0 0
        %2157 = vmatpush1.bf16.msra.mxu0 %v2139
        %2158 = vmatprep.subr.bf16.mxu0 0
        %2159 = vmatpush1.bf16.msra.mxu0 %v2140
        %2160 = vmatprep.subr.bf16.mxu0 0
        %2161 = vmatpush1.bf16.msra.mxu0 %v2141
        %2162 = vmatprep.subr.bf16.mxu0 0
        %2163 = vmatpush1.bf16.msra.mxu0 %v2142
        %2164 = vmatprep.subr.bf16.mxu0 0
        %2165 = vmatpush1.bf16.msra.mxu0 %v2143
        %2166 = vmatprep.subr.bf16.mxu0 0
        %2167 = vmatpush1.bf16.msra.mxu0 %v2144
        %2168 = vmatprep.subr.bf16.mxu0 0
        %2169 = vmatpush1.bf16.msra.mxu0 %v2145
        %2170 = vmatprep.subr.bf16.mxu0 0
        %2171 = vmatpush1.bf16.msra.mxu0 0
        %2172 = vmatprep.subr.bf16.mxu0 0
        %2173 = vmatpush1.bf16.msra.mxu0 0
        %2174 = vmatprep.subr.bf16.mxu0 0
        %2175 = vmatpush1.bf16.msra.mxu0 0
        %2176 = vmatprep.subr.bf16.mxu0 0
        %2177 = vmatpush1.bf16.msra.mxu0 0
        %2178 = vmatprep.subr.bf16.mxu0 0
        %2179 = vmatpush1.bf16.msra.mxu0 0
        %2180 = vmatprep.subr.bf16.mxu0 0
        %2181 = vmatpush1.bf16.msra.mxu0 0
        %2182 = vmatprep.subr.bf16.mxu0 0
        %2183 = vmatpush1.bf16.msra.mxu0 0
        %2184 = vmatprep.subr.bf16.mxu0 0
        %2185 = vmatpush1.bf16.msra.mxu0 0
        %2186 = vmatprep.mubr.bf16.mxu0 0
        %2187 = vmatmul.mubr.bf16.gmra.mrb[0].mxu0 %v2098
        %v2188 = vpop.f32.mrb[0].mxu0
        %v2189 = vadd.f32 0.0, %v2188
        %v2190 = vpop.f32.mrb[0].mxu0
        %v2191 = vpop.f32.mrb[0].mxu0
        %v2192 = vadd.f32 0.0, %v2191
        %v2193 = vpop.f32.mrb[0].mxu0
        %2194 = vmatprep.mubr.bf16.mxu0 0
        %2195 = vmatmul.mubr.bf16.gmra.mrb[0].mxu0 %v2099
        %v2196 = vpop.f32.mrb[0].mxu0
        %v2197 = vadd.f32 0.0, %v2196
        %v2198 = vpop.f32.mrb[0].mxu0
        %v2199 = vpop.f32.mrb[0].mxu0
        %v2200 = vadd.f32 0.0, %v2199
        %v2201 = vpop.f32.mrb[0].mxu0
        %2202 = vmatprep.mubr.bf16.mxu0 0
        %2203 = vmatmul.mubr.bf16.gmra.mrb[0].mxu0 %v2100
        %v2204 = vpop.f32.mrb[0].mxu0
        %v2205 = vadd.f32 0.0, %v2204
        %v2206 = vpop.f32.mrb[0].mxu0
        %v2207 = vpop.f32.mrb[0].mxu0
        %v2208 = vadd.f32 0.0, %v2207
        %v2209 = vpop.f32.mrb[0].mxu0
        %2210 = vmatprep.mubr.bf16.mxu0 0
        %2211 = vmatmul.mubr.bf16.gmra.mrb[0].mxu0 %v2101
        %v2212 = vpop.f32.mrb[0].mxu0
        %v2213 = vadd.f32 0.0, %v2212
        %v2214 = vpop.f32.mrb[0].mxu0
        %v2215 = vpop.f32.mrb[0].mxu0
        %v2216 = vadd.f32 0.0, %v2215
        %v2217 = vpop.f32.mrb[0].mxu0
        %2218 = vdwg.mxu0
        %v2219 = vadd.f32 %v2048, %v2189
        %v2220 = vadd.f32 %v2049, %v2192
        %v2221 = vadd.f32 %v2050, %v2197
        %v2222 = vadd.f32 %v2051, %v2200
        %v2223 = vadd.f32 %v2052, %v2205
        %v2224 = vadd.f32 %v2053, %v2208
        %v2225 = vadd.f32 %v2054, %v2213
        %v2226 = vadd.f32 %v2055, %v2216
        %v2227 = vld [vmem:[%s2056] sm:$0xf]
        %v2228 = vld [vmem:[%s2056 + $0x4] sm:$0x1]
        %v2229 = vld [vmem:[%s2056 + $0x8] sm:$0xf]
        %v2230 = vld [vmem:[%s2056 + $0xc] sm:$0x1]
        %v2231 = vld [vmem:[%s2056 + $0x10] sm:$0xf]
        %v2232 = vld [vmem:[%s2056 + $0x14] sm:$0x1]
        %v2233 = vld [vmem:[%s2056 + $0x18] sm:$0xf]
        %v2234 = vld [vmem:[%s2056 + $0x1c] sm:$0x1]
        %v2235 = vld [vmem:[%s2056 + $0x20] sm:$0xf]
        %v2236 = vld [vmem:[%s2056 + $0x24] sm:$0x1]
        %v2237 = vld [vmem:[%s2056 + $0x28] sm:$0xf]
        %v2238 = vld [vmem:[%s2056 + $0x2c] sm:$0x1]
        %v2239 = vld [vmem:[%s2056 + $0x30] sm:$0xf]
        %v2240 = vld [vmem:[%s2056 + $0x34] sm:$0x1]
        %v2241 = vld [vmem:[%s2056 + $0x38] sm:$0xf]
        %v2242 = vld [vmem:[%s2056 + $0x3c] sm:$0x1]
        %v2244 = vshrl.u32 %v2227, 16
        %v2246 = vrot.slane %v2244, 4
        %v2247 = vshll.u32 %v2227, 16
        %v2249 = vrot.slane %v2247, 5
        %v2250 = vor.u32 %v2246, %v2249
        %v2251 = vrot.slane %v2250, 4
        %v2253 = vshll.u32 %v2228, 16
        %v2255 = vrot.slane %v2253, 5
        %v2256 = vsel %vm785, %v2251, %v2255
        %v2258 = vshrl.u32 %v2229, 16
        %v2260 = vrot.slane %v2258, 4
        %v2261 = vshll.u32 %v2229, 16
        %v2263 = vrot.slane %v2261, 5
        %v2264 = vor.u32 %v2260, %v2263
        %v2265 = vrot.slane %v2264, 4
        %v2267 = vshll.u32 %v2230, 16
        %v2269 = vrot.slane %v2267, 5
        %v2270 = vsel %vm785, %v2265, %v2269
        %v2272 = vshrl.u32 %v2231, 16
        %v2274 = vrot.slane %v2272, 4
        %v2275 = vshll.u32 %v2231, 16
        %v2277 = vrot.slane %v2275, 5
        %v2278 = vor.u32 %v2274, %v2277
        %v2279 = vrot.slane %v2278, 4
        %v2281 = vshll.u32 %v2232, 16
        %v2283 = vrot.slane %v2281, 5
        %v2284 = vsel %vm785, %v2279, %v2283
        %v2286 = vshrl.u32 %v2233, 16
        %v2288 = vrot.slane %v2286, 4
        %v2289 = vshll.u32 %v2233, 16
        %v2291 = vrot.slane %v2289, 5
        %v2292 = vor.u32 %v2288, %v2291
        %v2293 = vrot.slane %v2292, 4
        %v2295 = vshll.u32 %v2234, 16
        %v2297 = vrot.slane %v2295, 5
        %v2298 = vsel %vm785, %v2293, %v2297
        %v2300 = vshrl.u32 %v2235, 16
        %v2302 = vrot.slane %v2300, 4
        %v2303 = vshll.u32 %v2235, 16
        %v2305 = vrot.slane %v2303, 5
        %v2306 = vor.u32 %v2302, %v2305
        %v2307 = vrot.slane %v2306, 4
        %v2309 = vshll.u32 %v2236, 16
        %v2311 = vrot.slane %v2309, 5
        %v2312 = vsel %vm785, %v2307, %v2311
        %v2314 = vshrl.u32 %v2237, 16
        %v2316 = vrot.slane %v2314, 4
        %v2317 = vshll.u32 %v2237, 16
        %v2319 = vrot.slane %v2317, 5
        %v2320 = vor.u32 %v2316, %v2319
        %v2321 = vrot.slane %v2320, 4
        %v2323 = vshll.u32 %v2238, 16
        %v2325 = vrot.slane %v2323, 5
        %v2326 = vsel %vm785, %v2321, %v2325
        %v2328 = vshrl.u32 %v2239, 16
        %v2330 = vrot.slane %v2328, 4
        %v2331 = vshll.u32 %v2239, 16
        %v2333 = vrot.slane %v2331, 5
        %v2334 = vor.u32 %v2330, %v2333
        %v2335 = vrot.slane %v2334, 4
        %v2337 = vshll.u32 %v2240, 16
        %v2339 = vrot.slane %v2337, 5
        %v2340 = vsel %vm785, %v2335, %v2339
        %v2342 = vshrl.u32 %v2241, 16
        %v2344 = vrot.slane %v2342, 4
        %v2345 = vshll.u32 %v2241, 16
        %v2347 = vrot.slane %v2345, 5
        %v2348 = vor.u32 %v2344, %v2347
        %v2349 = vrot.slane %v2348, 4
        %v2351 = vshll.u32 %v2242, 16
        %v2353 = vrot.slane %v2351, 5
        %v2354 = vsel %vm785, %v2349, %v2353
        %s2355 = scalar_lea.vmem [#allocation8], 448
        %v2356 = vld [vmem:[%s2355] sm:$0xf]
        %v2357 = vld [vmem:[%s2355 + $0x4] sm:$0xf]
        %v2358 = vld [vmem:[%s2355 + $0x8] sm:$0xf]
        %v2359 = vld [vmem:[%s2355 + $0xc] sm:$0xf]
        %v2360 = vld [vmem:[%s2355 + $0x10] sm:$0xf]
        %v2361 = vld [vmem:[%s2355 + $0x14] sm:$0xf]
        %v2362 = vld [vmem:[%s2355 + $0x18] sm:$0xf]
        %v2363 = vld [vmem:[%s2355 + $0x1c] sm:$0xf]
        %v2364 = vld [vmem:[%s2355 + $0x20] sm:$0xf]
        %v2365 = vld [vmem:[%s2355 + $0x24] sm:$0xf]
        %v2366 = vld [vmem:[%s2355 + $0x28] sm:$0xf]
        %v2367 = vld [vmem:[%s2355 + $0x2c] sm:$0xf]
        %v2368 = vld [vmem:[%s2355 + $0x30] sm:$0xf]
        %v2369 = vld [vmem:[%s2355 + $0x34] sm:$0xf]
        %v2370 = vld [vmem:[%s2355 + $0x38] sm:$0xf]
        %v2371 = vld [vmem:[%s2355 + $0x3c] sm:$0xf]
        %v2372 = vunpack.c.l.b16 %v2256
        %v2373 = vunpack.c.l.b16 %v2270
        %v2374 = vunpack.c.l.b16 %v2284
        %v2375 = vunpack.c.l.b16 %v2298
        %v2376 = vunpack.c.l.b16 %v2312
        %v2377 = vunpack.c.l.b16 %v2326
        %v2378 = vunpack.c.l.b16 %v2340
        %v2379 = vunpack.c.l.b16 %v2354
        %v2380 = vpack.c.b16 %v2373, %v2372
        %v2381 = vpack.c.b16 %v2375, %v2374
        %v2382 = vpack.c.b16 %v2377, %v2376
        %v2383 = vpack.c.b16 %v2379, %v2378
        %v2404 = vunpack.c.l.b16 %v2356
        %v2405 = vunpack.c.l.b16 %v2357
        %v2406 = vunpack.c.l.b16 %v2358
        %v2407 = vunpack.c.l.b16 %v2359
        %v2408 = vunpack.c.l.b16 %v2360
        %v2409 = vunpack.c.l.b16 %v2361
        %v2410 = vunpack.c.l.b16 %v2362
        %v2411 = vunpack.c.l.b16 %v2363
        %v2412 = vunpack.c.l.b16 %v2364
        %v2413 = vunpack.c.l.b16 %v2365
        %v2414 = vunpack.c.l.b16 %v2366
        %v2415 = vunpack.c.l.b16 %v2367
        %v2416 = vunpack.c.l.b16 %v2368
        %v2417 = vunpack.c.l.b16 %v2369
        %v2418 = vunpack.c.l.b16 %v2370
        %v2419 = vunpack.c.l.b16 %v2371
        %v2420 = vpack.c.b16 %v2405, %v2404
        %v2421 = vpack.c.b16 %v2407, %v2406
        %v2422 = vpack.c.b16 %v2409, %v2408
        %v2423 = vpack.c.b16 %v2411, %v2410
        %v2424 = vpack.c.b16 %v2413, %v2412
        %v2425 = vpack.c.b16 %v2415, %v2414
        %v2426 = vpack.c.b16 %v2417, %v2416
        %v2427 = vpack.c.b16 %v2419, %v2418
        %2436 = vmatprep.subr.bf16.mxu0 0
        %2437 = vmatpush1.bf16.msra.mxu0 %v2420
        %2438 = vmatprep.subr.bf16.mxu0 0
        %2439 = vmatpush1.bf16.msra.mxu0 %v2421
        %2440 = vmatprep.subr.bf16.mxu0 0
        %2441 = vmatpush1.bf16.msra.mxu0 %v2422
        %2442 = vmatprep.subr.bf16.mxu0 0
        %2443 = vmatpush1.bf16.msra.mxu0 %v2423
        %2444 = vmatprep.subr.bf16.mxu0 0
        %2445 = vmatpush1.bf16.msra.mxu0 %v2424
        %2446 = vmatprep.subr.bf16.mxu0 0
        %2447 = vmatpush1.bf16.msra.mxu0 %v2425
        %2448 = vmatprep.subr.bf16.mxu0 0
        %2449 = vmatpush1.bf16.msra.mxu0 %v2426
        %2450 = vmatprep.subr.bf16.mxu0 0
        %2451 = vmatpush1.bf16.msra.mxu0 %v2427
        %2452 = vmatprep.subr.bf16.mxu0 0
        %2453 = vmatpush1.bf16.msra.mxu0 0
        %2454 = vmatprep.subr.bf16.mxu0 0
        %2455 = vmatpush1.bf16.msra.mxu0 0
        %2456 = vmatprep.subr.bf16.mxu0 0
        %2457 = vmatpush1.bf16.msra.mxu0 0
        %2458 = vmatprep.subr.bf16.mxu0 0
        %2459 = vmatpush1.bf16.msra.mxu0 0
        %2460 = vmatprep.subr.bf16.mxu0 0
        %2461 = vmatpush1.bf16.msra.mxu0 0
        %2462 = vmatprep.subr.bf16.mxu0 0
        %2463 = vmatpush1.bf16.msra.mxu0 0
        %2464 = vmatprep.subr.bf16.mxu0 0
        %2465 = vmatpush1.bf16.msra.mxu0 0
        %2466 = vmatprep.subr.bf16.mxu0 0
        %2467 = vmatpush1.bf16.msra.mxu0 0
        %2468 = vmatprep.mubr.bf16.mxu0 0
        %2469 = vmatmul.mubr.bf16.gmra.mrb[0].mxu0 %v2380
        %v2470 = vpop.f32.mrb[0].mxu0
        %v2471 = vadd.f32 0.0, %v2470
        %v2472 = vpop.f32.mrb[0].mxu0
        %v2473 = vpop.f32.mrb[0].mxu0
        %v2474 = vadd.f32 0.0, %v2473
        %v2475 = vpop.f32.mrb[0].mxu0
        %2476 = vmatprep.mubr.bf16.mxu0 0
        %2477 = vmatmul.mubr.bf16.gmra.mrb[0].mxu0 %v2381
        %v2478 = vpop.f32.mrb[0].mxu0
        %v2479 = vadd.f32 0.0, %v2478
        %v2480 = vpop.f32.mrb[0].mxu0
        %v2481 = vpop.f32.mrb[0].mxu0
        %v2482 = vadd.f32 0.0, %v2481
        %v2483 = vpop.f32.mrb[0].mxu0
        %2484 = vmatprep.mubr.bf16.mxu0 0
        %2485 = vmatmul.mubr.bf16.gmra.mrb[0].mxu0 %v2382
        %v2486 = vpop.f32.mrb[0].mxu0
        %v2487 = vadd.f32 0.0, %v2486
        %v2488 = vpop.f32.mrb[0].mxu0
        %v2489 = vpop.f32.mrb[0].mxu0
        %v2490 = vadd.f32 0.0, %v2489
        %v2491 = vpop.f32.mrb[0].mxu0
        %2492 = vmatprep.mubr.bf16.mxu0 0
        %2493 = vmatmul.mubr.bf16.gmra.mrb[0].mxu0 %v2383
        %v2494 = vpop.f32.mrb[0].mxu0
        %v2495 = vadd.f32 0.0, %v2494
        %v2496 = vpop.f32.mrb[0].mxu0
        %v2497 = vpop.f32.mrb[0].mxu0
        %v2498 = vadd.f32 0.0, %v2497
        %v2499 = vpop.f32.mrb[0].mxu0
        %2500 = vdwg.mxu0
        %v2501 = vadd.f32 %v2219, %v2471
        %v2502 = vadd.f32 %v2220, %v2474
        %v2503 = vadd.f32 %v2221, %v2479
        %v2504 = vadd.f32 %v2222, %v2482
        %v2505 = vadd.f32 %v2223, %v2487
        %v2506 = vadd.f32 %v2224, %v2490
        %v2507 = vadd.f32 %v2225, %v2495
        %v2508 = vadd.f32 %v2226, %v2498
        %v2509 = vld [vmem:[%s2056] sm:$0xe]
        %v2510 = vld [vmem:[%s2056 + $0x8] sm:$0xe]
        %v2511 = vld [vmem:[%s2056 + $0x10] sm:$0xe]
        %v2512 = vld [vmem:[%s2056 + $0x18] sm:$0xe]
        %v2513 = vld [vmem:[%s2056 + $0x20] sm:$0xe]
        %v2514 = vld [vmem:[%s2056 + $0x28] sm:$0xe]
        %v2515 = vld [vmem:[%s2056 + $0x30] sm:$0xe]
        %v2516 = vld [vmem:[%s2056 + $0x38] sm:$0xe]
        %v2533 = vrot.slane %v2509, 5
        %v2534 = vrot.slane %v2533, 4
        %v2535 = vrot.slane %v2228, 5
        %v2536 = vsel %vm1207, %v2534, %v2535
        %v2537 = vrot.slane %v2510, 5
        %v2538 = vrot.slane %v2537, 4
        %v2539 = vrot.slane %v2230, 5
        %v2540 = vsel %vm1207, %v2538, %v2539
        %v2541 = vrot.slane %v2511, 5
        %v2542 = vrot.slane %v2541, 4
        %v2543 = vrot.slane %v2232, 5
        %v2544 = vsel %vm1207, %v2542, %v2543
        %v2545 = vrot.slane %v2512, 5
        %v2546 = vrot.slane %v2545, 4
        %v2547 = vrot.slane %v2234, 5
        %v2548 = vsel %vm1207, %v2546, %v2547
        %v2549 = vrot.slane %v2513, 5
        %v2550 = vrot.slane %v2549, 4
        %v2551 = vrot.slane %v2236, 5
        %v2552 = vsel %vm1207, %v2550, %v2551
        %v2553 = vrot.slane %v2514, 5
        %v2554 = vrot.slane %v2553, 4
        %v2555 = vrot.slane %v2238, 5
        %v2556 = vsel %vm1207, %v2554, %v2555
        %v2557 = vrot.slane %v2515, 5
        %v2558 = vrot.slane %v2557, 4
        %v2559 = vrot.slane %v2240, 5
        %v2560 = vsel %vm1207, %v2558, %v2559
        %v2561 = vrot.slane %v2516, 5
        %v2562 = vrot.slane %v2561, 4
        %v2563 = vrot.slane %v2242, 5
        %v2564 = vsel %vm1207, %v2562, %v2563
        %s2565 = scalar_lea.vmem [#allocation8], 512
        %v2566 = vld [vmem:[%s2565] sm:$0xf]
        %v2567 = vld [vmem:[%s2565 + $0x4] sm:$0xf]
        %v2568 = vld [vmem:[%s2565 + $0x8] sm:$0xf]
        %v2569 = vld [vmem:[%s2565 + $0xc] sm:$0xf]
        %v2570 = vld [vmem:[%s2565 + $0x10] sm:$0xf]
        %v2571 = vld [vmem:[%s2565 + $0x14] sm:$0xf]
        %v2572 = vld [vmem:[%s2565 + $0x18] sm:$0xf]
        %v2573 = vld [vmem:[%s2565 + $0x1c] sm:$0xf]
        %v2574 = vld [vmem:[%s2565 + $0x20] sm:$0xf]
        %v2575 = vld [vmem:[%s2565 + $0x24] sm:$0xf]
        %v2576 = vld [vmem:[%s2565 + $0x28] sm:$0xf]
        %v2577 = vld [vmem:[%s2565 + $0x2c] sm:$0xf]
        %v2578 = vld [vmem:[%s2565 + $0x30] sm:$0xf]
        %v2579 = vld [vmem:[%s2565 + $0x34] sm:$0xf]
        %v2580 = vld [vmem:[%s2565 + $0x38] sm:$0xf]
        %v2581 = vld [vmem:[%s2565 + $0x3c] sm:$0xf]
        %v2582 = vunpack.c.l.b16 %v2536
        %v2583 = vunpack.c.l.b16 %v2540
        %v2584 = vunpack.c.l.b16 %v2544
        %v2585 = vunpack.c.l.b16 %v2548
        %v2586 = vunpack.c.l.b16 %v2552
        %v2587 = vunpack.c.l.b16 %v2556
        %v2588 = vunpack.c.l.b16 %v2560
        %v2589 = vunpack.c.l.b16 %v2564
        %v2590 = vpack.c.b16 %v2583, %v2582
        %v2591 = vpack.c.b16 %v2585, %v2584
        %v2592 = vpack.c.b16 %v2587, %v2586
        %v2593 = vpack.c.b16 %v2589, %v2588
        %v2614 = vunpack.c.l.b16 %v2566
        %v2615 = vunpack.c.l.b16 %v2567
        %v2616 = vunpack.c.l.b16 %v2568
        %v2617 = vunpack.c.l.b16 %v2569
        %v2618 = vunpack.c.l.b16 %v2570
        %v2619 = vunpack.c.l.b16 %v2571
        %v2620 = vunpack.c.l.b16 %v2572
        %v2621 = vunpack.c.l.b16 %v2573
        %v2622 = vunpack.c.l.b16 %v2574
        %v2623 = vunpack.c.l.b16 %v2575
        %v2624 = vunpack.c.l.b16 %v2576
        %v2625 = vunpack.c.l.b16 %v2577
        %v2626 = vunpack.c.l.b16 %v2578
        %v2627 = vunpack.c.l.b16 %v2579
        %v2628 = vunpack.c.l.b16 %v2580
        %v2629 = vunpack.c.l.b16 %v2581
        %v2630 = vpack.c.b16 %v2615, %v2614
        %v2631 = vpack.c.b16 %v2617, %v2616
        %v2632 = vpack.c.b16 %v2619, %v2618
        %v2633 = vpack.c.b16 %v2621, %v2620
        %v2634 = vpack.c.b16 %v2623, %v2622
        %v2635 = vpack.c.b16 %v2625, %v2624
        %v2636 = vpack.c.b16 %v2627, %v2626
        %v2637 = vpack.c.b16 %v2629, %v2628
        %2646 = vmatprep.subr.bf16.mxu0 0
        %2647 = vmatpush1.bf16.msra.mxu0 %v2630
        %2648 = vmatprep.subr.bf16.mxu0 0
        %2649 = vmatpush1.bf16.msra.mxu0 %v2631
        %2650 = vmatprep.subr.bf16.mxu0 0
        %2651 = vmatpush1.bf16.msra.mxu0 %v2632
        %2652 = vmatprep.subr.bf16.mxu0 0
        %2653 = vmatpush1.bf16.msra.mxu0 %v2633
        %2654 = vmatprep.subr.bf16.mxu0 0
        %2655 = vmatpush1.bf16.msra.mxu0 %v2634
        %2656 = vmatprep.subr.bf16.mxu0 0
        %2657 = vmatpush1.bf16.msra.mxu0 %v2635
        %2658 = vmatprep.subr.bf16.mxu0 0
        %2659 = vmatpush1.bf16.msra.mxu0 %v2636
        %2660 = vmatprep.subr.bf16.mxu0 0
        %2661 = vmatpush1.bf16.msra.mxu0 %v2637
        %2662 = vmatprep.subr.bf16.mxu0 0
        %2663 = vmatpush1.bf16.msra.mxu0 0
        %2664 = vmatprep.subr.bf16.mxu0 0
        %2665 = vmatpush1.bf16.msra.mxu0 0
        %2666 = vmatprep.subr.bf16.mxu0 0
        %2667 = vmatpush1.bf16.msra.mxu0 0
        %2668 = vmatprep.subr.bf16.mxu0 0
        %2669 = vmatpush1.bf16.msra.mxu0 0
        %2670 = vmatprep.subr.bf16.mxu0 0
        %2671 = vmatpush1.bf16.msra.mxu0 0
        %2672 = vmatprep.subr.bf16.mxu0 0
        %2673 = vmatpush1.bf16.msra.mxu0 0
        %2674 = vmatprep.subr.bf16.mxu0 0
        %2675 = vmatpush1.bf16.msra.mxu0 0
        %2676 = vmatprep.subr.bf16.mxu0 0
        %2677 = vmatpush1.bf16.msra.mxu0 0
        %2678 = vmatprep.mubr.bf16.mxu0 0
        %2679 = vmatmul.mubr.bf16.gmra.mrb[0].mxu0 %v2590
        %v2680 = vpop.f32.mrb[0].mxu0
        %v2681 = vadd.f32 0.0, %v2680
        %v2682 = vpop.f32.mrb[0].mxu0
        %v2683 = vpop.f32.mrb[0].mxu0
        %v2684 = vadd.f32 0.0, %v2683
        %v2685 = vpop.f32.mrb[0].mxu0
        %2686 = vmatprep.mubr.bf16.mxu0 0
        %2687 = vmatmul.mubr.bf16.gmra.mrb[0].mxu0 %v2591
        %v2688 = vpop.f32.mrb[0].mxu0
        %v2689 = vadd.f32 0.0, %v2688
        %v2690 = vpop.f32.mrb[0].mxu0
        %v2691 = vpop.f32.mrb[0].mxu0
        %v2692 = vadd.f32 0.0, %v2691
        %v2693 = vpop.f32.mrb[0].mxu0
        %2694 = vmatprep.mubr.bf16.mxu0 0
        %2695 = vmatmul.mubr.bf16.gmra.mrb[0].mxu0 %v2592
        %v2696 = vpop.f32.mrb[0].mxu0
        %v2697 = vadd.f32 0.0, %v2696
        %v2698 = vpop.f32.mrb[0].mxu0
        %v2699 = vpop.f32.mrb[0].mxu0
        %v2700 = vadd.f32 0.0, %v2699
        %v2701 = vpop.f32.mrb[0].mxu0
        %2702 = vmatprep.mubr.bf16.mxu0 0
        %2703 = vmatmul.mubr.bf16.gmra.mrb[0].mxu0 %v2593
        %v2704 = vpop.f32.mrb[0].mxu0
        %v2705 = vadd.f32 0.0, %v2704
        %v2706 = vpop.f32.mrb[0].mxu0
        %v2707 = vpop.f32.mrb[0].mxu0
        %v2708 = vadd.f32 0.0, %v2707
        %v2709 = vpop.f32.mrb[0].mxu0
        %2710 = vdwg.mxu0
        %v2711 = vadd.f32 %v2501, %v2681
        %v2712 = vadd.f32 %v2502, %v2684
        %v2713 = vadd.f32 %v2503, %v2689
        %v2714 = vadd.f32 %v2504, %v2692
        %v2715 = vadd.f32 %v2505, %v2697
        %v2716 = vadd.f32 %v2506, %v2700
        %v2717 = vadd.f32 %v2507, %v2705
        %v2718 = vadd.f32 %v2508, %v2708
        %v2719 = vld [vmem:[%s4] sm:$0x1]
        %v2721 = vlaneseq
        %v2722 = vshrl.u32 %v2721, 7
        %v2723 = vsub.s32 0, %v2722
        %v2724 = vrot.slane %v2719, %v2723
        %v2726 = vadd.f32 %v2711, %v2724
        %v2727 = vadd.f32 %v2712, %v2724
        %v2728 = vadd.f32 %v2713, %v2724
        %v2729 = vadd.f32 %v2714, %v2724
        %v2730 = vadd.f32 %v2715, %v2724
        %v2731 = vadd.f32 %v2716, %v2724
        %v2732 = vadd.f32 %v2717, %v2724
        %v2733 = vadd.f32 %v2718, %v2724
        %v2734 = vmax.f32 %v2726, 0.0
        %v2735 = vmax.f32 %v2727, 0.0
        %v2736 = vmax.f32 %v2728, 0.0
        %v2737 = vmax.f32 %v2729, 0.0
        %v2738 = vmax.f32 %v2730, 0.0
        %v2739 = vmax.f32 %v2731, 0.0
        %v2740 = vmax.f32 %v2732, 0.0
        %v2741 = vmax.f32 %v2733, 0.0
        %v2742 = vpack.c.bf16 %v2735, %v2734
        %v2743 = vpack.c.bf16 %v2737, %v2736
        %v2744 = vpack.c.bf16 %v2739, %v2738
        %v2745 = vpack.c.bf16 %v2741, %v2740
        %v2746 = vld [vmem:[#allocation9] sm:$0xf]
        %v2747 = vld [vmem:[#allocation9 + $0x4] sm:$0xf]
        %v2748 = vld [vmem:[#allocation9 + $0x8] sm:$0xf]
        %v2749 = vld [vmem:[#allocation9 + $0xc] sm:$0xf]
        %v2750 = vld [vmem:[#allocation9 + $0x10] sm:$0xf]
        %v2751 = vld [vmem:[#allocation9 + $0x14] sm:$0xf]
        %v2752 = vld [vmem:[#allocation9 + $0x18] sm:$0xf]
        %v2753 = vld [vmem:[#allocation9 + $0x1c] sm:$0xf]
        %v2754 = vld [vmem:[#allocation9 + $0x20] sm:$0xf]
        %v2755 = vld [vmem:[#allocation9 + $0x24] sm:$0xf]
        %v2756 = vld [vmem:[#allocation9 + $0x28] sm:$0xf]
        %v2757 = vld [vmem:[#allocation9 + $0x2c] sm:$0xf]
        %v2758 = vld [vmem:[#allocation9 + $0x30] sm:$0xf]
        %v2759 = vld [vmem:[#allocation9 + $0x34] sm:$0xf]
        %v2760 = vld [vmem:[#allocation9 + $0x38] sm:$0xf]
        %v2761 = vld [vmem:[#allocation9 + $0x3c] sm:$0xf]
        %v2762 = vld [vmem:[%s6] sm:$0x1]
        %v2764 = vlaneseq
        %v2765 = vshrl.u32 %v2764, 7
        %v2766 = vsub.s32 0, %v2765
        %v2767 = vrot.slane %v2762, %v2766
        %v2785 = vunpack.c.l.b16 %v2746
        %v2786 = vunpack.c.l.b16 %v2747
        %v2787 = vunpack.c.l.b16 %v2748
        %v2788 = vunpack.c.l.b16 %v2749
        %v2789 = vunpack.c.l.b16 %v2750
        %v2790 = vunpack.c.l.b16 %v2751
        %v2791 = vunpack.c.l.b16 %v2752
        %v2792 = vunpack.c.l.b16 %v2753
        %v2793 = vunpack.c.l.b16 %v2754
        %v2794 = vunpack.c.l.b16 %v2755
        %v2795 = vunpack.c.l.b16 %v2756
        %v2796 = vunpack.c.l.b16 %v2757
        %v2797 = vunpack.c.l.b16 %v2758
        %v2798 = vunpack.c.l.b16 %v2759
        %v2799 = vunpack.c.l.b16 %v2760
        %v2800 = vunpack.c.l.b16 %v2761
        %v2801 = vpack.c.b16 %v2786, %v2785
        %v2802 = vpack.c.b16 %v2788, %v2787
        %v2803 = vpack.c.b16 %v2790, %v2789
        %v2804 = vpack.c.b16 %v2792, %v2791
        %v2805 = vpack.c.b16 %v2794, %v2793
        %v2806 = vpack.c.b16 %v2796, %v2795
        %v2807 = vpack.c.b16 %v2798, %v2797
        %v2808 = vpack.c.b16 %v2800, %v2799
        %2817 = vmatprep.subr.bf16.mxu0 0
        %2818 = vmatpush1.bf16.msra.mxu0 %v2801
        %2819 = vmatprep.subr.bf16.mxu0 0
        %2820 = vmatpush1.bf16.msra.mxu0 %v2802
        %2821 = vmatprep.subr.bf16.mxu0 0
        %2822 = vmatpush1.bf16.msra.mxu0 %v2803
        %2823 = vmatprep.subr.bf16.mxu0 0
        %2824 = vmatpush1.bf16.msra.mxu0 %v2804
        %2825 = vmatprep.subr.bf16.mxu0 0
        %2826 = vmatpush1.bf16.msra.mxu0 %v2805
        %2827 = vmatprep.subr.bf16.mxu0 0
        %2828 = vmatpush1.bf16.msra.mxu0 %v2806
        %2829 = vmatprep.subr.bf16.mxu0 0
        %2830 = vmatpush1.bf16.msra.mxu0 %v2807
        %2831 = vmatprep.subr.bf16.mxu0 0
        %2832 = vmatpush1.bf16.msra.mxu0 %v2808
        %2833 = vmatprep.subr.bf16.mxu0 0
        %2834 = vmatpush1.bf16.msra.mxu0 0
        %2835 = vmatprep.subr.bf16.mxu0 0
        %2836 = vmatpush1.bf16.msra.mxu0 0
        %2837 = vmatprep.subr.bf16.mxu0 0
        %2838 = vmatpush1.bf16.msra.mxu0 0
        %2839 = vmatprep.subr.bf16.mxu0 0
        %2840 = vmatpush1.bf16.msra.mxu0 0
        %2841 = vmatprep.subr.bf16.mxu0 0
        %2842 = vmatpush1.bf16.msra.mxu0 0
        %2843 = vmatprep.subr.bf16.mxu0 0
        %2844 = vmatpush1.bf16.msra.mxu0 0
        %2845 = vmatprep.subr.bf16.mxu0 0
        %2846 = vmatpush1.bf16.msra.mxu0 0
        %2847 = vmatprep.subr.bf16.mxu0 0
        %2848 = vmatpush1.bf16.msra.mxu0 0
        %2849 = vmatprep.mubr.bf16.mxu0 0
        %2850 = vmatmul.mubr.bf16.gmra.mrb[0].mxu0 %v2742
        %v2851 = vpop.f32.mrb[0].mxu0
        %v2852 = vadd.f32 %v2767, %v2851
        %v2853 = vpop.f32.mrb[0].mxu0
        %v2854 = vpop.f32.mrb[0].mxu0
        %v2855 = vadd.f32 %v2767, %v2854
        %v2856 = vpop.f32.mrb[0].mxu0
        %2857 = vmatprep.mubr.bf16.mxu0 0
        %2858 = vmatmul.mubr.bf16.gmra.mrb[0].mxu0 %v2743
        %v2859 = vpop.f32.mrb[0].mxu0
        %v2860 = vadd.f32 %v2767, %v2859
        %v2861 = vpop.f32.mrb[0].mxu0
        %v2862 = vpop.f32.mrb[0].mxu0
        %v2863 = vadd.f32 %v2767, %v2862
        %v2864 = vpop.f32.mrb[0].mxu0
        %2865 = vmatprep.mubr.bf16.mxu0 0
        %2866 = vmatmul.mubr.bf16.gmra.mrb[0].mxu0 %v2744
        %v2867 = vpop.f32.mrb[0].mxu0
        %v2868 = vadd.f32 %v2767, %v2867
        %v2869 = vpop.f32.mrb[0].mxu0
        %v2870 = vpop.f32.mrb[0].mxu0
        %v2871 = vadd.f32 %v2767, %v2870
        %v2872 = vpop.f32.mrb[0].mxu0
        %2873 = vmatprep.mubr.bf16.mxu0 0
        %2874 = vmatmul.mubr.bf16.gmra.mrb[0].mxu0 %v2745
        %v2875 = vpop.f32.mrb[0].mxu0
        %v2876 = vadd.f32 %v2767, %v2875
        %v2877 = vpop.f32.mrb[0].mxu0
        %v2878 = vpop.f32.mrb[0].mxu0
        %v2879 = vadd.f32 %v2767, %v2878
        %v2880 = vpop.f32.mrb[0].mxu0
        %2881 = vdwg.mxu0
        %v2882 = vld [vmem:[%s298] sm:$0xf]
        %v2883 = vld [vmem:[%s298 + $0x4] sm:$0xf]
        %v2884 = vld [vmem:[%s298 + $0x8] sm:$0xf]
        %v2885 = vld [vmem:[%s298 + $0xc] sm:$0xf]
        %v2886 = vld [vmem:[%s298 + $0x10] sm:$0xf]
        %v2887 = vld [vmem:[%s298 + $0x14] sm:$0xf]
        %v2888 = vld [vmem:[%s298 + $0x18] sm:$0xf]
        %v2889 = vld [vmem:[%s298 + $0x1c] sm:$0xf]
        %v2890 = vunpack.c.l.bf16 %v2882
        %v2891 = vunpack.c.l.bf16 %v2883
        %v2892 = vunpack.c.l.bf16 %v2884
        %v2893 = vunpack.c.l.bf16 %v2885
        %v2894 = vunpack.c.l.bf16 %v2886
        %v2895 = vunpack.c.l.bf16 %v2887
        %v2896 = vunpack.c.l.bf16 %v2888
        %v2897 = vunpack.c.l.bf16 %v2889
        %v2898 = vadd.f32 %v2852, %v2890
        %v2899 = vadd.f32 %v2855, %v2891
        %v2900 = vadd.f32 %v2860, %v2892
        %v2901 = vadd.f32 %v2863, %v2893
        %v2902 = vadd.f32 %v2868, %v2894
        %v2903 = vadd.f32 %v2871, %v2895
        %v2904 = vadd.f32 %v2876, %v2896
        %v2905 = vadd.f32 %v2879, %v2897
        %v2906 = vmax.f32 %v2898, 0.0
        %v2907 = vmax.f32 %v2899, 0.0
        %v2908 = vmax.f32 %v2900, 0.0
        %v2909 = vmax.f32 %v2901, 0.0
        %v2910 = vmax.f32 %v2902, 0.0
        %v2911 = vmax.f32 %v2903, 0.0
        %v2912 = vmax.f32 %v2904, 0.0
        %v2913 = vmax.f32 %v2905, 0.0
        %v2914 = vpack.c.bf16 %v2907, %v2906
        %v2915 = vpack.c.bf16 %v2909, %v2908
        %v2916 = vpack.c.bf16 %v2911, %v2910
        %v2917 = vpack.c.bf16 %v2913, %v2912
        %v2922 = vunpack.c.l.b16 %v2914
        %v2923 = vunpack.c.h.b16 %v2914
        %v2924 = vunpack.c.l.b16 %v2915
        %v2925 = vunpack.c.h.b16 %v2915
        %v2926 = vunpack.c.l.b16 %v2916
        %v2927 = vunpack.c.h.b16 %v2916
        %v2928 = vunpack.c.l.b16 %v2917
        %v2929 = vunpack.c.h.b16 %v2917
        %v2930 = vpack.c.b16 %v2922, %v2922
        %v2931 = vpack.c.b16 %v2923, %v2923
        %v2932 = vpack.c.b16 %v2924, %v2924
        %v2933 = vpack.c.b16 %v2925, %v2925
        %v2934 = vpack.c.b16 %v2926, %v2926
        %v2935 = vpack.c.b16 %v2927, %v2927
        %v2936 = vpack.c.b16 %v2928, %v2928
        %v2937 = vpack.c.b16 %v2929, %v2929
        %2946 = vst [vmem:[%s340] sm:$0xf] %v2930
        %2947 = vst [vmem:[%s340 + $0x4] sm:$0xf] %v2931
        %2948 = vst [vmem:[%s340 + $0x8] sm:$0xf] %v2932
        %2949 = vst [vmem:[%s340 + $0xc] sm:$0xf] %v2933
        %2950 = vst [vmem:[%s340 + $0x10] sm:$0xf] %v2934
        %2951 = vst [vmem:[%s340 + $0x14] sm:$0xf] %v2935
        %2952 = vst [vmem:[%s340 + $0x18] sm:$0xf] %v2936
        %2953 = vst [vmem:[%s340 + $0x1c] sm:$0xf] %v2937
        %s2954 = sand.u32 %s186, 1
        %s2955 = scalar_lea.sflag [#allocation5], %s2954
        %s2956 = sand.u32 %s186, 1
        %s2957 = smul.addr %s2956, 32
        %s2958 = scalar_lea.vmem [#allocation11], %s2957
        // Predicated region
        $region65: #{tpu_custom_call.1} parent=47 // pred_check
          %p2959 = pneg %p196
        $region66: #{tpu_custom_call.1} parent=47 // pred_check_branch
          %2961 = sbr.rel (%p2959) target = $region68
        $region67: #{tpu_custom_call.1} parent=47 // pred_region
          %s2963 = ssub.s32 512, 512
          %2964 = vsyncadd %s2955, %s2963
          %s2965 = smul.addr %s26, 8
          %s2966 = smul.addr %s2965, 64
          %s2967 = scalar_lea.hbm %s7, %s2966
          %s2968 = sshll.u32 %s2958, 4
          %s2969 = int_to_ptr.vmem [resolvable:$true] %s2968
          %2974 = dma.vmem_to_hbm [thread:$0]  %s2969, 512, %s2967, %s2955, 64, 64, 4
        $region68: #{tpu_custom_call.1} parent=47 // pred_fallthru
          _
      $region48: #{tpu_custom_call.1} parent=5 // pred_fallthru
        _
      %p2975 = scmp.le.s32.totalorder 2, %s21
      // Predicated region
      $region69: #{tpu_custom_call.1} parent=5 // pred_check
        %p2976 = pneg %p2975
      $region70: #{tpu_custom_call.1} parent=5 // pred_check_branch
        %2978 = sbr.rel (%p2976) target = $region72
      $region71: #{tpu_custom_call.1} parent=5 // pred_region
        %s2979 = ssub.s32 %s21, 2
        // Predicated region
        $region73: #{tpu_custom_call.1} parent=71 // pred_check
          %p2980 = pneg %p202
        $region74: #{tpu_custom_call.1} parent=71 // pred_check_branch
          %2982 = sbr.rel (%p2980) target = $region76
        $region75: #{tpu_custom_call.1} parent=71 // pred_region
          %s2983 = sand.u32 %s187, 1
          %s2984 = scalar_lea.sflag [#allocation5], %s2983
          %s2985 = sand.u32 %s187, 1
          %s2986 = smul.addr %s2985, 32
          %s2987 = scalar_lea.vmem [#allocation11], %s2986
          %2988 = dma.done %s2984, 512
        $region76: #{tpu_custom_call.1} parent=71 // pred_fallthru
          _
      $region72: #{tpu_custom_call.1} parent=5 // pred_fallthru
        _
    $region6: #{tpu_custom_call.1} parent=1 // loop_footer
      %s25 = sadd.s32 1, %s21
    $region7: #{tpu_custom_call.1} parent=1 // loop_footer_branch
      %20 = sbr.rel target = $region3
    $region8: #{tpu_custom_call.1} parent=1 // loop_exit
      _
    %2989 = vsyncpa [#allocation4], 1
    %s2990 = scalar_lea.sflag [#allocation4], 1
    %2991 = vsyncpa %s2990, 1
    %2992 = vsyncpa [#allocation7], 1
    %2993 = vsyncpa [#allocation10], 1
    %2994 = vsyncpa [#allocation5], 1
    %s2995 = scalar_lea.sflag [#allocation5], 1
    %2996 = vsyncpa %s2995, 1

// kernel: tpu_custom_call.1
$region0: #{tpu_custom_call.1}
  #allocation0 [shape = 'u32[]', space=smem, size = 0x4, offset = 0x4, fixed_abs, tag = 'smem constant byte address 0x4 - core index']
  #allocation1 [shape = 'u32[144,128]{1,0:T(1,128)}', space=vmem, size = 0x12000, scoped, tag = 'internal scratch']
  #allocation2 [shape = 'bf16[1,10,10,128]{3,2,1,0:T(8,128)(2,1)}', space=vmem, size = 0xa000, scoped, tag = 'scratch operand']
  %s0 = inlined_call_operand.hbm [shape: bf16[2,64,128], index: 0, kind: input, shape index: {}]
  %s1 = inlined_call_operand.hbm [shape: bf16[128,128], index: 1, kind: input, shape index: {}]
  %s2 = inlined_call_operand.vmem [shape: f32[1,128], index: 2, kind: input, shape index: {}]
  %s3 = inlined_call_operand.hbm [shape: bf16[9,128,128], index: 3, kind: input, shape index: {}]
  %s4 = inlined_call_operand.vmem [shape: f32[1,128], index: 4, kind: input, shape index: {}]
  %s5 = inlined_call_operand.hbm [shape: bf16[128,128], index: 5, kind: input, shape index: {}]
  %s6 = inlined_call_operand.vmem [shape: f32[1,128], index: 6, kind: input, shape index: {}]
  %s7 = inlined_call_operand.hbm [shape: bf16[2,64,128], index: 7, kind: output, shape index: {}]
  %s8 = sld [smem:[#allocation0]]
  $region77: #{tpu_custom_call.1} parent=0
    _
  %s10 = ssub.s32 1, %s8
  %s11 = scalar_select 0, %s10, %s8
  $region1: #{tpu_custom_call.1} parent=0
    #allocation3 [shape = 'u8[32768]{0}', space=vmem, size = 0x8000, scoped, tag = 'input window, operand 0']
    #allocation4 [shape = 's32[2]{0}', space=sflag, size = 0x8, scoped, tag = 'scoped memory for tpu_custom_call.1']
    #allocation5 [shape = 's32[2]{0}', space=sflag, size = 0x8, scoped, tag = 'scoped memory for tpu_custom_call.1']
    #allocation6 [shape = 'u8[32768]{0}', space=vmem, size = 0x8000, scoped, tag = 'input window, operand 1, single buffered']
    #allocation7 [shape = 's32[1]{0}', space=sflag, size = 0x4, scoped, tag = 'scoped memory for tpu_custom_call.1']
    #allocation8 [shape = 'u8[294912]{0}', space=vmem, size = 0x48000, scoped, tag = 'input window, operand 3, single buffered']
    #allocation9 [shape = 'u8[32768]{0}', space=vmem, size = 0x8000, scoped, tag = 'input window, operand 5, single buffered']
    #allocation10 [shape = 's32[1]{0}', space=sflag, size = 0x4, scoped, tag = 'scoped memory for tpu_custom_call.1']
    #allocation11 [shape = 'u8[32768]{0}', space=vmem, size = 0x8000, scoped, tag = 'output window, operand 0']
    %12 = vsyncpa [#allocation4], 0
    %s13 = scalar_lea.sflag [#allocation4], 1
    %14 = vsyncpa %s13, 0
    %15 = vsyncpa [#allocation7], 0
    %16 = vsyncpa [#allocation10], 0
    %17 = vsyncpa [#allocation5], 0
    %s18 = scalar_lea.sflag [#allocation5], 1
    %19 = vsyncpa %s18, 0
    loop: start=0, step=1, limit=4
    $region2: #{tpu_custom_call.1} parent=1 // loop_pre_header
      _
    $region3: #{tpu_custom_call.1} parent=1 // loop_header
      %s21 = sphi 0, %s25
      %p22 = scmp.ge.s32.totalorder %s21, 4
      %s31 = sphi 0, %s33
      %s34 = sphi 0, %s31
      %s35 = sphi 0, %s34
      %s51 = sphi 0, %s35
      %s55 = sphi 0, %s55
      %s57 = sphi 0, %s55
      %s58 = sphi 0, %s57
      %s72 = sphi 0, %s58
      %s76 = sphi 0, %s76
      %s78 = sphi 0, %s76
      %s79 = sphi 0, %s78
      %s93 = sphi 0, %s79
      %s97 = sphi 0, %s97
      %s99 = sphi 0, %s97
      %s100 = sphi 0, %s99
      %s114 = sphi 0, %s100
      %s118 = sphi 0, %s118
      %s120 = sphi 0, %s118
      %s121 = sphi 0, %s120
      %s135 = sphi 0, %s121
      %s139 = sphi 0, %s139
      %s141 = sphi 0, %s139
      %s142 = sphi 0, %s141
      %s156 = sphi 0, %s142
      %s160 = sphi 0, %s160
      %s162 = sphi 0, %s160
      %s163 = sphi 0, %s162
      %s177 = sphi 0, %s163
      %s183 = sphi 0, %s185
      %s186 = sphi 0, %s183
      %s187 = sphi 0, %s186
      %s203 = sphi 0, %s187
    $region4: #{tpu_custom_call.1} parent=1 // loop_header_branch
      %24 = sbr.rel (%p22) target = $region8
    $region5: #{tpu_custom_call.1} parent=1 // loop_body
      %s26 = ssub.s32 %s21, 1
      %s27 = ssub.s32 %s21, 2
      %s28 = sadd.s32 %s21, 1
      %s29 = ssub.s32 %s21, %s28
      %p30 = scmp.eq.s32.totalorder %s29, 0
      %s32 = sadd.s32 %s31, 1
      %s33 = scalar_select %p30, %s31, %s32
      %p36 = pneg %p30
      %p37 = scmp.eq.s32.totalorder %s21, 1
      %p38 = por %p36, %p37
      %p39 = scmp.ne.s32.totalorder %s31, %s34
      %p40 = scmp.eq.s32.totalorder %s21, 0
      %p41 = por %p39, %p40
      %p42 = scmp.ne.s32.totalorder %s31, %s34
      %p43 = scmp.eq.s32.totalorder %s26, 1
      %p44 = por %p42, %p43
      %p45 = scmp.ne.s32.totalorder %s34, %s35
      %p46 = scmp.eq.s32.totalorder %s26, 0
      %p47 = por %p45, %p46
      %p48 = scmp.ne.s32.totalorder %s34, %s35
      %p49 = scmp.eq.s32.totalorder %s27, 1
      %p50 = por %p48, %p49
      %p52 = scmp.ne.s32.totalorder %s35, %s51
      %p53 = scmp.eq.s32.totalorder %s27, 0
      %p54 = por %p52, %p53
      %s56 = sadd.s32 %s55, 1
      %p59 = scmp.eq.s32.totalorder %s21, 1
      %p60 = scmp.ne.s32.totalorder %s55, %s57
      %p61 = scmp.eq.s32.totalorder %s21, 0
      %p62 = por %p60, %p61
      %p63 = scmp.ne.s32.totalorder %s55, %s57
      %p64 = scmp.eq.s32.totalorder %s26, 1
      %p65 = por %p63, %p64
      %p66 = scmp.ne.s32.totalorder %s57, %s58
      %p67 = scmp.eq.s32.totalorder %s26, 0
      %p68 = por %p66, %p67
      %p69 = scmp.ne.s32.totalorder %s57, %s58
      %p70 = scmp.eq.s32.totalorder %s27, 1
      %p71 = por %p69, %p70
      %p73 = scmp.ne.s32.totalorder %s58, %s72
      %p74 = scmp.eq.s32.totalorder %s27, 0
      %p75 = por %p73, %p74
      %s77 = sadd.s32 %s76, 1
      %p80 = scmp.eq.s32.totalorder %s21, 1
      %p81 = scmp.ne.s32.totalorder %s76, %s78
      %p82 = scmp.eq.s32.totalorder %s21, 0
      %p83 = por %p81, %p82
      %p84 = scmp.ne.s32.totalorder %s76, %s78
      %p85 = scmp.eq.s32.totalorder %s26, 1
      %p86 = por %p84, %p85
      %p87 = scmp.ne.s32.totalorder %s78, %s79
      %p88 = scmp.eq.s32.totalorder %s26, 0
      %p89 = por %p87, %p88
      %p90 = scmp.ne.s32.totalorder %s78, %s79
      %p91 = scmp.eq.s32.totalorder %s27, 1
      %p92 = por %p90, %p91
      %p94 = scmp.ne.s32.totalorder %s79, %s93
      %p95 = scmp.eq.s32.totalorder %s27, 0
      %p96 = por %p94, %p95
      %s98 = sadd.s32 %s97, 1
      %p101 = scmp.eq.s32.totalorder %s21, 1
      %p102 = scmp.ne.s32.totalorder %s97, %s99
      %p103 = scmp.eq.s32.totalorder %s21, 0
      %p104 = por %p102, %p103
      %p105 = scmp.ne.s32.totalorder %s97, %s99
      %p106 = scmp.eq.s32.totalorder %s26, 1
      %p107 = por %p105, %p106
      %p108 = scmp.ne.s32.totalorder %s99, %s100
      %p109 = scmp.eq.s32.totalorder %s26, 0
      %p110 = por %p108, %p109
      %p111 = scmp.ne.s32.totalorder %s99, %s100
      %p112 = scmp.eq.s32.totalorder %s27, 1
      %p113 = por %p111, %p112
      %p115 = scmp.ne.s32.totalorder %s100, %s114
      %p116 = scmp.eq.s32.totalorder %s27, 0
      %p117 = por %p115, %p116
      %s119 = sadd.s32 %s118, 1
      %p122 = scmp.eq.s32.totalorder %s21, 1
      %p123 = scmp.ne.s32.totalorder %s118, %s120
      %p124 = scmp.eq.s32.totalorder %s21, 0
      %p125 = por %p123, %p124
      %p126 = scmp.ne.s32.totalorder %s118, %s120
      %p127 = scmp.eq.s32.totalorder %s26, 1
      %p128 = por %p126, %p127
      %p129 = scmp.ne.s32.totalorder %s120, %s121
      %p130 = scmp.eq.s32.totalorder %s26, 0
      %p131 = por %p129, %p130
      %p132 = scmp.ne.s32.totalorder %s120, %s121
      %p133 = scmp.eq.s32.totalorder %s27, 1
      %p134 = por %p132, %p133
      %p136 = scmp.ne.s32.totalorder %s121, %s135
      %p137 = scmp.eq.s32.totalorder %s27, 0
      %p138 = por %p136, %p137
      %s140 = sadd.s32 %s139, 1
      %p143 = scmp.eq.s32.totalorder %s21, 1
      %p144 = scmp.ne.s32.totalorder %s139, %s141
      %p145 = scmp.eq.s32.totalorder %s21, 0
      %p146 = por %p144, %p145
      %p147 = scmp.ne.s32.totalorder %s139, %s141
      %p148 = scmp.eq.s32.totalorder %s26, 1
      %p149 = por %p147, %p148
      %p150 = scmp.ne.s32.totalorder %s141, %s142
      %p151 = scmp.eq.s32.totalorder %s26, 0
      %p152 = por %p150, %p151
      %p153 = scmp.ne.s32.totalorder %s141, %s142
      %p154 = scmp.eq.s32.totalorder %s27, 1
      %p155 = por %p153, %p154
      %p157 = scmp.ne.s32.totalorder %s142, %s156
      %p158 = scmp.eq.s32.totalorder %s27, 0
      %p159 = por %p157, %p158
      %s161 = sadd.s32 %s160, 1
      %p164 = scmp.eq.s32.totalorder %s21, 1
      %p165 = scmp.ne.s32.totalorder %s160, %s162
      %p166 = scmp.eq.s32.totalorder %s21, 0
      %p167 = por %p165, %p166
      %p168 = scmp.ne.s32.totalorder %s160, %s162
      %p169 = scmp.eq.s32.totalorder %s26, 1
      %p170 = por %p168, %p169
      %p171 = scmp.ne.s32.totalorder %s162, %s163
      %p172 = scmp.eq.s32.totalorder %s26, 0
      %p173 = por %p171, %p172
      %p174 = scmp.ne.s32.totalorder %s162, %s163
      %p175 = scmp.eq.s32.totalorder %s27, 1
      %p176 = por %p174, %p175
      %p178 = scmp.ne.s32.totalorder %s163, %s177
      %p179 = scmp.eq.s32.totalorder %s27, 0
      %p180 = por %p178, %p179
      %s181 = ssub.s32 %s21, %s28
      %p182 = scmp.eq.s32.totalorder %s181, 0
      %s184 = sadd.s32 %s183, 1
      %s185 = scalar_select %p182, %s183, %s184
      %p188 = pneg %p182
      %p189 = scmp.eq.s32.totalorder %s21, 1
      %p190 = por %p188, %p189
      %p191 = scmp.ne.s32.totalorder %s183, %s186
      %p192 = scmp.eq.s32.totalorder %s21, 0
      %p193 = por %p191, %p192
      %p194 = scmp.ne.s32.totalorder %s183, %s186
      %p195 = scmp.eq.s32.totalorder %s26, 1
      %p196 = por %p194, %p195
      %p197 = scmp.ne.s32.totalorder %s186, %s187
      %p198 = scmp.eq.s32.totalorder %s26, 0
      %p199 = por %p197, %p198
      %p200 = scmp.ne.s32.totalorder %s186, %s187
      %p201 = scmp.eq.s32.totalorder %s27, 1
      %p202 = por %p200, %p201
      %p204 = scmp.ne.s32.totalorder %s187, %s203
      %p205 = scmp.eq.s32.totalorder %s27, 0
      %p206 = por %p204, %p205
      %p207 = scmp.le.s32.totalorder 1, %s21
      %p208 = scmp.lt.s32.totalorder %s21, 3
      %p209 = pnand %p207, %p208
      %p210 = pneg %p209
      // Predicated region
      $region9: #{tpu_custom_call.1} parent=5 // pred_check
        _
      $region10: #{tpu_custom_call.1} parent=5 // pred_check_branch
        %212 = sbr.rel (%p209) target = $region12
      $region11: #{tpu_custom_call.1} parent=5 // pred_region
        %s213 = ssub.s32 %s21, 1
        // Predicated region
        $region13: #{tpu_custom_call.1} parent=11 // pred_check
          %p214 = pneg %p68
        $region14: #{tpu_custom_call.1} parent=11 // pred_check_branch
          %216 = sbr.rel (%p214) target = $region16
        $region15: #{tpu_custom_call.1} parent=11 // pred_region
          %s218 = ssub.s32 1024, 1024
          %219 = vsyncadd [#allocation7], %s218
          %s220 = sshll.u32 [#allocation6], 4
          %s221 = int_to_ptr.vmem [resolvable:$true] %s220
          %226 = dma.hbm_to_vmem [thread:$0]  %s1, 1024, %s221, [#allocation7], 64, 64, 4
        $region16: #{tpu_custom_call.1} parent=11 // pred_fallthru
          _
        // Predicated region
        $region17: #{tpu_custom_call.1} parent=11 // pred_check
          %p227 = pneg %p89
        $region18: #{tpu_custom_call.1} parent=11 // pred_check_branch
          %229 = sbr.rel (%p227) target = $region20
        $region19: #{tpu_custom_call.1} parent=11 // pred_region
          _
        $region20: #{tpu_custom_call.1} parent=11 // pred_fallthru
          _
        // Predicated region
        $region21: #{tpu_custom_call.1} parent=11 // pred_check
          %p230 = pneg %p110
        $region22: #{tpu_custom_call.1} parent=11 // pred_check_branch
          %232 = sbr.rel (%p230) target = $region24
        $region23: #{tpu_custom_call.1} parent=11 // pred_region
          %s234 = ssub.s32 9216, 9216
          %235 = vsyncadd [#allocation7], %s234
          %s236 = sshll.u32 [#allocation8], 4
          %s237 = int_to_ptr.vmem [resolvable:$true] %s236
          %242 = dma.hbm_to_vmem [thread:$0]  %s3, 9216, %s237, [#allocation7], 64, 64, 4
        $region24: #{tpu_custom_call.1} parent=11 // pred_fallthru
          _
        // Predicated region
        $region25: #{tpu_custom_call.1} parent=11 // pred_check
          %p243 = pneg %p131
        $region26: #{tpu_custom_call.1} parent=11 // pred_check_branch
          %245 = sbr.rel (%p243) target = $region28
        $region27: #{tpu_custom_call.1} parent=11 // pred_region
          _
        $region28: #{tpu_custom_call.1} parent=11 // pred_fallthru
          _
        // Predicated region
        $region29: #{tpu_custom_call.1} parent=11 // pred_check
          %p246 = pneg %p152
        $region30: #{tpu_custom_call.1} parent=11 // pred_check_branch
          %248 = sbr.rel (%p246) target = $region32
        $region31: #{tpu_custom_call.1} parent=11 // pred_region
          %s250 = ssub.s32 1024, 1024
          %251 = vsyncadd [#allocation10], %s250
          %s252 = sshll.u32 [#allocation9], 4
          %s253 = int_to_ptr.vmem [resolvable:$true] %s252
          %258 = dma.hbm_to_vmem [thread:$0]  %s5, 1024, %s253, [#allocation10], 64, 64, 4
        $region32: #{tpu_custom_call.1} parent=11 // pred_fallthru
          _
        // Predicated region
        $region33: #{tpu_custom_call.1} parent=11 // pred_check
          %p259 = pneg %p173
        $region34: #{tpu_custom_call.1} parent=11 // pred_check_branch
          %261 = sbr.rel (%p259) target = $region36
        $region35: #{tpu_custom_call.1} parent=11 // pred_region
          _
        $region36: #{tpu_custom_call.1} parent=11 // pred_fallthru
          _
      $region12: #{tpu_custom_call.1} parent=5 // pred_fallthru
        _
      %p262 = scmp.lt.s32.totalorder %s21, 2
      // Predicated region
      $region37: #{tpu_custom_call.1} parent=5 // pred_check
        %p263 = pneg %p262
      $region38: #{tpu_custom_call.1} parent=5 // pred_check_branch
        %265 = sbr.rel (%p263) target = $region40
      $region39: #{tpu_custom_call.1} parent=5 // pred_region
        // Predicated region
        $region41: #{tpu_custom_call.1} parent=39 // pred_check
          %p266 = pneg %p41
        $region42: #{tpu_custom_call.1} parent=39 // pred_check_branch
          %268 = sbr.rel (%p266) target = $region44
        $region43: #{tpu_custom_call.1} parent=39 // pred_region
          %s269 = sand.u32 %s31, 1
          %s270 = scalar_lea.sflag [#allocation4], %s269
          %s271 = sand.u32 %s31, 1
          %s272 = smul.addr %s271, 32
          %s273 = scalar_lea.vmem [#allocation3], %s272
          %s275 = ssub.s32 512, 512
          %276 = vsyncadd %s270, %s275
          %s277 = smul.addr %s21, 8
          %s278 = smul.addr %s277, 64
          %s279 = scalar_lea.hbm %s0, %s278
          %s280 = sshll.u32 %s273, 4
          %s281 = int_to_ptr.vmem [resolvable:$true] %s280
          %286 = dma.hbm_to_vmem [thread:$0]  %s279, 512, %s281, %s270, 64, 64, 4
        $region44: #{tpu_custom_call.1} parent=39 // pred_fallthru
          _
      $region40: #{tpu_custom_call.1} parent=5 // pred_fallthru
        _
      %p287 = scmp.le.s32.totalorder 1, %s21
      %p288 = scmp.lt.s32.totalorder %s21, 3
      %p289 = pnand %p287, %p288
      %p290 = pneg %p289
      // Predicated region
      $region45: #{tpu_custom_call.1} parent=5 // pred_check
        _
      $region46: #{tpu_custom_call.1} parent=5 // pred_check_branch
        %292 = sbr.rel (%p289) target = $region48
      $region47: #{tpu_custom_call.1} parent=5 // pred_region
        %s293 = ssub.s32 %s21, 1
        %s294 = sand.u32 %s34, 1
        %s295 = scalar_lea.sflag [#allocation4], %s294
        %s296 = sand.u32 %s34, 1
        %s297 = smul.addr %s296, 32
        %s298 = scalar_lea.vmem [#allocation3], %s297
        // Predicated region
        $region49: #{tpu_custom_call.1} parent=47 // pred_check
          %p299 = pneg %p47
        $region50: #{tpu_custom_call.1} parent=47 // pred_check_branch
          %301 = sbr.rel (%p299) target = $region52
        $region51: #{tpu_custom_call.1} parent=47 // pred_region
          %302 = dma.done %s295, 512
        $region52: #{tpu_custom_call.1} parent=47 // pred_fallthru
          _
        // Predicated region
        $region53: #{tpu_custom_call.1} parent=47 // pred_check
          %p303 = pneg %p68
        $region54: #{tpu_custom_call.1} parent=47 // pred_check_branch
          %305 = sbr.rel (%p303) target = $region56
        $region55: #{tpu_custom_call.1} parent=47 // pred_region
          %306 = dma.done [#allocation7], 1024
        $region56: #{tpu_custom_call.1} parent=47 // pred_fallthru
          _
        // Predicated region
        $region57: #{tpu_custom_call.1} parent=47 // pred_check
          %p307 = pneg %p110
        $region58: #{tpu_custom_call.1} parent=47 // pred_check_branch
          %309 = sbr.rel (%p307) target = $region60
        $region59: #{tpu_custom_call.1} parent=47 // pred_region
          %310 = dma.done [#allocation7], 9216
        $region60: #{tpu_custom_call.1} parent=47 // pred_fallthru
          _
        // Predicated region
        $region61: #{tpu_custom_call.1} parent=47 // pred_check
          %p311 = pneg %p152
        $region62: #{tpu_custom_call.1} parent=47 // pred_check_branch
          %313 = sbr.rel (%p311) target = $region64
        $region63: #{tpu_custom_call.1} parent=47 // pred_region
          %314 = dma.done [#allocation10], 1024
        $region64: #{tpu_custom_call.1} parent=47 // pred_fallthru
          _
        %s315 = sand.u32 %s34, 1
        %s316 = scalar_lea.sflag [#allocation4], %s315
        %s317 = sand.u32 %s34, 1
        %s318 = smul.addr %s317, 32
        %s319 = scalar_lea.vmem [#allocation3], %s318
        %p320 = pneg %p47
        %p321 = pneg %p44
        %p322 = pneg %p68
        %p323 = pneg %p65
        %p324 = pneg %p89
        %p325 = pneg %p86
        %p326 = pneg %p110
        %p327 = pneg %p107
        %p328 = pneg %p131
        %p329 = pneg %p128
        %p330 = pneg %p152
        %p331 = pneg %p149
        %p332 = pneg %p173
        %p333 = pneg %p170
        %p334 = pneg %p199
        %p335 = pneg %p196
        %s336 = sand.u32 %s186, 1
        %s337 = scalar_lea.sflag [#allocation5], %s336
        %s338 = sand.u32 %s186, 1
        %s339 = smul.addr %s338, 32
        %s340 = scalar_lea.vmem [#allocation11], %s339
        %342 = vst [vmem:[#allocation2] sm:$0xf] 0
        %343 = vst [vmem:[#allocation2 + $0x4] sm:$0x1] 0
        %s344 = scalar_lea.vmem [#allocation2], 72
        %345 = vst [vmem:[%s344] sm:$0xf] 0
        %346 = vst [vmem:[%s344 + $0x4] sm:$0x1] 0
        %vm347 = vcmask 1040384
        %vm348 = vsmask.f32 256
        %vm349 = vmand %vm347, %vm348
        %v350 = vld [vmem:[#allocation2] sm:$0x1]
        %v351 = vsel %vm349, 0, %v350
        %352 = vst [vmem:[#allocation2] sm:$0x1] %v351
        %v353 = vld [vmem:[#allocation2 + $0x8] sm:$0x1]
        %v354 = vsel %vm349, 0, %v353
        %355 = vst [vmem:[#allocation2 + $0x8] sm:$0x1] %v354
        %v356 = vld [vmem:[#allocation2 + $0x10] sm:$0x1]
        %v357 = vsel %vm349, 0, %v356
        %358 = vst [vmem:[#allocation2 + $0x10] sm:$0x1] %v357
        %v359 = vld [vmem:[#allocation2 + $0x18] sm:$0x1]
        %v360 = vsel %vm349, 0, %v359
        %361 = vst [vmem:[#allocation2 + $0x18] sm:$0x1] %v360
        %v362 = vld [vmem:[#allocation2 + $0x20] sm:$0x1]
        %v363 = vsel %vm349, 0, %v362
        %364 = vst [vmem:[#allocation2 + $0x20] sm:$0x1] %v363
        %v365 = vld [vmem:[#allocation2 + $0x28] sm:$0x1]
        %v366 = vsel %vm349, 0, %v365
        %367 = vst [vmem:[#allocation2 + $0x28] sm:$0x1] %v366
        %v368 = vld [vmem:[#allocation2 + $0x30] sm:$0x1]
        %v369 = vsel %vm349, 0, %v368
        %370 = vst [vmem:[#allocation2 + $0x30] sm:$0x1] %v369
        %v371 = vld [vmem:[#allocation2 + $0x38] sm:$0x1]
        %v372 = vsel %vm349, 0, %v371
        %373 = vst [vmem:[#allocation2 + $0x38] sm:$0x1] %v372
        %v374 = vld [vmem:[#allocation2 + $0x40] sm:$0x1]
        %v375 = vsel %vm349, 0, %v374
        %376 = vst [vmem:[#allocation2 + $0x40] sm:$0x1] %v375
        %v377 = vld [vmem:[#allocation2 + $0x48] sm:$0x1]
        %v378 = vsel %vm349, 0, %v377
        %379 = vst [vmem:[#allocation2 + $0x48] sm:$0x1] %v378
        %vm380 = vsmask.f32 7938
        %vm381 = vmand %vm347, %vm380
        %v382 = vld [vmem:[#allocation2 + $0x4] sm:$0x1]
        %v383 = vsel %vm381, 0, %v382
        %384 = vst [vmem:[#allocation2 + $0x4] sm:$0x1] %v383
        %v385 = vld [vmem:[#allocation2 + $0xc] sm:$0x1]
        %v386 = vsel %vm381, 0, %v385
        %387 = vst [vmem:[#allocation2 + $0xc] sm:$0x1] %v386
        %v388 = vld [vmem:[#allocation2 + $0x14] sm:$0x1]
        %v389 = vsel %vm381, 0, %v388
        %390 = vst [vmem:[#allocation2 + $0x14] sm:$0x1] %v389
        %v391 = vld [vmem:[#allocation2 + $0x1c] sm:$0x1]
        %v392 = vsel %vm381, 0, %v391
        %393 = vst [vmem:[#allocation2 + $0x1c] sm:$0x1] %v392
        %v394 = vld [vmem:[#allocation2 + $0x24] sm:$0x1]
        %v395 = vsel %vm381, 0, %v394
        %396 = vst [vmem:[#allocation2 + $0x24] sm:$0x1] %v395
        %v397 = vld [vmem:[#allocation2 + $0x2c] sm:$0x1]
        %v398 = vsel %vm381, 0, %v397
        %399 = vst [vmem:[#allocation2 + $0x2c] sm:$0x1] %v398
        %v400 = vld [vmem:[#allocation2 + $0x34] sm:$0x1]
        %v401 = vsel %vm381, 0, %v400
        %402 = vst [vmem:[#allocation2 + $0x34] sm:$0x1] %v401
        %v403 = vld [vmem:[#allocation2 + $0x3c] sm:$0x1]
        %v404 = vsel %vm381, 0, %v403
        %405 = vst [vmem:[#allocation2 + $0x3c] sm:$0x1] %v404
        %v406 = vld [vmem:[#allocation2 + $0x44] sm:$0x1]
        %v407 = vsel %vm381, 0, %v406
        %408 = vst [vmem:[#allocation2 + $0x44] sm:$0x1] %v407
        %v409 = vld [vmem:[#allocation2 + $0x4c] sm:$0x1]
        %v410 = vsel %vm381, 0, %v409
        %411 = vst [vmem:[#allocation2 + $0x4c] sm:$0x1] %v410
        %v412 = vld [vmem:[%s298] sm:$0xf]
        %v413 = vld [vmem:[%s298 + $0x4] sm:$0xf]
        %v414 = vld [vmem:[%s298 + $0x8] sm:$0xf]
        %v415 = vld [vmem:[%s298 + $0xc] sm:$0xf]
        %v416 = vld [vmem:[%s298 + $0x10] sm:$0xf]
        %v417 = vld [vmem:[%s298 + $0x14] sm:$0xf]
        %v418 = vld [vmem:[%s298 + $0x18] sm:$0xf]
        %v419 = vld [vmem:[%s298 + $0x1c] sm:$0xf]
        %v420 = vld [vmem:[#allocation6] sm:$0xf]
        %v421 = vld [vmem:[#allocation6 + $0x4] sm:$0xf]
        %v422 = vld [vmem:[#allocation6 + $0x8] sm:$0xf]
        %v423 = vld [vmem:[#allocation6 + $0xc] sm:$0xf]
        %v424 = vld [vmem:[#allocation6 + $0x10] sm:$0xf]
        %v425 = vld [vmem:[#allocation6 + $0x14] sm:$0xf]
        %v426 = vld [vmem:[#allocation6 + $0x18] sm:$0xf]
        %v427 = vld [vmem:[#allocation6 + $0x1c] sm:$0xf]
        %v428 = vld [vmem:[#allocation6 + $0x20] sm:$0xf]
        %v429 = vld [vmem:[#allocation6 + $0x24] sm:$0xf]
        %v430 = vld [vmem:[#allocation6 + $0x28] sm:$0xf]
        %v431 = vld [vmem:[#allocation6 + $0x2c] sm:$0xf]
        %v432 = vld [vmem:[#allocation6 + $0x30] sm:$0xf]
        %v433 = vld [vmem:[#allocation6 + $0x34] sm:$0xf]
        %v434 = vld [vmem:[#allocation6 + $0x38] sm:$0xf]
        %v435 = vld [vmem:[#allocation6 + $0x3c] sm:$0xf]
        %v436 = vld [vmem:[%s2] sm:$0x1]
        %v438 = vlaneseq
        %v439 = vshrl.u32 %v438, 7
        %v440 = vsub.s32 0, %v439
        %v441 = vrot.slane %v436, %v440
        %v451 = vunpack.c.l.b16 %v412
        %v452 = vunpack.c.l.b16 %v413
        %v453 = vunpack.c.l.b16 %v414
        %v454 = vunpack.c.l.b16 %v415
        %v455 = vunpack.c.l.b16 %v416
        %v456 = vunpack.c.l.b16 %v417
        %v457 = vunpack.c.l.b16 %v418
        %v458 = vunpack.c.l.b16 %v419
        %v459 = vpack.c.b16 %v452, %v451
        %v460 = vpack.c.b16 %v454, %v453
        %v461 = vpack.c.b16 %v456, %v455
        %v462 = vpack.c.b16 %v458, %v457
        %v483 = vunpack.c.l.b16 %v420
        %v484 = vunpack.c.l.b16 %v421
        %v485 = vunpack.c.l.b16 %v422
        %v486 = vunpack.c.l.b16 %v423
        %v487 = vunpack.c.l.b16 %v424
        %v488 = vunpack.c.l.b16 %v425
        %v489 = vunpack.c.l.b16 %v426
        %v490 = vunpack.c.l.b16 %v427
        %v491 = vunpack.c.l.b16 %v428
        %v492 = vunpack.c.l.b16 %v429
        %v493 = vunpack.c.l.b16 %v430
        %v494 = vunpack.c.l.b16 %v431
        %v495 = vunpack.c.l.b16 %v432
        %v496 = vunpack.c.l.b16 %v433
        %v497 = vunpack.c.l.b16 %v434
        %v498 = vunpack.c.l.b16 %v435
        %v499 = vpack.c.b16 %v484, %v483
        %v500 = vpack.c.b16 %v486, %v485
        %v501 = vpack.c.b16 %v488, %v487
        %v502 = vpack.c.b16 %v490, %v489
        %v503 = vpack.c.b16 %v492, %v491
        %v504 = vpack.c.b16 %v494, %v493
        %v505 = vpack.c.b16 %v496, %v495
        %v506 = vpack.c.b16 %v498, %v497
        %515 = vmatprep.subr.bf16.mxu0 0
        %516 = vmatpush1.bf16.msra.mxu0 %v499
        %517 = vmatprep.subr.bf16.mxu0 0
        %518 = vmatpush1.bf16.msra.mxu0 %v500
        %519 = vmatprep.subr.bf16.mxu0 0
        %520 = vmatpush1.bf16.msra.mxu0 %v501
        %521 = vmatprep.subr.bf16.mxu0 0
        %522 = vmatpush1.bf16.msra.mxu0 %v502
        %523 = vmatprep.subr.bf16.mxu0 0
        %524 = vmatpush1.bf16.msra.mxu0 %v503
        %525 = vmatprep.subr.bf16.mxu0 0
        %526 = vmatpush1.bf16.msra.mxu0 %v504
        %527 = vmatprep.subr.bf16.mxu0 0
        %528 = vmatpush1.bf16.msra.mxu0 %v505
        %529 = vmatprep.subr.bf16.mxu0 0
        %530 = vmatpush1.bf16.msra.mxu0 %v506
        %531 = vmatprep.subr.bf16.mxu0 0
        %532 = vmatpush1.bf16.msra.mxu0 0
        %533 = vmatprep.subr.bf16.mxu0 0
        %534 = vmatpush1.bf16.msra.mxu0 0
        %535 = vmatprep.subr.bf16.mxu0 0
        %536 = vmatpush1.bf16.msra.mxu0 0
        %537 = vmatprep.subr.bf16.mxu0 0
        %538 = vmatpush1.bf16.msra.mxu0 0
        %539 = vmatprep.subr.bf16.mxu0 0
        %540 = vmatpush1.bf16.msra.mxu0 0
        %541 = vmatprep.subr.bf16.mxu0 0
        %542 = vmatpush1.bf16.msra.mxu0 0
        %543 = vmatprep.subr.bf16.mxu0 0
        %544 = vmatpush1.bf16.msra.mxu0 0
        %545 = vmatprep.subr.bf16.mxu0 0
        %546 = vmatpush1.bf16.msra.mxu0 0
        %547 = vmatprep.mubr.bf16.mxu0 0
        %548 = vmatmul.mubr.bf16.gmra.mrb[0].mxu0 %v459
        %v549 = vpop.f32.mrb[0].mxu0
        %v550 = vadd.f32 %v441, %v549
        %v551 = vpop.f32.mrb[0].mxu0
        %v552 = vpop.f32.mrb[0].mxu0
        %v553 = vadd.f32 %v441, %v552
        %v554 = vpop.f32.mrb[0].mxu0
        %555 = vmatprep.mubr.bf16.mxu0 0
        %556 = vmatmul.mubr.bf16.gmra.mrb[0].mxu0 %v460
        %v557 = vpop.f32.mrb[0].mxu0
        %v558 = vadd.f32 %v441, %v557
        %v559 = vpop.f32.mrb[0].mxu0
        %v560 = vpop.f32.mrb[0].mxu0
        %v561 = vadd.f32 %v441, %v560
        %v562 = vpop.f32.mrb[0].mxu0
        %563 = vmatprep.mubr.bf16.mxu0 0
        %564 = vmatmul.mubr.bf16.gmra.mrb[0].mxu0 %v461
        %v565 = vpop.f32.mrb[0].mxu0
        %v566 = vadd.f32 %v441, %v565
        %v567 = vpop.f32.mrb[0].mxu0
        %v568 = vpop.f32.mrb[0].mxu0
        %v569 = vadd.f32 %v441, %v568
        %v570 = vpop.f32.mrb[0].mxu0
        %571 = vmatprep.mubr.bf16.mxu0 0
        %572 = vmatmul.mubr.bf16.gmra.mrb[0].mxu0 %v462
        %v573 = vpop.f32.mrb[0].mxu0
        %v574 = vadd.f32 %v441, %v573
        %v575 = vpop.f32.mrb[0].mxu0
        %v576 = vpop.f32.mrb[0].mxu0
        %v577 = vadd.f32 %v441, %v576
        %v578 = vpop.f32.mrb[0].mxu0
        %579 = vdwg.mxu0
        %v580 = vmax.f32 %v550, 0.0
        %v581 = vmax.f32 %v553, 0.0
        %v582 = vmax.f32 %v558, 0.0
        %v583 = vmax.f32 %v561, 0.0
        %v584 = vmax.f32 %v566, 0.0
        %v585 = vmax.f32 %v569, 0.0
        %v586 = vmax.f32 %v574, 0.0
        %v587 = vmax.f32 %v577, 0.0
        %v588 = vpack.c.bf16 %v580, %v580
        %v589 = vpack.c.bf16 %v581, %v581
        %v590 = vpack.c.bf16 %v582, %v582
        %v591 = vpack.c.bf16 %v583, %v583
        %v592 = vpack.c.bf16 %v584, %v584
        %v593 = vpack.c.bf16 %v585, %v585
        %v594 = vpack.c.bf16 %v586, %v586
        %v595 = vpack.c.bf16 %v587, %v587
        %v604 = vunpack.c.l.b16 %v588
        %v605 = vunpack.c.l.b16 %v589
        %v606 = vunpack.c.l.b16 %v590
        %v607 = vunpack.c.l.b16 %v591
        %v608 = vunpack.c.l.b16 %v592
        %v609 = vunpack.c.l.b16 %v593
        %v610 = vunpack.c.l.b16 %v594
        %v611 = vunpack.c.l.b16 %v595
        %v612 = vpack.c.b16 %v604, %v604
        %v613 = vpack.c.b16 %v605, %v605
        %v614 = vpack.c.b16 %v606, %v606
        %v615 = vpack.c.b16 %v607, %v607
        %v616 = vpack.c.b16 %v608, %v608
        %v617 = vpack.c.b16 %v609, %v609
        %v618 = vpack.c.b16 %v610, %v610
        %v619 = vpack.c.b16 %v611, %v611
        %v621 = vshrl.u32 %v612, 16
        %v623 = vrot.slane %v621, 7
        %v624 = vshll.u32 %v612, 16
        %v626 = vor.u32 %v623, %v624
        %v627 = vrot.slane %v623, 4
        %v629 = vshrl.u32 %v613, 16
        %v631 = vrot.slane %v629, 7
        %v632 = vshll.u32 %v613, 16
        %v634 = vor.u32 %v631, %v632
        %v635 = vrot.slane %v631, 4
        %v637 = vshrl.u32 %v614, 16
        %v639 = vrot.slane %v637, 7
        %v640 = vshll.u32 %v614, 16
        %v642 = vor.u32 %v639, %v640
        %v643 = vrot.slane %v639, 4
        %v645 = vshrl.u32 %v615, 16
        %v647 = vrot.slane %v645, 7
        %v648 = vshll.u32 %v615, 16
        %v650 = vor.u32 %v647, %v648
        %v651 = vrot.slane %v647, 4
        %v653 = vshrl.u32 %v616, 16
        %v655 = vrot.slane %v653, 7
        %v656 = vshll.u32 %v616, 16
        %v658 = vor.u32 %v655, %v656
        %v659 = vrot.slane %v655, 4
        %v661 = vshrl.u32 %v617, 16
        %v663 = vrot.slane %v661, 7
        %v664 = vshll.u32 %v617, 16
        %v666 = vor.u32 %v663, %v664
        %v667 = vrot.slane %v663, 4
        %v669 = vshrl.u32 %v618, 16
        %v671 = vrot.slane %v669, 7
        %v672 = vshll.u32 %v618, 16
        %v674 = vor.u32 %v671, %v672
        %v675 = vrot.slane %v671, 4
        %v677 = vshrl.u32 %v619, 16
        %v679 = vrot.slane %v677, 7
        %v680 = vshll.u32 %v619, 16
        %v682 = vor.u32 %v679, %v680
        %v683 = vrot.slane %v679, 4
        %s700 = scalar_lea.vmem [#allocation2], 8
        %vm701 = vcmask 1043456
        %vm702 = vmand %vm701, %vm380
        %v703 = vld [vmem:[%s700] sm:$0xf]
        %v704 = vsel %vm702, %v626, %v703
        %705 = vst [vmem:[%s700] sm:$0xf] %v704
        %v706 = vld [vmem:[%s700 + $0x4] sm:$0x1]
        %v707 = vsel %vm349, %v627, %v706
        %708 = vst [vmem:[%s700 + $0x4] sm:$0x1] %v707
        %v709 = vld [vmem:[%s700 + $0x8] sm:$0xf]
        %v710 = vsel %vm702, %v634, %v709
        %711 = vst [vmem:[%s700 + $0x8] sm:$0xf] %v710
        %v712 = vld [vmem:[%s700 + $0xc] sm:$0x1]
        %v713 = vsel %vm349, %v635, %v712
        %714 = vst [vmem:[%s700 + $0xc] sm:$0x1] %v713
        %v715 = vld [vmem:[%s700 + $0x10] sm:$0xf]
        %v716 = vsel %vm702, %v642, %v715
        %717 = vst [vmem:[%s700 + $0x10] sm:$0xf] %v716
        %v718 = vld [vmem:[%s700 + $0x14] sm:$0x1]
        %v719 = vsel %vm349, %v643, %v718
        %720 = vst [vmem:[%s700 + $0x14] sm:$0x1] %v719
        %v721 = vld [vmem:[%s700 + $0x18] sm:$0xf]
        %v722 = vsel %vm702, %v650, %v721
        %723 = vst [vmem:[%s700 + $0x18] sm:$0xf] %v722
        %v724 = vld [vmem:[%s700 + $0x1c] sm:$0x1]
        %v725 = vsel %vm349, %v651, %v724
        %726 = vst [vmem:[%s700 + $0x1c] sm:$0x1] %v725
        %v727 = vld [vmem:[%s700 + $0x20] sm:$0xf]
        %v728 = vsel %vm702, %v658, %v727
        %729 = vst [vmem:[%s700 + $0x20] sm:$0xf] %v728
        %v730 = vld [vmem:[%s700 + $0x24] sm:$0x1]
        %v731 = vsel %vm349, %v659, %v730
        %732 = vst [vmem:[%s700 + $0x24] sm:$0x1] %v731
        %v733 = vld [vmem:[%s700 + $0x28] sm:$0xf]
        %v734 = vsel %vm702, %v666, %v733
        %735 = vst [vmem:[%s700 + $0x28] sm:$0xf] %v734
        %v736 = vld [vmem:[%s700 + $0x2c] sm:$0x1]
        %v737 = vsel %vm349, %v667, %v736
        %738 = vst [vmem:[%s700 + $0x2c] sm:$0x1] %v737
        %v739 = vld [vmem:[%s700 + $0x30] sm:$0xf]
        %v740 = vsel %vm702, %v674, %v739
        %741 = vst [vmem:[%s700 + $0x30] sm:$0xf] %v740
        %v742 = vld [vmem:[%s700 + $0x34] sm:$0x1]
        %v743 = vsel %vm349, %v675, %v742
        %744 = vst [vmem:[%s700 + $0x34] sm:$0x1] %v743
        %v745 = vld [vmem:[%s700 + $0x38] sm:$0xf]
        %v746 = vsel %vm702, %v682, %v745
        %747 = vst [vmem:[%s700 + $0x38] sm:$0xf] %v746
        %v748 = vld [vmem:[%s700 + $0x3c] sm:$0x1]
        %v749 = vsel %vm349, %v683, %v748
        %750 = vst [vmem:[%s700 + $0x3c] sm:$0x1] %v749
        %v751 = vld [vmem:[#allocation2] sm:$0xf]
        %v752 = vld [vmem:[#allocation2 + $0x8] sm:$0xf]
        %v753 = vld [vmem:[#allocation2 + $0x10] sm:$0xf]
        %v754 = vld [vmem:[#allocation2 + $0x18] sm:$0xf]
        %v755 = vld [vmem:[#allocation2 + $0x20] sm:$0xf]
        %v756 = vld [vmem:[#allocation2 + $0x28] sm:$0xf]
        %v757 = vld [vmem:[#allocation2 + $0x30] sm:$0xf]
        %v758 = vld [vmem:[#allocation2 + $0x38] sm:$0xf]
        %v759 = vld [vmem:[#allocation8] sm:$0xf]
        %v760 = vld [vmem:[#allocation8 + $0x4] sm:$0xf]
        %v761 = vld [vmem:[#allocation8 + $0x8] sm:$0xf]
        %v762 = vld [vmem:[#allocation8 + $0xc] sm:$0xf]
        %v763 = vld [vmem:[#allocation8 + $0x10] sm:$0xf]
        %v764 = vld [vmem:[#allocation8 + $0x14] sm:$0xf]
        %v765 = vld [vmem:[#allocation8 + $0x18] sm:$0xf]
        %v766 = vld [vmem:[#allocation8 + $0x1c] sm:$0xf]
        %v767 = vld [vmem:[#allocation8 + $0x20] sm:$0xf]
        %v768 = vld [vmem:[#allocation8 + $0x24] sm:$0xf]
        %v769 = vld [vmem:[#allocation8 + $0x28] sm:$0xf]
        %v770 = vld [vmem:[#allocation8 + $0x2c] sm:$0xf]
        %v771 = vld [vmem:[#allocation8 + $0x30] sm:$0xf]
        %v772 = vld [vmem:[#allocation8 + $0x34] sm:$0xf]
        %v773 = vld [vmem:[#allocation8 + $0x38] sm:$0xf]
        %v774 = vld [vmem:[#allocation8 + $0x3c] sm:$0xf]
        %v775 = vld [vmem:[#allocation2 + $0x4] sm:$0x1]
        %v776 = vld [vmem:[#allocation2 + $0xc] sm:$0x1]
        %v777 = vld [vmem:[#allocation2 + $0x14] sm:$0x1]
        %v778 = vld [vmem:[#allocation2 + $0x1c] sm:$0x1]
        %v779 = vld [vmem:[#allocation2 + $0x24] sm:$0x1]
        %v780 = vld [vmem:[#allocation2 + $0x2c] sm:$0x1]
        %v781 = vld [vmem:[#allocation2 + $0x34] sm:$0x1]
        %v782 = vld [vmem:[#allocation2 + $0x3c] sm:$0x1]
        %vm783 = vsmask.f32 3328
        %vm784 = vsmask.f32 7440
        %vm785 = vmor %vm783, %vm784
        %v787 = vshrl.u32 %v751, 16
        %v789 = vrot.slane %v787, 4
        %v790 = vshll.u32 %v751, 16
        %v792 = vrot.slane %v790, 5
        %v793 = vor.u32 %v789, %v792
        %v794 = vrot.slane %v793, 4
        %v796 = vshll.u32 %v775, 16
        %v798 = vrot.slane %v796, 5
        %v799 = vsel %vm785, %v794, %v798
        %v801 = vshrl.u32 %v752, 16
        %v803 = vrot.slane %v801, 4
        %v804 = vshll.u32 %v752, 16
        %v806 = vrot.slane %v804, 5
        %v807 = vor.u32 %v803, %v806
        %v808 = vrot.slane %v807, 4
        %v810 = vshll.u32 %v776, 16
        %v812 = vrot.slane %v810, 5
        %v813 = vsel %vm785, %v808, %v812
        %v815 = vshrl.u32 %v753, 16
        %v817 = vrot.slane %v815, 4
        %v818 = vshll.u32 %v753, 16
        %v820 = vrot.slane %v818, 5
        %v821 = vor.u32 %v817, %v820
        %v822 = vrot.slane %v821, 4
        %v824 = vshll.u32 %v777, 16
        %v826 = vrot.slane %v824, 5
        %v827 = vsel %vm785, %v822, %v826
        %v829 = vshrl.u32 %v754, 16
        %v831 = vrot.slane %v829, 4
        %v832 = vshll.u32 %v754, 16
        %v834 = vrot.slane %v832, 5
        %v835 = vor.u32 %v831, %v834
        %v836 = vrot.slane %v835, 4
        %v838 = vshll.u32 %v778, 16
        %v840 = vrot.slane %v838, 5
        %v841 = vsel %vm785, %v836, %v840
        %v843 = vshrl.u32 %v755, 16
        %v845 = vrot.slane %v843, 4
        %v846 = vshll.u32 %v755, 16
        %v848 = vrot.slane %v846, 5
        %v849 = vor.u32 %v845, %v848
        %v850 = vrot.slane %v849, 4
        %v852 = vshll.u32 %v779, 16
        %v854 = vrot.slane %v852, 5
        %v855 = vsel %vm785, %v850, %v854
        %v857 = vshrl.u32 %v756, 16
        %v859 = vrot.slane %v857, 4
        %v860 = vshll.u32 %v756, 16
        %v862 = vrot.slane %v860, 5
        %v863 = vor.u32 %v859, %v862
        %v864 = vrot.slane %v863, 4
        %v866 = vshll.u32 %v780, 16
        %v868 = vrot.slane %v866, 5
        %v869 = vsel %vm785, %v864, %v868
        %v871 = vshrl.u32 %v757, 16
        %v873 = vrot.slane %v871, 4
        %v874 = vshll.u32 %v757, 16
        %v876 = vrot.slane %v874, 5
        %v877 = vor.u32 %v873, %v876
        %v878 = vrot.slane %v877, 4
        %v880 = vshll.u32 %v781, 16
        %v882 = vrot.slane %v880, 5
        %v883 = vsel %vm785, %v878, %v882
        %v885 = vshrl.u32 %v758, 16
        %v887 = vrot.slane %v885, 4
        %v888 = vshll.u32 %v758, 16
        %v890 = vrot.slane %v888, 5
        %v891 = vor.u32 %v887, %v890
        %v892 = vrot.slane %v891, 4
        %v894 = vshll.u32 %v782, 16
        %v896 = vrot.slane %v894, 5
        %v897 = vsel %vm785, %v892, %v896
        %s898 = scalar_lea.vmem [#allocation8], 64
        %v899 = vld [vmem:[%s898] sm:$0xf]
        %v900 = vld [vmem:[%s898 + $0x4] sm:$0xf]
        %v901 = vld [vmem:[%s898 + $0x8] sm:$0xf]
        %v902 = vld [vmem:[%s898 + $0xc] sm:$0xf]
        %v903 = vld [vmem:[%s898 + $0x10] sm:$0xf]
        %v904 = vld [vmem:[%s898 + $0x14] sm:$0xf]
        %v905 = vld [vmem:[%s898 + $0x18] sm:$0xf]
        %v906 = vld [vmem:[%s898 + $0x1c] sm:$0xf]
        %v907 = vld [vmem:[%s898 + $0x20] sm:$0xf]
        %v908 = vld [vmem:[%s898 + $0x24] sm:$0xf]
        %v909 = vld [vmem:[%s898 + $0x28] sm:$0xf]
        %v910 = vld [vmem:[%s898 + $0x2c] sm:$0xf]
        %v911 = vld [vmem:[%s898 + $0x30] sm:$0xf]
        %v912 = vld [vmem:[%s898 + $0x34] sm:$0xf]
        %v913 = vld [vmem:[%s898 + $0x38] sm:$0xf]
        %v914 = vld [vmem:[%s898 + $0x3c] sm:$0xf]
        %v915 = vunpack.c.l.b16 %v799
        %v916 = vunpack.c.l.b16 %v813
        %v917 = vunpack.c.l.b16 %v827
        %v918 = vunpack.c.l.b16 %v841
        %v919 = vunpack.c.l.b16 %v855
        %v920 = vunpack.c.l.b16 %v869
        %v921 = vunpack.c.l.b16 %v883
        %v922 = vunpack.c.l.b16 %v897
        %v923 = vpack.c.b16 %v916, %v915
        %v924 = vpack.c.b16 %v918, %v917
        %v925 = vpack.c.b16 %v920, %v919
        %v926 = vpack.c.b16 %v922, %v921
        %v947 = vunpack.c.l.b16 %v899
        %v948 = vunpack.c.l.b16 %v900
        %v949 = vunpack.c.l.b16 %v901
        %v950 = vunpack.c.l.b16 %v902
        %v951 = vunpack.c.l.b16 %v903
        %v952 = vunpack.c.l.b16 %v904
        %v953 = vunpack.c.l.b16 %v905
        %v954 = vunpack.c.l.b16 %v906
        %v955 = vunpack.c.l.b16 %v907
        %v956 = vunpack.c.l.b16 %v908
        %v957 = vunpack.c.l.b16 %v909
        %v958 = vunpack.c.l.b16 %v910
        %v959 = vunpack.c.l.b16 %v911
        %v960 = vunpack.c.l.b16 %v912
        %v961 = vunpack.c.l.b16 %v913
        %v962 = vunpack.c.l.b16 %v914
        %v963 = vpack.c.b16 %v948, %v947
        %v964 = vpack.c.b16 %v950, %v949
        %v965 = vpack.c.b16 %v952, %v951
        %v966 = vpack.c.b16 %v954, %v953
        %v967 = vpack.c.b16 %v956, %v955
        %v968 = vpack.c.b16 %v958, %v957
        %v969 = vpack.c.b16 %v960, %v959
        %v970 = vpack.c.b16 %v962, %v961
        %979 = vmatprep.subr.bf16.mxu0 0
        %980 = vmatpush1.bf16.msra.mxu0 %v963
        %981 = vmatprep.subr.bf16.mxu0 0
        %982 = vmatpush1.bf16.msra.mxu0 %v964
        %983 = vmatprep.subr.bf16.mxu0 0
        %984 = vmatpush1.bf16.msra.mxu0 %v965
        %985 = vmatprep.subr.bf16.mxu0 0
        %986 = vmatpush1.bf16.msra.mxu0 %v966
        %987 = vmatprep.subr.bf16.mxu0 0
        %988 = vmatpush1.bf16.msra.mxu0 %v967
        %989 = vmatprep.subr.bf16.mxu0 0
        %990 = vmatpush1.bf16.msra.mxu0 %v968
        %991 = vmatprep.subr.bf16.mxu0 0
        %992 = vmatpush1.bf16.msra.mxu0 %v969
        %993 = vmatprep.subr.bf16.mxu0 0
        %994 = vmatpush1.bf16.msra.mxu0 %v970
        %995 = vmatprep.subr.bf16.mxu0 0
        %996 = vmatpush1.bf16.msra.mxu0 0
        %997 = vmatprep.subr.bf16.mxu0 0
        %998 = vmatpush1.bf16.msra.mxu0 0
        %999 = vmatprep.subr.bf16.mxu0 0
        %1000 = vmatpush1.bf16.msra.mxu0 0
        %1001 = vmatprep.subr.bf16.mxu0 0
        %1002 = vmatpush1.bf16.msra.mxu0 0
        %1003 = vmatprep.subr.bf16.mxu0 0
        %1004 = vmatpush1.bf16.msra.mxu0 0
        %1005 = vmatprep.subr.bf16.mxu0 0
        %1006 = vmatpush1.bf16.msra.mxu0 0
        %1007 = vmatprep.subr.bf16.mxu0 0
        %1008 = vmatpush1.bf16.msra.mxu0 0
        %1009 = vmatprep.subr.bf16.mxu0 0
        %1010 = vmatpush1.bf16.msra.mxu0 0
        %1011 = vmatprep.mubr.bf16.mxu0 0
        %1012 = vmatmul.mubr.bf16.gmra.mrb[0].mxu0 %v923
        %v1013 = vpop.f32.mrb[0].mxu0
        %v1014 = vadd.f32 0.0, %v1013
        %v1015 = vpop.f32.mrb[0].mxu0
        %v1016 = vpop.f32.mrb[0].mxu0
        %v1017 = vadd.f32 0.0, %v1016
        %v1018 = vpop.f32.mrb[0].mxu0
        %1019 = vmatprep.mubr.bf16.mxu0 0
        %1020 = vmatmul.mubr.bf16.gmra.mrb[0].mxu0 %v924
        %v1021 = vpop.f32.mrb[0].mxu0
        %v1022 = vadd.f32 0.0, %v1021
        %v1023 = vpop.f32.mrb[0].mxu0
        %v1024 = vpop.f32.mrb[0].mxu0
        %v1025 = vadd.f32 0.0, %v1024
        %v1026 = vpop.f32.mrb[0].mxu0
        %1027 = vmatprep.mubr.bf16.mxu0 0
        %1028 = vmatmul.mubr.bf16.gmra.mrb[0].mxu0 %v925
        %v1029 = vpop.f32.mrb[0].mxu0
        %v1030 = vadd.f32 0.0, %v1029
        %v1031 = vpop.f32.mrb[0].mxu0
        %v1032 = vpop.f32.mrb[0].mxu0
        %v1033 = vadd.f32 0.0, %v1032
        %v1034 = vpop.f32.mrb[0].mxu0
        %1035 = vmatprep.mubr.bf16.mxu0 0
        %1036 = vmatmul.mubr.bf16.gmra.mrb[0].mxu0 %v926
        %v1037 = vpop.f32.mrb[0].mxu0
        %v1038 = vadd.f32 0.0, %v1037
        %v1039 = vpop.f32.mrb[0].mxu0
        %v1040 = vpop.f32.mrb[0].mxu0
        %v1041 = vadd.f32 0.0, %v1040
        %v1042 = vpop.f32.mrb[0].mxu0
        %1043 = vdwg.mxu0
        %v1052 = vunpack.c.l.b16 %v751
        %v1053 = vunpack.c.l.b16 %v752
        %v1054 = vunpack.c.l.b16 %v753
        %v1055 = vunpack.c.l.b16 %v754
        %v1056 = vunpack.c.l.b16 %v755
        %v1057 = vunpack.c.l.b16 %v756
        %v1058 = vunpack.c.l.b16 %v757
        %v1059 = vunpack.c.l.b16 %v758
        %v1060 = vpack.c.b16 %v1053, %v1052
        %v1061 = vpack.c.b16 %v1055, %v1054
        %v1062 = vpack.c.b16 %v1057, %v1056
        %v1063 = vpack.c.b16 %v1059, %v1058
        %v1084 = vunpack.c.l.b16 %v759
        %v1085 = vunpack.c.l.b16 %v760
        %v1086 = vunpack.c.l.b16 %v761
        %v1087 = vunpack.c.l.b16 %v762
        %v1088 = vunpack.c.l.b16 %v763
        %v1089 = vunpack.c.l.b16 %v764
        %v1090 = vunpack.c.l.b16 %v765
        %v1091 = vunpack.c.l.b16 %v766
        %v1092 = vunpack.c.l.b16 %v767
        %v1093 = vunpack.c.l.b16 %v768
        %v1094 = vunpack.c.l.b16 %v769
        %v1095 = vunpack.c.l.b16 %v770
        %v1096 = vunpack.c.l.b16 %v771
        %v1097 = vunpack.c.l.b16 %v772
        %v1098 = vunpack.c.l.b16 %v773
        %v1099 = vunpack.c.l.b16 %v774
        %v1100 = vpack.c.b16 %v1085, %v1084
        %v1101 = vpack.c.b16 %v1087, %v1086
        %v1102 = vpack.c.b16 %v1089, %v1088
        %v1103 = vpack.c.b16 %v1091, %v1090
        %v1104 = vpack.c.b16 %v1093, %v1092
        %v1105 = vpack.c.b16 %v1095, %v1094
        %v1106 = vpack.c.b16 %v1097, %v1096
        %v1107 = vpack.c.b16 %v1099, %v1098
        %1116 = vmatprep.subr.bf16.mxu0 0
        %1117 = vmatpush1.bf16.msra.mxu0 %v1100
        %1118 = vmatprep.subr.bf16.mxu0 0
        %1119 = vmatpush1.bf16.msra.mxu0 %v1101
        %1120 = vmatprep.subr.bf16.mxu0 0
        %1121 = vmatpush1.bf16.msra.mxu0 %v1102
        %1122 = vmatprep.subr.bf16.mxu0 0
        %1123 = vmatpush1.bf16.msra.mxu0 %v1103
        %1124 = vmatprep.subr.bf16.mxu0 0
        %1125 = vmatpush1.bf16.msra.mxu0 %v1104
        %1126 = vmatprep.subr.bf16.mxu0 0
        %1127 = vmatpush1.bf16.msra.mxu0 %v1105
        %1128 = vmatprep.subr.bf16.mxu0 0
        %1129 = vmatpush1.bf16.msra.mxu0 %v1106
        %1130 = vmatprep.subr.bf16.mxu0 0
        %1131 = vmatpush1.bf16.msra.mxu0 %v1107
        %1132 = vmatprep.subr.bf16.mxu0 0
        %1133 = vmatpush1.bf16.msra.mxu0 0
        %1134 = vmatprep.subr.bf16.mxu0 0
        %1135 = vmatpush1.bf16.msra.mxu0 0
        %1136 = vmatprep.subr.bf16.mxu0 0
        %1137 = vmatpush1.bf16.msra.mxu0 0
        %1138 = vmatprep.subr.bf16.mxu0 0
        %1139 = vmatpush1.bf16.msra.mxu0 0
        %1140 = vmatprep.subr.bf16.mxu0 0
        %1141 = vmatpush1.bf16.msra.mxu0 0
        %1142 = vmatprep.subr.bf16.mxu0 0
        %1143 = vmatpush1.bf16.msra.mxu0 0
        %1144 = vmatprep.subr.bf16.mxu0 0
        %1145 = vmatpush1.bf16.msra.mxu0 0
        %1146 = vmatprep.subr.bf16.mxu0 0
        %1147 = vmatpush1.bf16.msra.mxu0 0
        %1148 = vmatprep.mubr.bf16.mxu0 0
        %1149 = vmatmul.mubr.bf16.gmra.mrb[0].mxu0 %v1060
        %v1150 = vpop.f32.mrb[0].mxu0
        %v1151 = vadd.f32 %v1014, %v1150
        %v1152 = vpop.f32.mrb[0].mxu0
        %v1153 = vpop.f32.mrb[0].mxu0
        %v1154 = vadd.f32 %v1017, %v1153
        %v1155 = vpop.f32.mrb[0].mxu0
        %1156 = vmatprep.mubr.bf16.mxu0 0
        %1157 = vmatmul.mubr.bf16.gmra.mrb[0].mxu0 %v1061
        %v1158 = vpop.f32.mrb[0].mxu0
        %v1159 = vadd.f32 %v1022, %v1158
        %v1160 = vpop.f32.mrb[0].mxu0
        %v1161 = vpop.f32.mrb[0].mxu0
        %v1162 = vadd.f32 %v1025, %v1161
        %v1163 = vpop.f32.mrb[0].mxu0
        %1164 = vmatprep.mubr.bf16.mxu0 0
        %1165 = vmatmul.mubr.bf16.gmra.mrb[0].mxu0 %v1062
        %v1166 = vpop.f32.mrb[0].mxu0
        %v1167 = vadd.f32 %v1030, %v1166
        %v1168 = vpop.f32.mrb[0].mxu0
        %v1169 = vpop.f32.mrb[0].mxu0
        %v1170 = vadd.f32 %v1033, %v1169
        %v1171 = vpop.f32.mrb[0].mxu0
        %1172 = vmatprep.mubr.bf16.mxu0 0
        %1173 = vmatmul.mubr.bf16.gmra.mrb[0].mxu0 %v1063
        %v1174 = vpop.f32.mrb[0].mxu0
        %v1175 = vadd.f32 %v1038, %v1174
        %v1176 = vpop.f32.mrb[0].mxu0
        %v1177 = vpop.f32.mrb[0].mxu0
        %v1178 = vadd.f32 %v1041, %v1177
        %v1179 = vpop.f32.mrb[0].mxu0
        %1180 = vdwg.mxu0
        %v1181 = vld [vmem:[#allocation2] sm:$0xe]
        %v1182 = vld [vmem:[#allocation2 + $0x8] sm:$0xe]
        %v1183 = vld [vmem:[#allocation2 + $0x10] sm:$0xe]
        %v1184 = vld [vmem:[#allocation2 + $0x18] sm:$0xe]
        %v1185 = vld [vmem:[#allocation2 + $0x20] sm:$0xe]
        %v1186 = vld [vmem:[#allocation2 + $0x28] sm:$0xe]
        %v1187 = vld [vmem:[#allocation2 + $0x30] sm:$0xe]
        %v1188 = vld [vmem:[#allocation2 + $0x38] sm:$0xe]
        %vm1205 = vcmask 1042432
        %vm1206 = vcmask 1046532
        %vm1207 = vmor %vm1205, %vm1206
        %v1208 = vrot.slane %v1181, 5
        %v1209 = vrot.slane %v1208, 4
        %v1210 = vrot.slane %v775, 5
        %v1211 = vsel %vm1207, %v1209, %v1210
        %v1212 = vrot.slane %v1182, 5
        %v1213 = vrot.slane %v1212, 4
        %v1214 = vrot.slane %v776, 5
        %v1215 = vsel %vm1207, %v1213, %v1214
        %v1216 = vrot.slane %v1183, 5
        %v1217 = vrot.slane %v1216, 4
        %v1218 = vrot.slane %v777, 5
        %v1219 = vsel %vm1207, %v1217, %v1218
        %v1220 = vrot.slane %v1184, 5
        %v1221 = vrot.slane %v1220, 4
        %v1222 = vrot.slane %v778, 5
        %v1223 = vsel %vm1207, %v1221, %v1222
        %v1224 = vrot.slane %v1185, 5
        %v1225 = vrot.slane %v1224, 4
        %v1226 = vrot.slane %v779, 5
        %v1227 = vsel %vm1207, %v1225, %v1226
        %v1228 = vrot.slane %v1186, 5
        %v1229 = vrot.slane %v1228, 4
        %v1230 = vrot.slane %v780, 5
        %v1231 = vsel %vm1207, %v1229, %v1230
        %v1232 = vrot.slane %v1187, 5
        %v1233 = vrot.slane %v1232, 4
        %v1234 = vrot.slane %v781, 5
        %v1235 = vsel %vm1207, %v1233, %v1234
        %v1236 = vrot.slane %v1188, 5
        %v1237 = vrot.slane %v1236, 4
        %v1238 = vrot.slane %v782, 5
        %v1239 = vsel %vm1207, %v1237, %v1238
        %s1240 = scalar_lea.vmem [#allocation8], 128
        %v1241 = vld [vmem:[%s1240] sm:$0xf]
        %v1242 = vld [vmem:[%s1240 + $0x4] sm:$0xf]
        %v1243 = vld [vmem:[%s1240 + $0x8] sm:$0xf]
        %v1244 = vld [vmem:[%s1240 + $0xc] sm:$0xf]
        %v1245 = vld [vmem:[%s1240 + $0x10] sm:$0xf]
        %v1246 = vld [vmem:[%s1240 + $0x14] sm:$0xf]
        %v1247 = vld [vmem:[%s1240 + $0x18] sm:$0xf]
        %v1248 = vld [vmem:[%s1240 + $0x1c] sm:$0xf]
        %v1249 = vld [vmem:[%s1240 + $0x20] sm:$0xf]
        %v1250 = vld [vmem:[%s1240 + $0x24] sm:$0xf]
        %v1251 = vld [vmem:[%s1240 + $0x28] sm:$0xf]
        %v1252 = vld [vmem:[%s1240 + $0x2c] sm:$0xf]
        %v1253 = vld [vmem:[%s1240 + $0x30] sm:$0xf]
        %v1254 = vld [vmem:[%s1240 + $0x34] sm:$0xf]
        %v1255 = vld [vmem:[%s1240 + $0x38] sm:$0xf]
        %v1256 = vld [vmem:[%s1240 + $0x3c] sm:$0xf]
        %v1257 = vunpack.c.l.b16 %v1211
        %v1258 = vunpack.c.l.b16 %v1215
        %v1259 = vunpack.c.l.b16 %v1219
        %v1260 = vunpack.c.l.b16 %v1223
        %v1261 = vunpack.c.l.b16 %v1227
        %v1262 = vunpack.c.l.b16 %v1231
        %v1263 = vunpack.c.l.b16 %v1235
        %v1264 = vunpack.c.l.b16 %v1239
        %v1265 = vpack.c.b16 %v1258, %v1257
        %v1266 = vpack.c.b16 %v1260, %v1259
        %v1267 = vpack.c.b16 %v1262, %v1261
        %v1268 = vpack.c.b16 %v1264, %v1263
        %v1289 = vunpack.c.l.b16 %v1241
        %v1290 = vunpack.c.l.b16 %v1242
        %v1291 = vunpack.c.l.b16 %v1243
        %v1292 = vunpack.c.l.b16 %v1244
        %v1293 = vunpack.c.l.b16 %v1245
        %v1294 = vunpack.c.l.b16 %v1246
        %v1295 = vunpack.c.l.b16 %v1247
        %v1296 = vunpack.c.l.b16 %v1248
        %v1297 = vunpack.c.l.b16 %v1249
        %v1298 = vunpack.c.l.b16 %v1250
        %v1299 = vunpack.c.l.b16 %v1251
        %v1300 = vunpack.c.l.b16 %v1252
        %v1301 = vunpack.c.l.b16 %v1253
        %v1302 = vunpack.c.l.b16 %v1254
        %v1303 = vunpack.c.l.b16 %v1255
        %v1304 = vunpack.c.l.b16 %v1256
        %v1305 = vpack.c.b16 %v1290, %v1289
        %v1306 = vpack.c.b16 %v1292, %v1291
        %v1307 = vpack.c.b16 %v1294, %v1293
        %v1308 = vpack.c.b16 %v1296, %v1295
        %v1309 = vpack.c.b16 %v1298, %v1297
        %v1310 = vpack.c.b16 %v1300, %v1299
        %v1311 = vpack.c.b16 %v1302, %v1301
        %v1312 = vpack.c.b16 %v1304, %v1303
        %1321 = vmatprep.subr.bf16.mxu0 0
        %1322 = vmatpush1.bf16.msra.mxu0 %v1305
        %1323 = vmatprep.subr.bf16.mxu0 0
        %1324 = vmatpush1.bf16.msra.mxu0 %v1306
        %1325 = vmatprep.subr.bf16.mxu0 0
        %1326 = vmatpush1.bf16.msra.mxu0 %v1307
        %1327 = vmatprep.subr.bf16.mxu0 0
        %1328 = vmatpush1.bf16.msra.mxu0 %v1308
        %1329 = vmatprep.subr.bf16.mxu0 0
        %1330 = vmatpush1.bf16.msra.mxu0 %v1309
        %1331 = vmatprep.subr.bf16.mxu0 0
        %1332 = vmatpush1.bf16.msra.mxu0 %v1310
        %1333 = vmatprep.subr.bf16.mxu0 0
        %1334 = vmatpush1.bf16.msra.mxu0 %v1311
        %1335 = vmatprep.subr.bf16.mxu0 0
        %1336 = vmatpush1.bf16.msra.mxu0 %v1312
        %1337 = vmatprep.subr.bf16.mxu0 0
        %1338 = vmatpush1.bf16.msra.mxu0 0
        %1339 = vmatprep.subr.bf16.mxu0 0
        %1340 = vmatpush1.bf16.msra.mxu0 0
        %1341 = vmatprep.subr.bf16.mxu0 0
        %1342 = vmatpush1.bf16.msra.mxu0 0
        %1343 = vmatprep.subr.bf16.mxu0 0
        %1344 = vmatpush1.bf16.msra.mxu0 0
        %1345 = vmatprep.subr.bf16.mxu0 0
        %1346 = vmatpush1.bf16.msra.mxu0 0
        %1347 = vmatprep.subr.bf16.mxu0 0
        %1348 = vmatpush1.bf16.msra.mxu0 0
        %1349 = vmatprep.subr.bf16.mxu0 0
        %1350 = vmatpush1.bf16.msra.mxu0 0
        %1351 = vmatprep.subr.bf16.mxu0 0
        %1352 = vmatpush1.bf16.msra.mxu0 0
        %1353 = vmatprep.mubr.bf16.mxu0 0
        %1354 = vmatmul.mubr.bf16.gmra.mrb[0].mxu0 %v1265
        %v1355 = vpop.f32.mrb[0].mxu0
        %v1356 = vadd.f32 0.0, %v1355
        %v1357 = vpop.f32.mrb[0].mxu0
        %v1358 = vpop.f32.mrb[0].mxu0
        %v1359 = vadd.f32 0.0, %v1358
        %v1360 = vpop.f32.mrb[0].mxu0
        %1361 = vmatprep.mubr.bf16.mxu0 0
        %1362 = vmatmul.mubr.bf16.gmra.mrb[0].mxu0 %v1266
        %v1363 = vpop.f32.mrb[0].mxu0
        %v1364 = vadd.f32 0.0, %v1363
        %v1365 = vpop.f32.mrb[0].mxu0
        %v1366 = vpop.f32.mrb[0].mxu0
        %v1367 = vadd.f32 0.0, %v1366
        %v1368 = vpop.f32.mrb[0].mxu0
        %1369 = vmatprep.mubr.bf16.mxu0 0
        %1370 = vmatmul.mubr.bf16.gmra.mrb[0].mxu0 %v1267
        %v1371 = vpop.f32.mrb[0].mxu0
        %v1372 = vadd.f32 0.0, %v1371
        %v1373 = vpop.f32.mrb[0].mxu0
        %v1374 = vpop.f32.mrb[0].mxu0
        %v1375 = vadd.f32 0.0, %v1374
        %v1376 = vpop.f32.mrb[0].mxu0
        %1377 = vmatprep.mubr.bf16.mxu0 0
        %1378 = vmatmul.mubr.bf16.gmra.mrb[0].mxu0 %v1268
        %v1379 = vpop.f32.mrb[0].mxu0
        %v1380 = vadd.f32 0.0, %v1379
        %v1381 = vpop.f32.mrb[0].mxu0
        %v1382 = vpop.f32.mrb[0].mxu0
        %v1383 = vadd.f32 0.0, %v1382
        %v1384 = vpop.f32.mrb[0].mxu0
        %1385 = vdwg.mxu0
        %v1386 = vadd.f32 %v1151, %v1356
        %v1387 = vadd.f32 %v1154, %v1359
        %v1388 = vadd.f32 %v1159, %v1364
        %v1389 = vadd.f32 %v1162, %v1367
        %v1390 = vadd.f32 %v1167, %v1372
        %v1391 = vadd.f32 %v1170, %v1375
        %v1392 = vadd.f32 %v1175, %v1380
        %v1393 = vadd.f32 %v1178, %v1383
        %v1394 = vld [vmem:[%s700] sm:$0xf]
        %v1395 = vld [vmem:[%s700 + $0x8] sm:$0xf]
        %v1396 = vld [vmem:[%s700 + $0x10] sm:$0xf]
        %v1397 = vld [vmem:[%s700 + $0x18] sm:$0xf]
        %v1398 = vld [vmem:[%s700 + $0x20] sm:$0xf]
        %v1399 = vld [vmem:[%s700 + $0x28] sm:$0xf]
        %v1400 = vld [vmem:[%s700 + $0x30] sm:$0xf]
        %v1401 = vld [vmem:[%s700 + $0x38] sm:$0xf]
        %s1402 = scalar_lea.vmem [#allocation8], 192
        %v1403 = vld [vmem:[%s1402] sm:$0xf]
        %v1404 = vld [vmem:[%s1402 + $0x4] sm:$0xf]
        %v1405 = vld [vmem:[%s1402 + $0x8] sm:$0xf]
        %v1406 = vld [vmem:[%s1402 + $0xc] sm:$0xf]
        %v1407 = vld [vmem:[%s1402 + $0x10] sm:$0xf]
        %v1408 = vld [vmem:[%s1402 + $0x14] sm:$0xf]
        %v1409 = vld [vmem:[%s1402 + $0x18] sm:$0xf]
        %v1410 = vld [vmem:[%s1402 + $0x1c] sm:$0xf]
        %v1411 = vld [vmem:[%s1402 + $0x20] sm:$0xf]
        %v1412 = vld [vmem:[%s1402 + $0x24] sm:$0xf]
        %v1413 = vld [vmem:[%s1402 + $0x28] sm:$0xf]
        %v1414 = vld [vmem:[%s1402 + $0x2c] sm:$0xf]
        %v1415 = vld [vmem:[%s1402 + $0x30] sm:$0xf]
        %v1416 = vld [vmem:[%s1402 + $0x34] sm:$0xf]
        %v1417 = vld [vmem:[%s1402 + $0x38] sm:$0xf]
        %v1418 = vld [vmem:[%s1402 + $0x3c] sm:$0xf]
        %v1427 = vunpack.c.l.b16 %v1394
        %v1428 = vunpack.c.l.b16 %v1395
        %v1429 = vunpack.c.l.b16 %v1396
        %v1430 = vunpack.c.l.b16 %v1397
        %v1431 = vunpack.c.l.b16 %v1398
        %v1432 = vunpack.c.l.b16 %v1399
        %v1433 = vunpack.c.l.b16 %v1400
        %v1434 = vunpack.c.l.b16 %v1401
        %v1435 = vpack.c.b16 %v1428, %v1427
        %v1436 = vpack.c.b16 %v1430, %v1429
        %v1437 = vpack.c.b16 %v1432, %v1431
        %v1438 = vpack.c.b16 %v1434, %v1433
        %v1459 = vunpack.c.l.b16 %v1403
        %v1460 = vunpack.c.l.b16 %v1404
        %v1461 = vunpack.c.l.b16 %v1405
        %v1462 = vunpack.c.l.b16 %v1406
        %v1463 = vunpack.c.l.b16 %v1407
        %v1464 = vunpack.c.l.b16 %v1408
        %v1465 = vunpack.c.l.b16 %v1409
        %v1466 = vunpack.c.l.b16 %v1410
        %v1467 = vunpack.c.l.b16 %v1411
        %v1468 = vunpack.c.l.b16 %v1412
        %v1469 = vunpack.c.l.b16 %v1413
        %v1470 = vunpack.c.l.b16 %v1414
        %v1471 = vunpack.c.l.b16 %v1415
        %v1472 = vunpack.c.l.b16 %v1416
        %v1473 = vunpack.c.l.b16 %v1417
        %v1474 = vunpack.c.l.b16 %v1418
        %v1475 = vpack.c.b16 %v1460, %v1459
        %v1476 = vpack.c.b16 %v1462, %v1461
        %v1477 = vpack.c.b16 %v1464, %v1463
        %v1478 = vpack.c.b16 %v1466, %v1465
        %v1479 = vpack.c.b16 %v1468, %v1467
        %v1480 = vpack.c.b16 %v1470, %v1469
        %v1481 = vpack.c.b16 %v1472, %v1471
        %v1482 = vpack.c.b16 %v1474, %v1473
        %1491 = vmatprep.subr.bf16.mxu0 0
        %1492 = vmatpush1.bf16.msra.mxu0 %v1475
        %1493 = vmatprep.subr.bf16.mxu0 0
        %1494 = vmatpush1.bf16.msra.mxu0 %v1476
        %1495 = vmatprep.subr.bf16.mxu0 0
        %1496 = vmatpush1.bf16.msra.mxu0 %v1477
        %1497 = vmatprep.subr.bf16.mxu0 0
        %1498 = vmatpush1.bf16.msra.mxu0 %v1478
        %1499 = vmatprep.subr.bf16.mxu0 0
        %1500 = vmatpush1.bf16.msra.mxu0 %v1479
        %1501 = vmatprep.subr.bf16.mxu0 0
        %1502 = vmatpush1.bf16.msra.mxu0 %v1480
        %1503 = vmatprep.subr.bf16.mxu0 0
        %1504 = vmatpush1.bf16.msra.mxu0 %v1481
        %1505 = vmatprep.subr.bf16.mxu0 0
        %1506 = vmatpush1.bf16.msra.mxu0 %v1482
        %1507 = vmatprep.subr.bf16.mxu0 0
        %1508 = vmatpush1.bf16.msra.mxu0 0
        %1509 = vmatprep.subr.bf16.mxu0 0
        %1510 = vmatpush1.bf16.msra.mxu0 0
        %1511 = vmatprep.subr.bf16.mxu0 0
        %1512 = vmatpush1.bf16.msra.mxu0 0
        %1513 = vmatprep.subr.bf16.mxu0 0
        %1514 = vmatpush1.bf16.msra.mxu0 0
        %1515 = vmatprep.subr.bf16.mxu0 0
        %1516 = vmatpush1.bf16.msra.mxu0 0
        %1517 = vmatprep.subr.bf16.mxu0 0
        %1518 = vmatpush1.bf16.msra.mxu0 0
        %1519 = vmatprep.subr.bf16.mxu0 0
        %1520 = vmatpush1.bf16.msra.mxu0 0
        %1521 = vmatprep.subr.bf16.mxu0 0
        %1522 = vmatpush1.bf16.msra.mxu0 0
        %1523 = vmatprep.mubr.bf16.mxu0 0
        %1524 = vmatmul.mubr.bf16.gmra.mrb[0].mxu0 %v1435
        %v1525 = vpop.f32.mrb[0].mxu0
        %v1526 = vadd.f32 0.0, %v1525
        %v1527 = vpop.f32.mrb[0].mxu0
        %v1528 = vpop.f32.mrb[0].mxu0
        %v1529 = vadd.f32 0.0, %v1528
        %v1530 = vpop.f32.mrb[0].mxu0
        %1531 = vmatprep.mubr.bf16.mxu0 0
        %1532 = vmatmul.mubr.bf16.gmra.mrb[0].mxu0 %v1436
        %v1533 = vpop.f32.mrb[0].mxu0
        %v1534 = vadd.f32 0.0, %v1533
        %v1535 = vpop.f32.mrb[0].mxu0
        %v1536 = vpop.f32.mrb[0].mxu0
        %v1537 = vadd.f32 0.0, %v1536
        %v1538 = vpop.f32.mrb[0].mxu0
        %1539 = vmatprep.mubr.bf16.mxu0 0
        %1540 = vmatmul.mubr.bf16.gmra.mrb[0].mxu0 %v1437
        %v1541 = vpop.f32.mrb[0].mxu0
        %v1542 = vadd.f32 0.0, %v1541
        %v1543 = vpop.f32.mrb[0].mxu0
        %v1544 = vpop.f32.mrb[0].mxu0
        %v1545 = vadd.f32 0.0, %v1544
        %v1546 = vpop.f32.mrb[0].mxu0
        %1547 = vmatprep.mubr.bf16.mxu0 0
        %1548 = vmatmul.mubr.bf16.gmra.mrb[0].mxu0 %v1438
        %v1549 = vpop.f32.mrb[0].mxu0
        %v1550 = vadd.f32 0.0, %v1549
        %v1551 = vpop.f32.mrb[0].mxu0
        %v1552 = vpop.f32.mrb[0].mxu0
        %v1553 = vadd.f32 0.0, %v1552
        %v1554 = vpop.f32.mrb[0].mxu0
        %1555 = vdwg.mxu0
        %v1556 = vadd.f32 %v1386, %v1526
        %v1557 = vadd.f32 %v1387, %v1529
        %v1558 = vadd.f32 %v1388, %v1534
        %v1559 = vadd.f32 %v1389, %v1537
        %v1560 = vadd.f32 %v1390, %v1542
        %v1561 = vadd.f32 %v1391, %v1545
        %v1562 = vadd.f32 %v1392, %v1550
        %v1563 = vadd.f32 %v1393, %v1553
        %v1564 = vld [vmem:[%s700] sm:$0xf]
        %v1565 = vld [vmem:[%s700 + $0x4] sm:$0x1]
        %v1566 = vld [vmem:[%s700 + $0x8] sm:$0xf]
        %v1567 = vld [vmem:[%s700 + $0xc] sm:$0x1]
        %v1568 = vld [vmem:[%s700 + $0x10] sm:$0xf]
        %v1569 = vld [vmem:[%s700 + $0x14] sm:$0x1]
        %v1570 = vld [vmem:[%s700 + $0x18] sm:$0xf]
        %v1571 = vld [vmem:[%s700 + $0x1c] sm:$0x1]
        %v1572 = vld [vmem:[%s700 + $0x20] sm:$0xf]
        %v1573 = vld [vmem:[%s700 + $0x24] sm:$0x1]
        %v1574 = vld [vmem:[%s700 + $0x28] sm:$0xf]
        %v1575 = vld [vmem:[%s700 + $0x2c] sm:$0x1]
        %v1576 = vld [vmem:[%s700 + $0x30] sm:$0xf]
        %v1577 = vld [vmem:[%s700 + $0x34] sm:$0x1]
        %v1578 = vld [vmem:[%s700 + $0x38] sm:$0xf]
        %v1579 = vld [vmem:[%s700 + $0x3c] sm:$0x1]
        %v1581 = vshrl.u32 %v1564, 16
        %v1583 = vrot.slane %v1581, 4
        %v1584 = vshll.u32 %v1564, 16
        %v1586 = vrot.slane %v1584, 5
        %v1587 = vor.u32 %v1583, %v1586
        %v1588 = vrot.slane %v1587, 4
        %v1590 = vshll.u32 %v1565, 16
        %v1592 = vrot.slane %v1590, 5
        %v1593 = vsel %vm785, %v1588, %v1592
        %v1595 = vshrl.u32 %v1566, 16
        %v1597 = vrot.slane %v1595, 4
        %v1598 = vshll.u32 %v1566, 16
        %v1600 = vrot.slane %v1598, 5
        %v1601 = vor.u32 %v1597, %v1600
        %v1602 = vrot.slane %v1601, 4
        %v1604 = vshll.u32 %v1567, 16
        %v1606 = vrot.slane %v1604, 5
        %v1607 = vsel %vm785, %v1602, %v1606
        %v1609 = vshrl.u32 %v1568, 16
        %v1611 = vrot.slane %v1609, 4
        %v1612 = vshll.u32 %v1568, 16
        %v1614 = vrot.slane %v1612, 5
        %v1615 = vor.u32 %v1611, %v1614
        %v1616 = vrot.slane %v1615, 4
        %v1618 = vshll.u32 %v1569, 16
        %v1620 = vrot.slane %v1618, 5
        %v1621 = vsel %vm785, %v1616, %v1620
        %v1623 = vshrl.u32 %v1570, 16
        %v1625 = vrot.slane %v1623, 4
        %v1626 = vshll.u32 %v1570, 16
        %v1628 = vrot.slane %v1626, 5
        %v1629 = vor.u32 %v1625, %v1628
        %v1630 = vrot.slane %v1629, 4
        %v1632 = vshll.u32 %v1571, 16
        %v1634 = vrot.slane %v1632, 5
        %v1635 = vsel %vm785, %v1630, %v1634
        %v1637 = vshrl.u32 %v1572, 16
        %v1639 = vrot.slane %v1637, 4
        %v1640 = vshll.u32 %v1572, 16
        %v1642 = vrot.slane %v1640, 5
        %v1643 = vor.u32 %v1639, %v1642
        %v1644 = vrot.slane %v1643, 4
        %v1646 = vshll.u32 %v1573, 16
        %v1648 = vrot.slane %v1646, 5
        %v1649 = vsel %vm785, %v1644, %v1648
        %v1651 = vshrl.u32 %v1574, 16
        %v1653 = vrot.slane %v1651, 4
        %v1654 = vshll.u32 %v1574, 16
        %v1656 = vrot.slane %v1654, 5
        %v1657 = vor.u32 %v1653, %v1656
        %v1658 = vrot.slane %v1657, 4
        %v1660 = vshll.u32 %v1575, 16
        %v1662 = vrot.slane %v1660, 5
        %v1663 = vsel %vm785, %v1658, %v1662
        %v1665 = vshrl.u32 %v1576, 16
        %v1667 = vrot.slane %v1665, 4
        %v1668 = vshll.u32 %v1576, 16
        %v1670 = vrot.slane %v1668, 5
        %v1671 = vor.u32 %v1667, %v1670
        %v1672 = vrot.slane %v1671, 4
        %v1674 = vshll.u32 %v1577, 16
        %v1676 = vrot.slane %v1674, 5
        %v1677 = vsel %vm785, %v1672, %v1676
        %v1679 = vshrl.u32 %v1578, 16
        %v1681 = vrot.slane %v1679, 4
        %v1682 = vshll.u32 %v1578, 16
        %v1684 = vrot.slane %v1682, 5
        %v1685 = vor.u32 %v1681, %v1684
        %v1686 = vrot.slane %v1685, 4
        %v1688 = vshll.u32 %v1579, 16
        %v1690 = vrot.slane %v1688, 5
        %v1691 = vsel %vm785, %v1686, %v1690
        %s1692 = scalar_lea.vmem [#allocation8], 256
        %v1693 = vld [vmem:[%s1692] sm:$0xf]
        %v1694 = vld [vmem:[%s1692 + $0x4] sm:$0xf]
        %v1695 = vld [vmem:[%s1692 + $0x8] sm:$0xf]
        %v1696 = vld [vmem:[%s1692 + $0xc] sm:$0xf]
        %v1697 = vld [vmem:[%s1692 + $0x10] sm:$0xf]
        %v1698 = vld [vmem:[%s1692 + $0x14] sm:$0xf]
        %v1699 = vld [vmem:[%s1692 + $0x18] sm:$0xf]
        %v1700 = vld [vmem:[%s1692 + $0x1c] sm:$0xf]
        %v1701 = vld [vmem:[%s1692 + $0x20] sm:$0xf]
        %v1702 = vld [vmem:[%s1692 + $0x24] sm:$0xf]
        %v1703 = vld [vmem:[%s1692 + $0x28] sm:$0xf]
        %v1704 = vld [vmem:[%s1692 + $0x2c] sm:$0xf]
        %v1705 = vld [vmem:[%s1692 + $0x30] sm:$0xf]
        %v1706 = vld [vmem:[%s1692 + $0x34] sm:$0xf]
        %v1707 = vld [vmem:[%s1692 + $0x38] sm:$0xf]
        %v1708 = vld [vmem:[%s1692 + $0x3c] sm:$0xf]
        %v1709 = vunpack.c.l.b16 %v1593
        %v1710 = vunpack.c.l.b16 %v1607
        %v1711 = vunpack.c.l.b16 %v1621
        %v1712 = vunpack.c.l.b16 %v1635
        %v1713 = vunpack.c.l.b16 %v1649
        %v1714 = vunpack.c.l.b16 %v1663
        %v1715 = vunpack.c.l.b16 %v1677
        %v1716 = vunpack.c.l.b16 %v1691
        %v1717 = vpack.c.b16 %v1710, %v1709
        %v1718 = vpack.c.b16 %v1712, %v1711
        %v1719 = vpack.c.b16 %v1714, %v1713
        %v1720 = vpack.c.b16 %v1716, %v1715
        %v1741 = vunpack.c.l.b16 %v1693
        %v1742 = vunpack.c.l.b16 %v1694
        %v1743 = vunpack.c.l.b16 %v1695
        %v1744 = vunpack.c.l.b16 %v1696
        %v1745 = vunpack.c.l.b16 %v1697
        %v1746 = vunpack.c.l.b16 %v1698
        %v1747 = vunpack.c.l.b16 %v1699
        %v1748 = vunpack.c.l.b16 %v1700
        %v1749 = vunpack.c.l.b16 %v1701
        %v1750 = vunpack.c.l.b16 %v1702
        %v1751 = vunpack.c.l.b16 %v1703
        %v1752 = vunpack.c.l.b16 %v1704
        %v1753 = vunpack.c.l.b16 %v1705
        %v1754 = vunpack.c.l.b16 %v1706
        %v1755 = vunpack.c.l.b16 %v1707
        %v1756 = vunpack.c.l.b16 %v1708
        %v1757 = vpack.c.b16 %v1742, %v1741
        %v1758 = vpack.c.b16 %v1744, %v1743
        %v1759 = vpack.c.b16 %v1746, %v1745
        %v1760 = vpack.c.b16 %v1748, %v1747
        %v1761 = vpack.c.b16 %v1750, %v1749
        %v1762 = vpack.c.b16 %v1752, %v1751
        %v1763 = vpack.c.b16 %v1754, %v1753
        %v1764 = vpack.c.b16 %v1756, %v1755
        %1773 = vmatprep.subr.bf16.mxu0 0
        %1774 = vmatpush1.bf16.msra.mxu0 %v1757
        %1775 = vmatprep.subr.bf16.mxu0 0
        %1776 = vmatpush1.bf16.msra.mxu0 %v1758
        %1777 = vmatprep.subr.bf16.mxu0 0
        %1778 = vmatpush1.bf16.msra.mxu0 %v1759
        %1779 = vmatprep.subr.bf16.mxu0 0
        %1780 = vmatpush1.bf16.msra.mxu0 %v1760
        %1781 = vmatprep.subr.bf16.mxu0 0
        %1782 = vmatpush1.bf16.msra.mxu0 %v1761
        %1783 = vmatprep.subr.bf16.mxu0 0
        %1784 = vmatpush1.bf16.msra.mxu0 %v1762
        %1785 = vmatprep.subr.bf16.mxu0 0
        %1786 = vmatpush1.bf16.msra.mxu0 %v1763
        %1787 = vmatprep.subr.bf16.mxu0 0
        %1788 = vmatpush1.bf16.msra.mxu0 %v1764
        %1789 = vmatprep.subr.bf16.mxu0 0
        %1790 = vmatpush1.bf16.msra.mxu0 0
        %1791 = vmatprep.subr.bf16.mxu0 0
        %1792 = vmatpush1.bf16.msra.mxu0 0
        %1793 = vmatprep.subr.bf16.mxu0 0
        %1794 = vmatpush1.bf16.msra.mxu0 0
        %1795 = vmatprep.subr.bf16.mxu0 0
        %1796 = vmatpush1.bf16.msra.mxu0 0
        %1797 = vmatprep.subr.bf16.mxu0 0
        %1798 = vmatpush1.bf16.msra.mxu0 0
        %1799 = vmatprep.subr.bf16.mxu0 0
        %1800 = vmatpush1.bf16.msra.mxu0 0
        %1801 = vmatprep.subr.bf16.mxu0 0
        %1802 = vmatpush1.bf16.msra.mxu0 0
        %1803 = vmatprep.subr.bf16.mxu0 0
        %1804 = vmatpush1.bf16.msra.mxu0 0
        %1805 = vmatprep.mubr.bf16.mxu0 0
        %1806 = vmatmul.mubr.bf16.gmra.mrb[0].mxu0 %v1717
        %v1807 = vpop.f32.mrb[0].mxu0
        %v1808 = vadd.f32 0.0, %v1807
        %v1809 = vpop.f32.mrb[0].mxu0
        %v1810 = vpop.f32.mrb[0].mxu0
        %v1811 = vadd.f32 0.0, %v1810
        %v1812 = vpop.f32.mrb[0].mxu0
        %1813 = vmatprep.mubr.bf16.mxu0 0
        %1814 = vmatmul.mubr.bf16.gmra.mrb[0].mxu0 %v1718
        %v1815 = vpop.f32.mrb[0].mxu0
        %v1816 = vadd.f32 0.0, %v1815
        %v1817 = vpop.f32.mrb[0].mxu0
        %v1818 = vpop.f32.mrb[0].mxu0
        %v1819 = vadd.f32 0.0, %v1818
        %v1820 = vpop.f32.mrb[0].mxu0
        %1821 = vmatprep.mubr.bf16.mxu0 0
        %1822 = vmatmul.mubr.bf16.gmra.mrb[0].mxu0 %v1719
        %v1823 = vpop.f32.mrb[0].mxu0
        %v1824 = vadd.f32 0.0, %v1823
        %v1825 = vpop.f32.mrb[0].mxu0
        %v1826 = vpop.f32.mrb[0].mxu0
        %v1827 = vadd.f32 0.0, %v1826
        %v1828 = vpop.f32.mrb[0].mxu0
        %1829 = vmatprep.mubr.bf16.mxu0 0
        %1830 = vmatmul.mubr.bf16.gmra.mrb[0].mxu0 %v1720
        %v1831 = vpop.f32.mrb[0].mxu0
        %v1832 = vadd.f32 0.0, %v1831
        %v1833 = vpop.f32.mrb[0].mxu0
        %v1834 = vpop.f32.mrb[0].mxu0
        %v1835 = vadd.f32 0.0, %v1834
        %v1836 = vpop.f32.mrb[0].mxu0
        %1837 = vdwg.mxu0
        %v1838 = vadd.f32 %v1556, %v1808
        %v1839 = vadd.f32 %v1557, %v1811
        %v1840 = vadd.f32 %v1558, %v1816
        %v1841 = vadd.f32 %v1559, %v1819
        %v1842 = vadd.f32 %v1560, %v1824
        %v1843 = vadd.f32 %v1561, %v1827
        %v1844 = vadd.f32 %v1562, %v1832
        %v1845 = vadd.f32 %v1563, %v1835
        %v1846 = vld [vmem:[%s700] sm:$0xe]
        %v1847 = vld [vmem:[%s700 + $0x8] sm:$0xe]
        %v1848 = vld [vmem:[%s700 + $0x10] sm:$0xe]
        %v1849 = vld [vmem:[%s700 + $0x18] sm:$0xe]
        %v1850 = vld [vmem:[%s700 + $0x20] sm:$0xe]
        %v1851 = vld [vmem:[%s700 + $0x28] sm:$0xe]
        %v1852 = vld [vmem:[%s700 + $0x30] sm:$0xe]
        %v1853 = vld [vmem:[%s700 + $0x38] sm:$0xe]
        %v1870 = vrot.slane %v1846, 5
        %v1871 = vrot.slane %v1870, 4
        %v1872 = vrot.slane %v1565, 5
        %v1873 = vsel %vm1207, %v1871, %v1872
        %v1874 = vrot.slane %v1847, 5
        %v1875 = vrot.slane %v1874, 4
        %v1876 = vrot.slane %v1567, 5
        %v1877 = vsel %vm1207, %v1875, %v1876
        %v1878 = vrot.slane %v1848, 5
        %v1879 = vrot.slane %v1878, 4
        %v1880 = vrot.slane %v1569, 5
        %v1881 = vsel %vm1207, %v1879, %v1880
        %v1882 = vrot.slane %v1849, 5
        %v1883 = vrot.slane %v1882, 4
        %v1884 = vrot.slane %v1571, 5
        %v1885 = vsel %vm1207, %v1883, %v1884
        %v1886 = vrot.slane %v1850, 5
        %v1887 = vrot.slane %v1886, 4
        %v1888 = vrot.slane %v1573, 5
        %v1889 = vsel %vm1207, %v1887, %v1888
        %v1890 = vrot.slane %v1851, 5
        %v1891 = vrot.slane %v1890, 4
        %v1892 = vrot.slane %v1575, 5
        %v1893 = vsel %vm1207, %v1891, %v1892
        %v1894 = vrot.slane %v1852, 5
        %v1895 = vrot.slane %v1894, 4
        %v1896 = vrot.slane %v1577, 5
        %v1897 = vsel %vm1207, %v1895, %v1896
        %v1898 = vrot.slane %v1853, 5
        %v1899 = vrot.slane %v1898, 4
        %v1900 = vrot.slane %v1579, 5
        %v1901 = vsel %vm1207, %v1899, %v1900
        %s1902 = scalar_lea.vmem [#allocation8], 320
        %v1903 = vld [vmem:[%s1902] sm:$0xf]
        %v1904 = vld [vmem:[%s1902 + $0x4] sm:$0xf]
        %v1905 = vld [vmem:[%s1902 + $0x8] sm:$0xf]
        %v1906 = vld [vmem:[%s1902 + $0xc] sm:$0xf]
        %v1907 = vld [vmem:[%s1902 + $0x10] sm:$0xf]
        %v1908 = vld [vmem:[%s1902 + $0x14] sm:$0xf]
        %v1909 = vld [vmem:[%s1902 + $0x18] sm:$0xf]
        %v1910 = vld [vmem:[%s1902 + $0x1c] sm:$0xf]
        %v1911 = vld [vmem:[%s1902 + $0x20] sm:$0xf]
        %v1912 = vld [vmem:[%s1902 + $0x24] sm:$0xf]
        %v1913 = vld [vmem:[%s1902 + $0x28] sm:$0xf]
        %v1914 = vld [vmem:[%s1902 + $0x2c] sm:$0xf]
        %v1915 = vld [vmem:[%s1902 + $0x30] sm:$0xf]
        %v1916 = vld [vmem:[%s1902 + $0x34] sm:$0xf]
        %v1917 = vld [vmem:[%s1902 + $0x38] sm:$0xf]
        %v1918 = vld [vmem:[%s1902 + $0x3c] sm:$0xf]
        %v1919 = vunpack.c.l.b16 %v1873
        %v1920 = vunpack.c.l.b16 %v1877
        %v1921 = vunpack.c.l.b16 %v1881
        %v1922 = vunpack.c.l.b16 %v1885
        %v1923 = vunpack.c.l.b16 %v1889
        %v1924 = vunpack.c.l.b16 %v1893
        %v1925 = vunpack.c.l.b16 %v1897
        %v1926 = vunpack.c.l.b16 %v1901
        %v1927 = vpack.c.b16 %v1920, %v1919
        %v1928 = vpack.c.b16 %v1922, %v1921
        %v1929 = vpack.c.b16 %v1924, %v1923
        %v1930 = vpack.c.b16 %v1926, %v1925
        %v1951 = vunpack.c.l.b16 %v1903
        %v1952 = vunpack.c.l.b16 %v1904
        %v1953 = vunpack.c.l.b16 %v1905
        %v1954 = vunpack.c.l.b16 %v1906
        %v1955 = vunpack.c.l.b16 %v1907
        %v1956 = vunpack.c.l.b16 %v1908
        %v1957 = vunpack.c.l.b16 %v1909
        %v1958 = vunpack.c.l.b16 %v1910
        %v1959 = vunpack.c.l.b16 %v1911
        %v1960 = vunpack.c.l.b16 %v1912
        %v1961 = vunpack.c.l.b16 %v1913
        %v1962 = vunpack.c.l.b16 %v1914
        %v1963 = vunpack.c.l.b16 %v1915
        %v1964 = vunpack.c.l.b16 %v1916
        %v1965 = vunpack.c.l.b16 %v1917
        %v1966 = vunpack.c.l.b16 %v1918
        %v1967 = vpack.c.b16 %v1952, %v1951
        %v1968 = vpack.c.b16 %v1954, %v1953
        %v1969 = vpack.c.b16 %v1956, %v1955
        %v1970 = vpack.c.b16 %v1958, %v1957
        %v1971 = vpack.c.b16 %v1960, %v1959
        %v1972 = vpack.c.b16 %v1962, %v1961
        %v1973 = vpack.c.b16 %v1964, %v1963
        %v1974 = vpack.c.b16 %v1966, %v1965
        %1983 = vmatprep.subr.bf16.mxu0 0
        %1984 = vmatpush1.bf16.msra.mxu0 %v1967
        %1985 = vmatprep.subr.bf16.mxu0 0
        %1986 = vmatpush1.bf16.msra.mxu0 %v1968
        %1987 = vmatprep.subr.bf16.mxu0 0
        %1988 = vmatpush1.bf16.msra.mxu0 %v1969
        %1989 = vmatprep.subr.bf16.mxu0 0
        %1990 = vmatpush1.bf16.msra.mxu0 %v1970
        %1991 = vmatprep.subr.bf16.mxu0 0
        %1992 = vmatpush1.bf16.msra.mxu0 %v1971
        %1993 = vmatprep.subr.bf16.mxu0 0
        %1994 = vmatpush1.bf16.msra.mxu0 %v1972
        %1995 = vmatprep.subr.bf16.mxu0 0
        %1996 = vmatpush1.bf16.msra.mxu0 %v1973
        %1997 = vmatprep.subr.bf16.mxu0 0
        %1998 = vmatpush1.bf16.msra.mxu0 %v1974
        %1999 = vmatprep.subr.bf16.mxu0 0
        %2000 = vmatpush1.bf16.msra.mxu0 0
        %2001 = vmatprep.subr.bf16.mxu0 0
        %2002 = vmatpush1.bf16.msra.mxu0 0
        %2003 = vmatprep.subr.bf16.mxu0 0
        %2004 = vmatpush1.bf16.msra.mxu0 0
        %2005 = vmatprep.subr.bf16.mxu0 0
        %2006 = vmatpush1.bf16.msra.mxu0 0
        %2007 = vmatprep.subr.bf16.mxu0 0
        %2008 = vmatpush1.bf16.msra.mxu0 0
        %2009 = vmatprep.subr.bf16.mxu0 0
        %2010 = vmatpush1.bf16.msra.mxu0 0
        %2011 = vmatprep.subr.bf16.mxu0 0
        %2012 = vmatpush1.bf16.msra.mxu0 0
        %2013 = vmatprep.subr.bf16.mxu0 0
        %2014 = vmatpush1.bf16.msra.mxu0 0
        %2015 = vmatprep.mubr.bf16.mxu0 0
        %2016 = vmatmul.mubr.bf16.gmra.mrb[0].mxu0 %v1927
        %v2017 = vpop.f32.mrb[0].mxu0
        %v2018 = vadd.f32 0.0, %v2017
        %v2019 = vpop.f32.mrb[0].mxu0
        %v2020 = vpop.f32.mrb[0].mxu0
        %v2021 = vadd.f32 0.0, %v2020
        %v2022 = vpop.f32.mrb[0].mxu0
        %2023 = vmatprep.mubr.bf16.mxu0 0
        %2024 = vmatmul.mubr.bf16.gmra.mrb[0].mxu0 %v1928
        %v2025 = vpop.f32.mrb[0].mxu0
        %v2026 = vadd.f32 0.0, %v2025
        %v2027 = vpop.f32.mrb[0].mxu0
        %v2028 = vpop.f32.mrb[0].mxu0
        %v2029 = vadd.f32 0.0, %v2028
        %v2030 = vpop.f32.mrb[0].mxu0
        %2031 = vmatprep.mubr.bf16.mxu0 0
        %2032 = vmatmul.mubr.bf16.gmra.mrb[0].mxu0 %v1929
        %v2033 = vpop.f32.mrb[0].mxu0
        %v2034 = vadd.f32 0.0, %v2033
        %v2035 = vpop.f32.mrb[0].mxu0
        %v2036 = vpop.f32.mrb[0].mxu0
        %v2037 = vadd.f32 0.0, %v2036
        %v2038 = vpop.f32.mrb[0].mxu0
        %2039 = vmatprep.mubr.bf16.mxu0 0
        %2040 = vmatmul.mubr.bf16.gmra.mrb[0].mxu0 %v1930
        %v2041 = vpop.f32.mrb[0].mxu0
        %v2042 = vadd.f32 0.0, %v2041
        %v2043 = vpop.f32.mrb[0].mxu0
        %v2044 = vpop.f32.mrb[0].mxu0
        %v2045 = vadd.f32 0.0, %v2044
        %v2046 = vpop.f32.mrb[0].mxu0
        %2047 = vdwg.mxu0
        %v2048 = vadd.f32 %v1838, %v2018
        %v2049 = vadd.f32 %v1839, %v2021
        %v2050 = vadd.f32 %v1840, %v2026
        %v2051 = vadd.f32 %v1841, %v2029
        %v2052 = vadd.f32 %v1842, %v2034
        %v2053 = vadd.f32 %v1843, %v2037
        %v2054 = vadd.f32 %v1844, %v2042
        %v2055 = vadd.f32 %v1845, %v2045
        %s2056 = scalar_lea.vmem [#allocation2], 16
        %v2057 = vld [vmem:[%s2056] sm:$0xf]
        %v2058 = vld [vmem:[%s2056 + $0x8] sm:$0xf]
        %v2059 = vld [vmem:[%s2056 + $0x10] sm:$0xf]
        %v2060 = vld [vmem:[%s2056 + $0x18] sm:$0xf]
        %v2061 = vld [vmem:[%s2056 + $0x20] sm:$0xf]
        %v2062 = vld [vmem:[%s2056 + $0x28] sm:$0xf]
        %v2063 = vld [vmem:[%s2056 + $0x30] sm:$0xf]
        %v2064 = vld [vmem:[%s2056 + $0x38] sm:$0xf]
        %s2065 = scalar_lea.vmem [#allocation8], 384
        %v2066 = vld [vmem:[%s2065] sm:$0xf]
        %v2067 = vld [vmem:[%s2065 + $0x4] sm:$0xf]
        %v2068 = vld [vmem:[%s2065 + $0x8] sm:$0xf]
        %v2069 = vld [vmem:[%s2065 + $0xc] sm:$0xf]
        %v2070 = vld [vmem:[%s2065 + $0x10] sm:$0xf]
        %v2071 = vld [vmem:[%s2065 + $0x14] sm:$0xf]
        %v2072 = vld [vmem:[%s2065 + $0x18] sm:$0xf]
        %v2073 = vld [vmem:[%s2065 + $0x1c] sm:$0xf]
        %v2074 = vld [vmem:[%s2065 + $0x20] sm:$0xf]
        %v2075 = vld [vmem:[%s2065 + $0x24] sm:$0xf]
        %v2076 = vld [vmem:[%s2065 + $0x28] sm:$0xf]
        %v2077 = vld [vmem:[%s2065 + $0x2c] sm:$0xf]
        %v2078 = vld [vmem:[%s2065 + $0x30] sm:$0xf]
        %v2079 = vld [vmem:[%s2065 + $0x34] sm:$0xf]
        %v2080 = vld [vmem:[%s2065 + $0x38] sm:$0xf]
        %v2081 = vld [vmem:[%s2065 + $0x3c] sm:$0xf]
        %v2090 = vunpack.c.l.b16 %v2057
        %v2091 = vunpack.c.l.b16 %v2058
        %v2092 = vunpack.c.l.b16 %v2059
        %v2093 = vunpack.c.l.b16 %v2060
        %v2094 = vunpack.c.l.b16 %v2061
        %v2095 = vunpack.c.l.b16 %v2062
        %v2096 = vunpack.c.l.b16 %v2063
        %v2097 = vunpack.c.l.b16 %v2064
        %v2098 = vpack.c.b16 %v2091, %v2090
        %v2099 = vpack.c.b16 %v2093, %v2092
        %v2100 = vpack.c.b16 %v2095, %v2094
        %v2101 = vpack.c.b16 %v2097, %v2096
        %v2122 = vunpack.c.l.b16 %v2066
        %v2123 = vunpack.c.l.b16 %v2067
        %v2124 = vunpack.c.l.b16 %v2068
        %v2125 = vunpack.c.l.b16 %v2069
        %v2126 = vunpack.c.l.b16 %v2070
        %v2127 = vunpack.c.l.b16 %v2071
        %v2128 = vunpack.c.l.b16 %v2072
        %v2129 = vunpack.c.l.b16 %v2073
        %v2130 = vunpack.c.l.b16 %v2074
        %v2131 = vunpack.c.l.b16 %v2075
        %v2132 = vunpack.c.l.b16 %v2076
        %v2133 = vunpack.c.l.b16 %v2077
        %v2134 = vunpack.c.l.b16 %v2078
        %v2135 = vunpack.c.l.b16 %v2079
        %v2136 = vunpack.c.l.b16 %v2080
        %v2137 = vunpack.c.l.b16 %v2081
        %v2138 = vpack.c.b16 %v2123, %v2122
        %v2139 = vpack.c.b16 %v2125, %v2124
        %v2140 = vpack.c.b16 %v2127, %v2126
        %v2141 = vpack.c.b16 %v2129, %v2128
        %v2142 = vpack.c.b16 %v2131, %v2130
        %v2143 = vpack.c.b16 %v2133, %v2132
        %v2144 = vpack.c.b16 %v2135, %v2134
        %v2145 = vpack.c.b16 %v2137, %v2136
        %2154 = vmatprep.subr.bf16.mxu0 0
        %2155 = vmatpush1.bf16.msra.mxu0 %v2138
        %2156 = vmatprep.subr.bf16.mxu0 0
        %2157 = vmatpush1.bf16.msra.mxu0 %v2139
        %2158 = vmatprep.subr.bf16.mxu0 0
        %2159 = vmatpush1.bf16.msra.mxu0 %v2140
        %2160 = vmatprep.subr.bf16.mxu0 0
        %2161 = vmatpush1.bf16.msra.mxu0 %v2141
        %2162 = vmatprep.subr.bf16.mxu0 0
        %2163 = vmatpush1.bf16.msra.mxu0 %v2142
        %2164 = vmatprep.subr.bf16.mxu0 0
        %2165 = vmatpush1.bf16.msra.mxu0 %v2143
        %2166 = vmatprep.subr.bf16.mxu0 0
        %2167 = vmatpush1.bf16.msra.mxu0 %v2144
        %2168 = vmatprep.subr.bf16.mxu0 0
        %2169 = vmatpush1.bf16.msra.mxu0 %v2145
        %2170 = vmatprep.subr.bf16.mxu0 0
        %2171 = vmatpush1.bf16.msra.mxu0 0
        %2172 = vmatprep.subr.bf16.mxu0 0
        %2173 = vmatpush1.bf16.msra.mxu0 0
        %2174 = vmatprep.subr.bf16.mxu0 0
        %2175 = vmatpush1.bf16.msra.mxu0 0
        %2176 = vmatprep.subr.bf16.mxu0 0
        %2177 = vmatpush1.bf16.msra.mxu0 0
        %2178 = vmatprep.subr.bf16.mxu0 0
        %2179 = vmatpush1.bf16.msra.mxu0 0
        %2180 = vmatprep.subr.bf16.mxu0 0
        %2181 = vmatpush1.bf16.msra.mxu0 0
        %2182 = vmatprep.subr.bf16.mxu0 0
        %2183 = vmatpush1.bf16.msra.mxu0 0
        %2184 = vmatprep.subr.bf16.mxu0 0
        %2185 = vmatpush1.bf16.msra.mxu0 0
        %2186 = vmatprep.mubr.bf16.mxu0 0
        %2187 = vmatmul.mubr.bf16.gmra.mrb[0].mxu0 %v2098
        %v2188 = vpop.f32.mrb[0].mxu0
        %v2189 = vadd.f32 0.0, %v2188
        %v2190 = vpop.f32.mrb[0].mxu0
        %v2191 = vpop.f32.mrb[0].mxu0
        %v2192 = vadd.f32 0.0, %v2191
        %v2193 = vpop.f32.mrb[0].mxu0
        %2194 = vmatprep.mubr.bf16.mxu0 0
        %2195 = vmatmul.mubr.bf16.gmra.mrb[0].mxu0 %v2099
        %v2196 = vpop.f32.mrb[0].mxu0
        %v2197 = vadd.f32 0.0, %v2196
        %v2198 = vpop.f32.mrb[0].mxu0
        %v2199 = vpop.f32.mrb[0].mxu0
        %v2200 = vadd.f32 0.0, %v2199
        %v2201 = vpop.f32.mrb[0].mxu0
        %2202 = vmatprep.mubr.bf16.mxu0 0
        %2203 = vmatmul.mubr.bf16.gmra.mrb[0].mxu0 %v2100
        %v2204 = vpop.f32.mrb[0].mxu0
        %v2205 = vadd.f32 0.0, %v2204
        %v2206 = vpop.f32.mrb[0].mxu0
        %v2207 = vpop.f32.mrb[0].mxu0
        %v2208 = vadd.f32 0.0, %v2207
        %v2209 = vpop.f32.mrb[0].mxu0
        %2210 = vmatprep.mubr.bf16.mxu0 0
        %2211 = vmatmul.mubr.bf16.gmra.mrb[0].mxu0 %v2101
        %v2212 = vpop.f32.mrb[0].mxu0
        %v2213 = vadd.f32 0.0, %v2212
        %v2214 = vpop.f32.mrb[0].mxu0
        %v2215 = vpop.f32.mrb[0].mxu0
        %v2216 = vadd.f32 0.0, %v2215
        %v2217 = vpop.f32.mrb[0].mxu0
        %2218 = vdwg.mxu0
        %v2219 = vadd.f32 %v2048, %v2189
        %v2220 = vadd.f32 %v2049, %v2192
        %v2221 = vadd.f32 %v2050, %v2197
        %v2222 = vadd.f32 %v2051, %v2200
        %v2223 = vadd.f32 %v2052, %v2205
        %v2224 = vadd.f32 %v2053, %v2208
        %v2225 = vadd.f32 %v2054, %v2213
        %v2226 = vadd.f32 %v2055, %v2216
        %v2227 = vld [vmem:[%s2056] sm:$0xf]
        %v2228 = vld [vmem:[%s2056 + $0x4] sm:$0x1]
        %v2229 = vld [vmem:[%s2056 + $0x8] sm:$0xf]
        %v2230 = vld [vmem:[%s2056 + $0xc] sm:$0x1]
        %v2231 = vld [vmem:[%s2056 + $0x10] sm:$0xf]
        %v2232 = vld [vmem:[%s2056 + $0x14] sm:$0x1]
        %v2233 = vld [vmem:[%s2056 + $0x18] sm:$0xf]
        %v2234 = vld [vmem:[%s2056 + $0x1c] sm:$0x1]
        %v2235 = vld [vmem:[%s2056 + $0x20] sm:$0xf]
        %v2236 = vld [vmem:[%s2056 + $0x24] sm:$0x1]
        %v2237 = vld [vmem:[%s2056 + $0x28] sm:$0xf]
        %v2238 = vld [vmem:[%s2056 + $0x2c] sm:$0x1]
        %v2239 = vld [vmem:[%s2056 + $0x30] sm:$0xf]
        %v2240 = vld [vmem:[%s2056 + $0x34] sm:$0x1]
        %v2241 = vld [vmem:[%s2056 + $0x38] sm:$0xf]
        %v2242 = vld [vmem:[%s2056 + $0x3c] sm:$0x1]
        %v2244 = vshrl.u32 %v2227, 16
        %v2246 = vrot.slane %v2244, 4
        %v2247 = vshll.u32 %v2227, 16
        %v2249 = vrot.slane %v2247, 5
        %v2250 = vor.u32 %v2246, %v2249
        %v2251 = vrot.slane %v2250, 4
        %v2253 = vshll.u32 %v2228, 16
        %v2255 = vrot.slane %v2253, 5
        %v2256 = vsel %vm785, %v2251, %v2255
        %v2258 = vshrl.u32 %v2229, 16
        %v2260 = vrot.slane %v2258, 4
        %v2261 = vshll.u32 %v2229, 16
        %v2263 = vrot.slane %v2261, 5
        %v2264 = vor.u32 %v2260, %v2263
        %v2265 = vrot.slane %v2264, 4
        %v2267 = vshll.u32 %v2230, 16
        %v2269 = vrot.slane %v2267, 5
        %v2270 = vsel %vm785, %v2265, %v2269
        %v2272 = vshrl.u32 %v2231, 16
        %v2274 = vrot.slane %v2272, 4
        %v2275 = vshll.u32 %v2231, 16
        %v2277 = vrot.slane %v2275, 5
        %v2278 = vor.u32 %v2274, %v2277
        %v2279 = vrot.slane %v2278, 4
        %v2281 = vshll.u32 %v2232, 16
        %v2283 = vrot.slane %v2281, 5
        %v2284 = vsel %vm785, %v2279, %v2283
        %v2286 = vshrl.u32 %v2233, 16
        %v2288 = vrot.slane %v2286, 4
        %v2289 = vshll.u32 %v2233, 16
        %v2291 = vrot.slane %v2289, 5
        %v2292 = vor.u32 %v2288, %v2291
        %v2293 = vrot.slane %v2292, 4
        %v2295 = vshll.u32 %v2234, 16
        %v2297 = vrot.slane %v2295, 5
        %v2298 = vsel %vm785, %v2293, %v2297
        %v2300 = vshrl.u32 %v2235, 16
        %v2302 = vrot.slane %v2300, 4
        %v2303 = vshll.u32 %v2235, 16
        %v2305 = vrot.slane %v2303, 5
        %v2306 = vor.u32 %v2302, %v2305
        %v2307 = vrot.slane %v2306, 4
        %v2309 = vshll.u32 %v2236, 16
        %v2311 = vrot.slane %v2309, 5
        %v2312 = vsel %vm785, %v2307, %v2311
        %v2314 = vshrl.u32 %v2237, 16
        %v2316 = vrot.slane %v2314, 4
        %v2317 = vshll.u32 %v2237, 16
        %v2319 = vrot.slane %v2317, 5
        %v2320 = vor.u32 %v2316, %v2319
        %v2321 = vrot.slane %v2320, 4
        %v2323 = vshll.u32 %v2238, 16
        %v2325 = vrot.slane %v2323, 5
        %v2326 = vsel %vm785, %v2321, %v2325
        %v2328 = vshrl.u32 %v2239, 16
        %v2330 = vrot.slane %v2328, 4
        %v2331 = vshll.u32 %v2239, 16
        %v2333 = vrot.slane %v2331, 5
        %v2334 = vor.u32 %v2330, %v2333
        %v2335 = vrot.slane %v2334, 4
        %v2337 = vshll.u32 %v2240, 16
        %v2339 = vrot.slane %v2337, 5
        %v2340 = vsel %vm785, %v2335, %v2339
        %v2342 = vshrl.u32 %v2241, 16
        %v2344 = vrot.slane %v2342, 4
        %v2345 = vshll.u32 %v2241, 16
        %v2347 = vrot.slane %v2345, 5
        %v2348 = vor.u32 %v2344, %v2347
        %v2349 = vrot.slane %v2348, 4
        %v2351 = vshll.u32 %v2242, 16
        %v2353 = vrot.slane %v2351, 5
        %v2354 = vsel %vm785, %v2349, %v2353
        %s2355 = scalar_lea.vmem [#allocation8], 448
        %v2356 = vld [vmem:[%s2355] sm:$0xf]
        %v2357 = vld [vmem:[%s2355 + $0x4] sm:$0xf]
        %v2358 = vld [vmem:[%s2355 + $0x8] sm:$0xf]
        %v2359 = vld [vmem:[%s2355 + $0xc] sm:$0xf]
        %v2360 = vld [vmem:[%s2355 + $0x10] sm:$0xf]
        %v2361 = vld [vmem:[%s2355 + $0x14] sm:$0xf]
        %v2362 = vld [vmem:[%s2355 + $0x18] sm:$0xf]
        %v2363 = vld [vmem:[%s2355 + $0x1c] sm:$0xf]
        %v2364 = vld [vmem:[%s2355 + $0x20] sm:$0xf]
        %v2365 = vld [vmem:[%s2355 + $0x24] sm:$0xf]
        %v2366 = vld [vmem:[%s2355 + $0x28] sm:$0xf]
        %v2367 = vld [vmem:[%s2355 + $0x2c] sm:$0xf]
        %v2368 = vld [vmem:[%s2355 + $0x30] sm:$0xf]
        %v2369 = vld [vmem:[%s2355 + $0x34] sm:$0xf]
        %v2370 = vld [vmem:[%s2355 + $0x38] sm:$0xf]
        %v2371 = vld [vmem:[%s2355 + $0x3c] sm:$0xf]
        %v2372 = vunpack.c.l.b16 %v2256
        %v2373 = vunpack.c.l.b16 %v2270
        %v2374 = vunpack.c.l.b16 %v2284
        %v2375 = vunpack.c.l.b16 %v2298
        %v2376 = vunpack.c.l.b16 %v2312
        %v2377 = vunpack.c.l.b16 %v2326
        %v2378 = vunpack.c.l.b16 %v2340
        %v2379 = vunpack.c.l.b16 %v2354
        %v2380 = vpack.c.b16 %v2373, %v2372
        %v2381 = vpack.c.b16 %v2375, %v2374
        %v2382 = vpack.c.b16 %v2377, %v2376
        %v2383 = vpack.c.b16 %v2379, %v2378
        %v2404 = vunpack.c.l.b16 %v2356
        %v2405 = vunpack.c.l.b16 %v2357
        %v2406 = vunpack.c.l.b16 %v2358
        %v2407 = vunpack.c.l.b16 %v2359
        %v2408 = vunpack.c.l.b16 %v2360
        %v2409 = vunpack.c.l.b16 %v2361
        %v2410 = vunpack.c.l.b16 %v2362
        %v2411 = vunpack.c.l.b16 %v2363
        %v2412 = vunpack.c.l.b16 %v2364
        %v2413 = vunpack.c.l.b16 %v2365
        %v2414 = vunpack.c.l.b16 %v2366
        %v2415 = vunpack.c.l.b16 %v2367
        %v2416 = vunpack.c.l.b16 %v2368
        %v2417 = vunpack.c.l.b16 %v2369
        %v2418 = vunpack.c.l.b16 %v2370
        %v2419 = vunpack.c.l.b16 %v2371
        %v2420 = vpack.c.b16 %v2405, %v2404
        %v2421 = vpack.c.b16 %v2407, %v2406
        %v2422 = vpack.c.b16 %v2409, %v2408
        %v2423 = vpack.c.b16 %v2411, %v2410
        %v2424 = vpack.c.b16 %v2413, %v2412
        %v2425 = vpack.c.b16 %v2415, %v2414
        %v2426 = vpack.c.b16 %v2417, %v2416
        %v2427 = vpack.c.b16 %v2419, %v2418
        %2436 = vmatprep.subr.bf16.mxu0 0
        %2437 = vmatpush1.bf16.msra.mxu0 %v2420
        %2438 = vmatprep.subr.bf16.mxu0 0
        %2439 = vmatpush1.bf16.msra.mxu0 %v2421
        %2440 = vmatprep.subr.bf16.mxu0 0
        %2441 = vmatpush1.bf16.msra.mxu0 %v2422
        %2442 = vmatprep.subr.bf16.mxu0 0
        %2443 = vmatpush1.bf16.msra.mxu0 %v2423
        %2444 = vmatprep.subr.bf16.mxu0 0
        %2445 = vmatpush1.bf16.msra.mxu0 %v2424
        %2446 = vmatprep.subr.bf16.mxu0 0
        %2447 = vmatpush1.bf16.msra.mxu0 %v2425
        %2448 = vmatprep.subr.bf16.mxu0 0
        %2449 = vmatpush1.bf16.msra.mxu0 %v2426
        %2450 = vmatprep.subr.bf16.mxu0 0
        %2451 = vmatpush1.bf16.msra.mxu0 %v2427
        %2452 = vmatprep.subr.bf16.mxu0 0
        %2453 = vmatpush1.bf16.msra.mxu0 0
        %2454 = vmatprep.subr.bf16.mxu0 0
        %2455 = vmatpush1.bf16.msra.mxu0 0
        %2456 = vmatprep.subr.bf16.mxu0 0
        %2457 = vmatpush1.bf16.msra.mxu0 0
        %2458 = vmatprep.subr.bf16.mxu0 0
        %2459 = vmatpush1.bf16.msra.mxu0 0
        %2460 = vmatprep.subr.bf16.mxu0 0
        %2461 = vmatpush1.bf16.msra.mxu0 0
        %2462 = vmatprep.subr.bf16.mxu0 0
        %2463 = vmatpush1.bf16.msra.mxu0 0
        %2464 = vmatprep.subr.bf16.mxu0 0
        %2465 = vmatpush1.bf16.msra.mxu0 0
        %2466 = vmatprep.subr.bf16.mxu0 0
        %2467 = vmatpush1.bf16.msra.mxu0 0
        %2468 = vmatprep.mubr.bf16.mxu0 0
        %2469 = vmatmul.mubr.bf16.gmra.mrb[0].mxu0 %v2380
        %v2470 = vpop.f32.mrb[0].mxu0
        %v2471 = vadd.f32 0.0, %v2470
        %v2472 = vpop.f32.mrb[0].mxu0
        %v2473 = vpop.f32.mrb[0].mxu0
        %v2474 = vadd.f32 0.0, %v2473
        %v2475 = vpop.f32.mrb[0].mxu0
        %2476 = vmatprep.mubr.bf16.mxu0 0
        %2477 = vmatmul.mubr.bf16.gmra.mrb[0].mxu0 %v2381
        %v2478 = vpop.f32.mrb[0].mxu0
        %v2479 = vadd.f32 0.0, %v2478
        %v2480 = vpop.f32.mrb[0].mxu0
        %v2481 = vpop.f32.mrb[0].mxu0
        %v2482 = vadd.f32 0.0, %v2481
        %v2483 = vpop.f32.mrb[0].mxu0
        %2484 = vmatprep.mubr.bf16.mxu0 0
        %2485 = vmatmul.mubr.bf16.gmra.mrb[0].mxu0 %v2382
        %v2486 = vpop.f32.mrb[0].mxu0
        %v2487 = vadd.f32 0.0, %v2486
        %v2488 = vpop.f32.mrb[0].mxu0
        %v2489 = vpop.f32.mrb[0].mxu0
        %v2490 = vadd.f32 0.0, %v2489
        %v2491 = vpop.f32.mrb[0].mxu0
        %2492 = vmatprep.mubr.bf16.mxu0 0
        %2493 = vmatmul.mubr.bf16.gmra.mrb[0].mxu0 %v2383
        %v2494 = vpop.f32.mrb[0].mxu0
        %v2495 = vadd.f32 0.0, %v2494
        %v2496 = vpop.f32.mrb[0].mxu0
        %v2497 = vpop.f32.mrb[0].mxu0
        %v2498 = vadd.f32 0.0, %v2497
        %v2499 = vpop.f32.mrb[0].mxu0
        %2500 = vdwg.mxu0
        %v2501 = vadd.f32 %v2219, %v2471
        %v2502 = vadd.f32 %v2220, %v2474
        %v2503 = vadd.f32 %v2221, %v2479
        %v2504 = vadd.f32 %v2222, %v2482
        %v2505 = vadd.f32 %v2223, %v2487
        %v2506 = vadd.f32 %v2224, %v2490
        %v2507 = vadd.f32 %v2225, %v2495
        %v2508 = vadd.f32 %v2226, %v2498
        %v2509 = vld [vmem:[%s2056] sm:$0xe]
        %v2510 = vld [vmem:[%s2056 + $0x8] sm:$0xe]
        %v2511 = vld [vmem:[%s2056 + $0x10] sm:$0xe]
        %v2512 = vld [vmem:[%s2056 + $0x18] sm:$0xe]
        %v2513 = vld [vmem:[%s2056 + $0x20] sm:$0xe]
        %v2514 = vld [vmem:[%s2056 + $0x28] sm:$0xe]
        %v2515 = vld [vmem:[%s2056 + $0x30] sm:$0xe]
        %v2516 = vld [vmem:[%s2056 + $0x38] sm:$0xe]
        %v2533 = vrot.slane %v2509, 5
        %v2534 = vrot.slane %v2533, 4
        %v2535 = vrot.slane %v2228, 5
        %v2536 = vsel %vm1207, %v2534, %v2535
        %v2537 = vrot.slane %v2510, 5
        %v2538 = vrot.slane %v2537, 4
        %v2539 = vrot.slane %v2230, 5
        %v2540 = vsel %vm1207, %v2538, %v2539
        %v2541 = vrot.slane %v2511, 5
        %v2542 = vrot.slane %v2541, 4
        %v2543 = vrot.slane %v2232, 5
        %v2544 = vsel %vm1207, %v2542, %v2543
        %v2545 = vrot.slane %v2512, 5
        %v2546 = vrot.slane %v2545, 4
        %v2547 = vrot.slane %v2234, 5
        %v2548 = vsel %vm1207, %v2546, %v2547
        %v2549 = vrot.slane %v2513, 5
        %v2550 = vrot.slane %v2549, 4
        %v2551 = vrot.slane %v2236, 5
        %v2552 = vsel %vm1207, %v2550, %v2551
        %v2553 = vrot.slane %v2514, 5
        %v2554 = vrot.slane %v2553, 4
        %v2555 = vrot.slane %v2238, 5
        %v2556 = vsel %vm1207, %v2554, %v2555
        %v2557 = vrot.slane %v2515, 5
        %v2558 = vrot.slane %v2557, 4
        %v2559 = vrot.slane %v2240, 5
        %v2560 = vsel %vm1207, %v2558, %v2559
        %v2561 = vrot.slane %v2516, 5
        %v2562 = vrot.slane %v2561, 4
        %v2563 = vrot.slane %v2242, 5
        %v2564 = vsel %vm1207, %v2562, %v2563
        %s2565 = scalar_lea.vmem [#allocation8], 512
        %v2566 = vld [vmem:[%s2565] sm:$0xf]
        %v2567 = vld [vmem:[%s2565 + $0x4] sm:$0xf]
        %v2568 = vld [vmem:[%s2565 + $0x8] sm:$0xf]
        %v2569 = vld [vmem:[%s2565 + $0xc] sm:$0xf]
        %v2570 = vld [vmem:[%s2565 + $0x10] sm:$0xf]
        %v2571 = vld [vmem:[%s2565 + $0x14] sm:$0xf]
        %v2572 = vld [vmem:[%s2565 + $0x18] sm:$0xf]
        %v2573 = vld [vmem:[%s2565 + $0x1c] sm:$0xf]
        %v2574 = vld [vmem:[%s2565 + $0x20] sm:$0xf]
        %v2575 = vld [vmem:[%s2565 + $0x24] sm:$0xf]
        %v2576 = vld [vmem:[%s2565 + $0x28] sm:$0xf]
        %v2577 = vld [vmem:[%s2565 + $0x2c] sm:$0xf]
        %v2578 = vld [vmem:[%s2565 + $0x30] sm:$0xf]
        %v2579 = vld [vmem:[%s2565 + $0x34] sm:$0xf]
        %v2580 = vld [vmem:[%s2565 + $0x38] sm:$0xf]
        %v2581 = vld [vmem:[%s2565 + $0x3c] sm:$0xf]
        %v2582 = vunpack.c.l.b16 %v2536
        %v2583 = vunpack.c.l.b16 %v2540
        %v2584 = vunpack.c.l.b16 %v2544
        %v2585 = vunpack.c.l.b16 %v2548
        %v2586 = vunpack.c.l.b16 %v2552
        %v2587 = vunpack.c.l.b16 %v2556
        %v2588 = vunpack.c.l.b16 %v2560
        %v2589 = vunpack.c.l.b16 %v2564
        %v2590 = vpack.c.b16 %v2583, %v2582
        %v2591 = vpack.c.b16 %v2585, %v2584
        %v2592 = vpack.c.b16 %v2587, %v2586
        %v2593 = vpack.c.b16 %v2589, %v2588
        %v2614 = vunpack.c.l.b16 %v2566
        %v2615 = vunpack.c.l.b16 %v2567
        %v2616 = vunpack.c.l.b16 %v2568
        %v2617 = vunpack.c.l.b16 %v2569
        %v2618 = vunpack.c.l.b16 %v2570
        %v2619 = vunpack.c.l.b16 %v2571
        %v2620 = vunpack.c.l.b16 %v2572
        %v2621 = vunpack.c.l.b16 %v2573
        %v2622 = vunpack.c.l.b16 %v2574
        %v2623 = vunpack.c.l.b16 %v2575
        %v2624 = vunpack.c.l.b16 %v2576
        %v2625 = vunpack.c.l.b16 %v2577
        %v2626 = vunpack.c.l.b16 %v2578
        %v2627 = vunpack.c.l.b16 %v2579
        %v2628 = vunpack.c.l.b16 %v2580
        %v2629 = vunpack.c.l.b16 %v2581
        %v2630 = vpack.c.b16 %v2615, %v2614
        %v2631 = vpack.c.b16 %v2617, %v2616
        %v2632 = vpack.c.b16 %v2619, %v2618
        %v2633 = vpack.c.b16 %v2621, %v2620
        %v2634 = vpack.c.b16 %v2623, %v2622
        %v2635 = vpack.c.b16 %v2625, %v2624
        %v2636 = vpack.c.b16 %v2627, %v2626
        %v2637 = vpack.c.b16 %v2629, %v2628
        %2646 = vmatprep.subr.bf16.mxu0 0
        %2647 = vmatpush1.bf16.msra.mxu0 %v2630
        %2648 = vmatprep.subr.bf16.mxu0 0
        %2649 = vmatpush1.bf16.msra.mxu0 %v2631
        %2650 = vmatprep.subr.bf16.mxu0 0
        %2651 = vmatpush1.bf16.msra.mxu0 %v2632
        %2652 = vmatprep.subr.bf16.mxu0 0
        %2653 = vmatpush1.bf16.msra.mxu0 %v2633
        %2654 = vmatprep.subr.bf16.mxu0 0
        %2655 = vmatpush1.bf16.msra.mxu0 %v2634
        %2656 = vmatprep.subr.bf16.mxu0 0
        %2657 = vmatpush1.bf16.msra.mxu0 %v2635
        %2658 = vmatprep.subr.bf16.mxu0 0
        %2659 = vmatpush1.bf16.msra.mxu0 %v2636
        %2660 = vmatprep.subr.bf16.mxu0 0
        %2661 = vmatpush1.bf16.msra.mxu0 %v2637
        %2662 = vmatprep.subr.bf16.mxu0 0
        %2663 = vmatpush1.bf16.msra.mxu0 0
        %2664 = vmatprep.subr.bf16.mxu0 0
        %2665 = vmatpush1.bf16.msra.mxu0 0
        %2666 = vmatprep.subr.bf16.mxu0 0
        %2667 = vmatpush1.bf16.msra.mxu0 0
        %2668 = vmatprep.subr.bf16.mxu0 0
        %2669 = vmatpush1.bf16.msra.mxu0 0
        %2670 = vmatprep.subr.bf16.mxu0 0
        %2671 = vmatpush1.bf16.msra.mxu0 0
        %2672 = vmatprep.subr.bf16.mxu0 0
        %2673 = vmatpush1.bf16.msra.mxu0 0
        %2674 = vmatprep.subr.bf16.mxu0 0
        %2675 = vmatpush1.bf16.msra.mxu0 0
        %2676 = vmatprep.subr.bf16.mxu0 0
        %2677 = vmatpush1.bf16.msra.mxu0 0
        %2678 = vmatprep.mubr.bf16.mxu0 0
        %2679 = vmatmul.mubr.bf16.gmra.mrb[0].mxu0 %v2590
        %v2680 = vpop.f32.mrb[0].mxu0
        %v2681 = vadd.f32 0.0, %v2680
        %v2682 = vpop.f32.mrb[0].mxu0
        %v2683 = vpop.f32.mrb[0].mxu0
        %v2684 = vadd.f32 0.0, %v2683
        %v2685 = vpop.f32.mrb[0].mxu0
        %2686 = vmatprep.mubr.bf16.mxu0 0
        %2687 = vmatmul.mubr.bf16.gmra.mrb[0].mxu0 %v2591
        %v2688 = vpop.f32.mrb[0].mxu0
        %v2689 = vadd.f32 0.0, %v2688
        %v2690 = vpop.f32.mrb[0].mxu0
        %v2691 = vpop.f32.mrb[0].mxu0
        %v2692 = vadd.f32 0.0, %v2691
        %v2693 = vpop.f32.mrb[0].mxu0
        %2694 = vmatprep.mubr.bf16.mxu0 0
        %2695 = vmatmul.mubr.bf16.gmra.mrb[0].mxu0 %v2592
        %v2696 = vpop.f32.mrb[0].mxu0
        %v2697 = vadd.f32 0.0, %v2696
        %v2698 = vpop.f32.mrb[0].mxu0
        %v2699 = vpop.f32.mrb[0].mxu0
        %v2700 = vadd.f32 0.0, %v2699
        %v2701 = vpop.f32.mrb[0].mxu0
        %2702 = vmatprep.mubr.bf16.mxu0 0
        %2703 = vmatmul.mubr.bf16.gmra.mrb[0].mxu0 %v2593
        %v2704 = vpop.f32.mrb[0].mxu0
        %v2705 = vadd.f32 0.0, %v2704
        %v2706 = vpop.f32.mrb[0].mxu0
        %v2707 = vpop.f32.mrb[0].mxu0
        %v2708 = vadd.f32 0.0, %v2707
        %v2709 = vpop.f32.mrb[0].mxu0
        %2710 = vdwg.mxu0
        %v2711 = vadd.f32 %v2501, %v2681
        %v2712 = vadd.f32 %v2502, %v2684
        %v2713 = vadd.f32 %v2503, %v2689
        %v2714 = vadd.f32 %v2504, %v2692
        %v2715 = vadd.f32 %v2505, %v2697
        %v2716 = vadd.f32 %v2506, %v2700
        %v2717 = vadd.f32 %v2507, %v2705
        %v2718 = vadd.f32 %v2508, %v2708
        %v2719 = vld [vmem:[%s4] sm:$0x1]
        %v2721 = vlaneseq
        %v2722 = vshrl.u32 %v2721, 7
        %v2723 = vsub.s32 0, %v2722
        %v2724 = vrot.slane %v2719, %v2723
        %v2726 = vadd.f32 %v2711, %v2724
        %v2727 = vadd.f32 %v2712, %v2724
        %v2728 = vadd.f32 %v2713, %v2724
        %v2729 = vadd.f32 %v2714, %v2724
        %v2730 = vadd.f32 %v2715, %v2724
        %v2731 = vadd.f32 %v2716, %v2724
        %v2732 = vadd.f32 %v2717, %v2724
        %v2733 = vadd.f32 %v2718, %v2724
        %v2734 = vmax.f32 %v2726, 0.0
        %v2735 = vmax.f32 %v2727, 0.0
        %v2736 = vmax.f32 %v2728, 0.0
        %v2737 = vmax.f32 %v2729, 0.0
        %v2738 = vmax.f32 %v2730, 0.0
        %v2739 = vmax.f32 %v2731, 0.0
        %v2740 = vmax.f32 %v2732, 0.0
        %v2741 = vmax.f32 %v2733, 0.0
        %v2742 = vpack.c.bf16 %v2735, %v2734
        %v2743 = vpack.c.bf16 %v2737, %v2736
        %v2744 = vpack.c.bf16 %v2739, %v2738
        %v2745 = vpack.c.bf16 %v2741, %v2740
        %v2746 = vld [vmem:[#allocation9] sm:$0xf]
        %v2747 = vld [vmem:[#allocation9 + $0x4] sm:$0xf]
        %v2748 = vld [vmem:[#allocation9 + $0x8] sm:$0xf]
        %v2749 = vld [vmem:[#allocation9 + $0xc] sm:$0xf]
        %v2750 = vld [vmem:[#allocation9 + $0x10] sm:$0xf]
        %v2751 = vld [vmem:[#allocation9 + $0x14] sm:$0xf]
        %v2752 = vld [vmem:[#allocation9 + $0x18] sm:$0xf]
        %v2753 = vld [vmem:[#allocation9 + $0x1c] sm:$0xf]
        %v2754 = vld [vmem:[#allocation9 + $0x20] sm:$0xf]
        %v2755 = vld [vmem:[#allocation9 + $0x24] sm:$0xf]
        %v2756 = vld [vmem:[#allocation9 + $0x28] sm:$0xf]
        %v2757 = vld [vmem:[#allocation9 + $0x2c] sm:$0xf]
        %v2758 = vld [vmem:[#allocation9 + $0x30] sm:$0xf]
        %v2759 = vld [vmem:[#allocation9 + $0x34] sm:$0xf]
        %v2760 = vld [vmem:[#allocation9 + $0x38] sm:$0xf]
        %v2761 = vld [vmem:[#allocation9 + $0x3c] sm:$0xf]
        %v2762 = vld [vmem:[%s6] sm:$0x1]
        %v2764 = vlaneseq
        %v2765 = vshrl.u32 %v2764, 7
        %v2766 = vsub.s32 0, %v2765
        %v2767 = vrot.slane %v2762, %v2766
        %v2785 = vunpack.c.l.b16 %v2746
        %v2786 = vunpack.c.l.b16 %v2747
        %v2787 = vunpack.c.l.b16 %v2748
        %v2788 = vunpack.c.l.b16 %v2749
        %v2789 = vunpack.c.l.b16 %v2750
        %v2790 = vunpack.c.l.b16 %v2751
        %v2791 = vunpack.c.l.b16 %v2752
        %v2792 = vunpack.c.l.b16 %v2753
        %v2793 = vunpack.c.l.b16 %v2754
        %v2794 = vunpack.c.l.b16 %v2755
        %v2795 = vunpack.c.l.b16 %v2756
        %v2796 = vunpack.c.l.b16 %v2757
        %v2797 = vunpack.c.l.b16 %v2758
        %v2798 = vunpack.c.l.b16 %v2759
        %v2799 = vunpack.c.l.b16 %v2760
        %v2800 = vunpack.c.l.b16 %v2761
        %v2801 = vpack.c.b16 %v2786, %v2785
        %v2802 = vpack.c.b16 %v2788, %v2787
        %v2803 = vpack.c.b16 %v2790, %v2789
        %v2804 = vpack.c.b16 %v2792, %v2791
        %v2805 = vpack.c.b16 %v2794, %v2793
        %v2806 = vpack.c.b16 %v2796, %v2795
        %v2807 = vpack.c.b16 %v2798, %v2797
        %v2808 = vpack.c.b16 %v2800, %v2799
        %2817 = vmatprep.subr.bf16.mxu0 0
        %2818 = vmatpush1.bf16.msra.mxu0 %v2801
        %2819 = vmatprep.subr.bf16.mxu0 0
        %2820 = vmatpush1.bf16.msra.mxu0 %v2802
        %2821 = vmatprep.subr.bf16.mxu0 0
        %2822 = vmatpush1.bf16.msra.mxu0 %v2803
        %2823 = vmatprep.subr.bf16.mxu0 0
        %2824 = vmatpush1.bf16.msra.mxu0 %v2804
        %2825 = vmatprep.subr.bf16.mxu0 0
        %2826 = vmatpush1.bf16.msra.mxu0 %v2805
        %2827 = vmatprep.subr.bf16.mxu0 0
        %2828 = vmatpush1.bf16.msra.mxu0 %v2806
        %2829 = vmatprep.subr.bf16.mxu0 0
        %2830 = vmatpush1.bf16.msra.mxu0 %v2807
        %2831 = vmatprep.subr.bf16.mxu0 0
        %2832 = vmatpush1.bf16.msra.mxu0 %v2808
        %2833 = vmatprep.subr.bf16.mxu0 0
        %2834 = vmatpush1.bf16.msra.mxu0 0
        %2835 = vmatprep.subr.bf16.mxu0 0
        %2836 = vmatpush1.bf16.msra.mxu0 0
        %2837 = vmatprep.subr.bf16.mxu0 0
        %2838 = vmatpush1.bf16.msra.mxu0 0
        %2839 = vmatprep.subr.bf16.mxu0 0
        %2840 = vmatpush1.bf16.msra.mxu0 0
        %2841 = vmatprep.subr.bf16.mxu0 0
        %2842 = vmatpush1.bf16.msra.mxu0 0
        %2843 = vmatprep.subr.bf16.mxu0 0
        %2844 = vmatpush1.bf16.msra.mxu0 0
        %2845 = vmatprep.subr.bf16.mxu0 0
        %2846 = vmatpush1.bf16.msra.mxu0 0
        %2847 = vmatprep.subr.bf16.mxu0 0
        %2848 = vmatpush1.bf16.msra.mxu0 0
        %2849 = vmatprep.mubr.bf16.mxu0 0
        %2850 = vmatmul.mubr.bf16.gmra.mrb[0].mxu0 %v2742
        %v2851 = vpop.f32.mrb[0].mxu0
        %v2852 = vadd.f32 %v2767, %v2851
        %v2853 = vpop.f32.mrb[0].mxu0
        %v2854 = vpop.f32.mrb[0].mxu0
        %v2855 = vadd.f32 %v2767, %v2854
        %v2856 = vpop.f32.mrb[0].mxu0
        %2857 = vmatprep.mubr.bf16.mxu0 0
        %2858 = vmatmul.mubr.bf16.gmra.mrb[0].mxu0 %v2743
        %v2859 = vpop.f32.mrb[0].mxu0
        %v2860 = vadd.f32 %v2767, %v2859
        %v2861 = vpop.f32.mrb[0].mxu0
        %v2862 = vpop.f32.mrb[0].mxu0
        %v2863 = vadd.f32 %v2767, %v2862
        %v2864 = vpop.f32.mrb[0].mxu0
        %2865 = vmatprep.mubr.bf16.mxu0 0
        %2866 = vmatmul.mubr.bf16.gmra.mrb[0].mxu0 %v2744
        %v2867 = vpop.f32.mrb[0].mxu0
        %v2868 = vadd.f32 %v2767, %v2867
        %v2869 = vpop.f32.mrb[0].mxu0
        %v2870 = vpop.f32.mrb[0].mxu0
        %v2871 = vadd.f32 %v2767, %v2870
        %v2872 = vpop.f32.mrb[0].mxu0
        %2873 = vmatprep.mubr.bf16.mxu0 0
        %2874 = vmatmul.mubr.bf16.gmra.mrb[0].mxu0 %v2745
        %v2875 = vpop.f32.mrb[0].mxu0
        %v2876 = vadd.f32 %v2767, %v2875
        %v2877 = vpop.f32.mrb[0].mxu0
        %v2878 = vpop.f32.mrb[0].mxu0
        %v2879 = vadd.f32 %v2767, %v2878
        %v2880 = vpop.f32.mrb[0].mxu0
        %2881 = vdwg.mxu0
        %v2882 = vld [vmem:[%s298] sm:$0xf]
        %v2883 = vld [vmem:[%s298 + $0x4] sm:$0xf]
        %v2884 = vld [vmem:[%s298 + $0x8] sm:$0xf]
        %v2885 = vld [vmem:[%s298 + $0xc] sm:$0xf]
        %v2886 = vld [vmem:[%s298 + $0x10] sm:$0xf]
        %v2887 = vld [vmem:[%s298 + $0x14] sm:$0xf]
        %v2888 = vld [vmem:[%s298 + $0x18] sm:$0xf]
        %v2889 = vld [vmem:[%s298 + $0x1c] sm:$0xf]
        %v2890 = vunpack.c.l.bf16 %v2882
        %v2891 = vunpack.c.l.bf16 %v2883
        %v2892 = vunpack.c.l.bf16 %v2884
        %v2893 = vunpack.c.l.bf16 %v2885
        %v2894 = vunpack.c.l.bf16 %v2886
        %v2895 = vunpack.c.l.bf16 %v2887
        %v2896 = vunpack.c.l.bf16 %v2888
        %v2897 = vunpack.c.l.bf16 %v2889
        %v2898 = vadd.f32 %v2852, %v2890
        %v2899 = vadd.f32 %v2855, %v2891
        %v2900 = vadd.f32 %v2860, %v2892
        %v2901 = vadd.f32 %v2863, %v2893
        %v2902 = vadd.f32 %v2868, %v2894
        %v2903 = vadd.f32 %v2871, %v2895
        %v2904 = vadd.f32 %v2876, %v2896
        %v2905 = vadd.f32 %v2879, %v2897
        %v2906 = vmax.f32 %v2898, 0.0
        %v2907 = vmax.f32 %v2899, 0.0
        %v2908 = vmax.f32 %v2900, 0.0
        %v2909 = vmax.f32 %v2901, 0.0
        %v2910 = vmax.f32 %v2902, 0.0
        %v2911 = vmax.f32 %v2903, 0.0
        %v2912 = vmax.f32 %v2904, 0.0
        %v2913 = vmax.f32 %v2905, 0.0
        %v2914 = vpack.c.bf16 %v2907, %v2906
        %v2915 = vpack.c.bf16 %v2909, %v2908
        %v2916 = vpack.c.bf16 %v2911, %v2910
        %v2917 = vpack.c.bf16 %v2913, %v2912
        %v2922 = vunpack.c.l.b16 %v2914
        %v2923 = vunpack.c.h.b16 %v2914
        %v2924 = vunpack.c.l.b16 %v2915
        %v2925 = vunpack.c.h.b16 %v2915
        %v2926 = vunpack.c.l.b16 %v2916
        %v2927 = vunpack.c.h.b16 %v2916
        %v2928 = vunpack.c.l.b16 %v2917
        %v2929 = vunpack.c.h.b16 %v2917
        %v2930 = vpack.c.b16 %v2922, %v2922
        %v2931 = vpack.c.b16 %v2923, %v2923
        %v2932 = vpack.c.b16 %v2924, %v2924
        %v2933 = vpack.c.b16 %v2925, %v2925
        %v2934 = vpack.c.b16 %v2926, %v2926
        %v2935 = vpack.c.b16 %v2927, %v2927
        %v2936 = vpack.c.b16 %v2928, %v2928
        %v2937 = vpack.c.b16 %v2929, %v2929
        %2946 = vst [vmem:[%s340] sm:$0xf] %v2930
        %2947 = vst [vmem:[%s340 + $0x4] sm:$0xf] %v2931
        %2948 = vst [vmem:[%s340 + $0x8] sm:$0xf] %v2932
        %2949 = vst [vmem:[%s340 + $0xc] sm:$0xf] %v2933
        %2950 = vst [vmem:[%s340 + $0x10] sm:$0xf] %v2934
        %2951 = vst [vmem:[%s340 + $0x14] sm:$0xf] %v2935
        %2952 = vst [vmem:[%s340 + $0x18] sm:$0xf] %v2936
        %2953 = vst [vmem:[%s340 + $0x1c] sm:$0xf] %v2937
        %s2954 = sand.u32 %s186, 1
        %s2955 = scalar_lea.sflag [#allocation5], %s2954
        %s2956 = sand.u32 %s186, 1
        %s2957 = smul.addr %s2956, 32
        %s2958 = scalar_lea.vmem [#allocation11], %s2957
        // Predicated region
        $region65: #{tpu_custom_call.1} parent=47 // pred_check
          %p2959 = pneg %p196
        $region66: #{tpu_custom_call.1} parent=47 // pred_check_branch
          %2961 = sbr.rel (%p2959) target = $region68
        $region67: #{tpu_custom_call.1} parent=47 // pred_region
          %s2963 = ssub.s32 512, 512
          %2964 = vsyncadd %s2955, %s2963
          %s2965 = smul.addr %s26, 8
          %s2966 = smul.addr %s2965, 64
          %s2967 = scalar_lea.hbm %s7, %s2966
          %s2968 = sshll.u32 %s2958, 4
          %s2969 = int_to_ptr.vmem [resolvable:$true] %s2968
          %2974 = dma.vmem_to_hbm [thread:$0]  %s2969, 512, %s2967, %s2955, 64, 64, 4
        $region68: #{tpu_custom_call.1} parent=47 // pred_fallthru
          _
      $region48: #{tpu_custom_call.1} parent=5 // pred_fallthru
        _
      %p2975 = scmp.le.s32.totalorder 2, %s21
      // Predicated region
      $region69: #{tpu_custom_call.1} parent=5 // pred_check
        %p2976 = pneg %p2975
      $region70: #{tpu_custom_call.1} parent=5 // pred_check_branch
        %2978 = sbr.rel (%p2976) target = $region72
      $region71: #{tpu_custom_call.1} parent=5 // pred_region
        %s2979 = ssub.s32 %s21, 2
        // Predicated region
        $region73: #{tpu_custom_call.1} parent=71 // pred_check
          %p2980 = pneg %p202
        $region74: #{tpu_custom_call.1} parent=71 // pred_check_branch
          %2982 = sbr.rel (%p2980) target = $region76
        $region75: #{tpu_custom_call.1} parent=71 // pred_region
          %s2983 = sand.u32 %s187, 1
          %s2984 = scalar_lea.sflag [#allocation5], %s2983
          %s2985 = sand.u32 %s187, 1
          %s2986 = smul.addr %s2985, 32
          %s2987 = scalar_lea.vmem [#allocation11], %s2986
          %2988 = dma.done %s2984, 512
        $region76: #{tpu_custom_call.1} parent=71 // pred_fallthru
          _
      $region72: #{tpu_custom_call.1} parent=5 // pred_fallthru
        _
    $region6: #{tpu_custom_call.1} parent=1 // loop_footer
      %s25 = sadd.s32 1, %s21
    $region7: #{tpu_custom_call.1} parent=1 // loop_footer_branch
      %20 = sbr.rel target = $region3
    $region8: #{tpu_custom_call.1} parent=1 // loop_exit
      _
    %2989 = vsyncpa [#allocation4], 1
    %s2990 = scalar_lea.sflag [#allocation4], 1
    %2991 = vsyncpa %s2990, 1
    %2992 = vsyncpa [#allocation7], 1
    %2993 = vsyncpa [#allocation10], 1
    %2994 = vsyncpa [#allocation5], 1
    %s2995 = scalar_lea.sflag [#allocation5], 1
    %2996 = vsyncpa %s2995, 1

</llo_original>
